<compile_context>
chip_gen: v6e
topology: v6e:2x2x1
jax: 0.10.0
libtpu: 0.0.40
codegen_flags: <defaults>
</compile_context>

<pallas_src>
import functools
import math

import jax
import jax.numpy as jnp
from jax.experimental import pallas as pl
from jax.experimental.pallas import tpu as pltpu


CFG = dict(
    vocab_size=128,
    max_position=32,
    type_vocab_size=2,
    hidden=64,
    heads=4,
    layers=2,
    intermediate=128,
    num_labels=3,
)

_LANE = 128  # classifier output padded to one full lane tile


# ----------------------------------------------------------------------------
# Fused whole-model Pallas kernel
# ----------------------------------------------------------------------------

def _bert_fused_kernel(
    x_ref, mask_ref, eg_ref, eb_ref,
    wqkv_ref, bqkv_ref, wo_ref, bo_ref, g1_ref, b1_ref,
    wi_ref, bi_ref, wf_ref, bf_ref, g2_ref, b2_ref,
    cw_ref, cb_ref,
    logits_ref,
    *, B, S, H, nH, Dh, L, eps, scale,
):
    f32 = jnp.float32
    bf16 = jnp.bfloat16

    def layernorm(v, g, b):
        mean = jnp.mean(v, axis=-1, keepdims=True)
        var = jnp.mean(jnp.square(v - mean), axis=-1, keepdims=True)
        return (v - mean) * jax.lax.rsqrt(var + eps) * g + b

    def mm(a_bf, w_bf):
        # bf16 operands on the MXU, f32 accumulation.
        return jnp.dot(a_bf, w_bf, preferred_element_type=f32)

    # ---- embeddings: activations arrive bf16, LayerNorm math in f32 ---------
    x = layernorm(x_ref[...].astype(f32), eg_ref[...], eb_ref[...])   # (B*S,H)

    # Combined additive bias (attention mask on key positions + block-diagonal
    # -1e9 batch isolation), prebuilt in the wrapper: one (B*S, B*S) f32 add
    # per head, no per-batch re-slicing inside the kernel.
    mask = mask_ref[...]

    for l in range(L):
        x_bf = x.astype(bf16)                       # cast once per producer

        # ---- fused QKV projection: one (B*S, H) @ (H, 3H) matmul ------------
        qkv = mm(x_bf, wqkv_ref[l]) + bqkv_ref[l]   # (B*S, 3H) f32
        qkv_bf = qkv.astype(bf16)                   # single cast; heads sliced below

        wo_l = wo_ref[l]                            # (nH, Dh, H) bf16

        # ---- multi-head self-attention, batched over all B*S rows -----------
        # Cross-batch (query, key) pairs are killed by the block-diagonal mask,
        # so each head is a full (B*S, Dh)@(Dh, B*S) score matmul, a batched
        # softmax, a (B*S, B*S)@(B*S, Dh) ctx matmul, and its context is folded
        # straight into the output projection (ctx_h @ Wo[h]) — no ctx scratch.
        attn = None
        for h in range(nH):
            c = h * Dh
            qh = qkv_bf[:, c:c + Dh]
            kh = qkv_bf[:, H + c:H + c + Dh]
            vh = qkv_bf[:, 2 * H + c:2 * H + c + Dh]
            s = jax.lax.dot_general(                # q @ k^T, bf16 in / f32 acc
                qh, kh, (((1,), (1,)), ((), ())),
                preferred_element_type=f32) * scale
            s = s + mask                            # score/mask math stays f32
            s = s - jnp.max(s, axis=-1, keepdims=True)
            p = jnp.exp(s)
            p = p * pl.reciprocal(jnp.sum(p, axis=-1, keepdims=True), approx=True)
            ctx = mm(p.astype(bf16), vh)            # (B*S, Dh) f32
            part = mm(ctx.astype(bf16), wo_l[h])    # (B*S, H)  f32
            attn = part if attn is None else attn + part

        x = layernorm(attn + bo_ref[l] + x, g1_ref[l], b1_ref[l])

        # ---- feed-forward: GELU(x @ wi + bi) @ wf + bf -----------------------
        x_bf = x.astype(bf16)
        hmid = mm(x_bf, wi_ref[l]) + bi_ref[l]
        # Exact erf GELU to match the torch reference.
        # TODO(synk): at BERT-base FFN sizes consider the tanh GELU (EUP slot).
        hmid = 0.5 * hmid * (1.0 + jax.lax.erf(hmid * (1.0 / math.sqrt(2.0))))
        ffn = mm(hmid.astype(bf16), wf_ref[l]) + bf_ref[l]
        x = layernorm(ffn + x, g2_ref[l], b2_ref[l])

    # ---- CLS rows -> classifier: one matmul, one lane-dense (B, 128) store --
    # TODO(synk): nn.Dropout(p=0.3) is identity in eval mode; training-mode
    # stochastic dropout not implemented here.
    cls = jnp.concatenate([x[b * S:b * S + 1, :] for b in range(B)], axis=0)
    logits = mm(cls.astype(bf16), cw_ref[...]) + cb_ref[...]
    logits_ref[...] = logits.astype(logits_ref.dtype)


# ----------------------------------------------------------------------------
# Synthetic BERT parameters (deterministic)
# ----------------------------------------------------------------------------

def init_params(key, cfg):
    H, I, L = cfg["hidden"], cfg["intermediate"], cfg["layers"]
    std = 0.02
    ks = iter(jax.random.split(key, 64))

    def nrm(shape):
        return (std * jax.random.normal(next(ks), shape)).astype(jnp.float32)

    return {
        "word_emb": nrm((cfg["vocab_size"], H)),
        "pos_emb": nrm((cfg["max_position"], H)),
        "type_emb": nrm((cfg["type_vocab_size"], H)),
        "emb_ln_g": jnp.ones((1, H), jnp.float32),
        "emb_ln_b": jnp.zeros((1, H), jnp.float32),
        # per-layer params stacked along a leading L axis; Q/K/V fused.
        "wqkv": nrm((L, H, 3 * H)),
        "bqkv": jnp.zeros((L, 1, 3 * H), jnp.float32),
        "wo": nrm((L, H, H)),
        "bo": jnp.zeros((L, 1, H), jnp.float32),
        "ln1_g": jnp.ones((L, 1, H), jnp.float32),
        "ln1_b": jnp.zeros((L, 1, H), jnp.float32),
        "wi": nrm((L, H, I)),
        "bi": jnp.zeros((L, 1, I), jnp.float32),
        "wf": nrm((L, I, H)),
        "bf": jnp.zeros((L, 1, H), jnp.float32),
        "ln2_g": jnp.ones((L, 1, H), jnp.float32),
        "ln2_b": jnp.zeros((L, 1, H), jnp.float32),
        "cls_w": nrm((H, cfg["num_labels"])),
        "cls_b": jnp.zeros((cfg["num_labels"],), jnp.float32),
    }


# ----------------------------------------------------------------------------
# Forward pass: embedding gather in XLA glue, everything else in one kernel
# ----------------------------------------------------------------------------

def bert_with_softmax_forward(params, input_ids, attention_mask, cfg):
    B, S = input_ids.shape
    H, nH, L = cfg["hidden"], cfg["heads"], cfg["layers"]
    Dh = H // nH
    NL = cfg["num_labels"]

    # embeddings (gather stays in XLA glue; everything after is one Pallas call)
    pos_ids = jnp.arange(S, dtype=jnp.int32)
    emb = (jnp.take(params["word_emb"], input_ids, axis=0)
           + params["pos_emb"][pos_ids][None, :, :]
           + params["type_emb"][0][None, None, :]).reshape(B * S, H)
    emb = emb.astype(jnp.bfloat16)   # halves activation DMA; upcast in-kernel

    # Combined (B*S, B*S) additive bias: attention-mask bias on key positions
    # plus block-diagonal -1e9 batch isolation (lets the kernel batch attention
    # over all B*S rows with one well-shaped matmul per head).  Stays f32.
    bias = (1.0 - attention_mask.astype(jnp.float32)) * -1e9             # (B,S)
    key_bias = jnp.broadcast_to(bias.reshape(1, B * S), (B * S, B * S))
    row_b = jnp.repeat(jnp.arange(B, dtype=jnp.int32), S)
    same_batch = row_b[:, None] == row_b[None, :]
    mask2d = jnp.where(same_batch, key_bias, jnp.float32(-1e9))

    # matmul weights enter the kernel as bf16 (half the weight DMA bytes; MXU
    # runs bf16 with f32 accumulation).  Biases / LN params stay f32.
    wqkv = params["wqkv"].astype(jnp.bfloat16)
    # output projection pre-split per head so the kernel can fold the head
    # merge into per-head (Dh, H) matmuls (no ctx scratch / lane concat).
    wo_h = params["wo"].reshape(L, nH, Dh, H).astype(jnp.bfloat16)
    wi = params["wi"].astype(jnp.bfloat16)
    wf = params["wf"].astype(jnp.bfloat16)
    # classifier padded to a full 128-lane tile -> lane-dense, unmasked store
    cls_w = jnp.pad(params["cls_w"], ((0, 0), (0, _LANE - NL))).astype(jnp.bfloat16)
    cls_b = jnp.pad(params["cls_b"], (0, _LANE - NL)).reshape(1, _LANE)

    inputs = [
        emb, mask2d,
        params["emb_ln_g"], params["emb_ln_b"],
        wqkv, params["bqkv"], wo_h, params["bo"], params["ln1_g"], params["ln1_b"],
        wi, params["bi"], wf, params["bf"], params["ln2_g"], params["ln2_b"],
        cls_w, cls_b,
    ]

    def full_spec(arr):
        r = arr.ndim
        return pl.BlockSpec(arr.shape, lambda i, r=r: (0,) * r)

    kernel = functools.partial(
        _bert_fused_kernel, B=B, S=S, H=H, nH=nH, Dh=Dh, L=L,
        eps=1e-12, scale=1.0 / math.sqrt(Dh))

    # Single fused pallas_call: all weights + intermediates stay in VMEM.
    # TODO(synk): at real BERT shapes — add a leading "parallel" grid axis over
    # B*S row tiles (2 TCs on v7x; 256-row tiles on v6e/v7x vs 128 on v5e),
    # stream per-layer weights via a grid axis / emit_pipeline with
    # pl.Buffered(2) (bf16 BERT-base weights >> 64 MiB v7x VMEM), and raise
    # vmem_limit_bytes above the scoped default.
    logits_pad = pl.pallas_call(
        kernel,
        out_shape=jax.ShapeDtypeStruct((B, _LANE), jnp.float32),
        grid=(1,),
        in_specs=[full_spec(a) for a in inputs],
        out_specs=pl.BlockSpec((B, _LANE), lambda i: (0, 0)),
        compiler_params=pltpu.CompilerParams(
            dimension_semantics=("arbitrary",)),
    )(*inputs)

    return logits_pad[:, :NL]


# ----------------------------------------------------------------------------
# Main
# ----------------------------------------------------------------------------

if __name__ == "__main__":
    key = jax.random.PRNGKey(0)
    kp, kid = jax.random.split(key)

    params = init_params(kp, CFG)

    B, S = 2, 8
    input_ids = jax.random.randint(kid, (B, S), 0, CFG["vocab_size"],
                                   dtype=jnp.int32)
    attention_mask = jnp.ones((B, S), dtype=jnp.int32)

    fwd = jax.jit(functools.partial(bert_with_softmax_forward, cfg=CFG))
    logits = fwd(params, input_ids, attention_mask)
    logits = jax.block_until_ready(logits)

    assert logits.shape == (B, CFG["num_labels"]), logits.shape
    assert bool(jnp.all(jnp.isfinite(logits)))
    print("KERNEL_OK")
</pallas_src>

<mosaic_0001>
module attributes {stable_mosaic.version = 11 : i64} {
  func.func @_bert_fused_kernel(%arg0: i32, %arg1: memref<16x64xbf16, #tpu.memory_space<vmem>>, %arg2: memref<16x16xf32, #tpu.memory_space<vmem>>, %arg3: memref<1x64xf32, #tpu.memory_space<vmem>>, %arg4: memref<1x64xf32, #tpu.memory_space<vmem>>, %arg5: memref<2x64x192xbf16, #tpu.memory_space<vmem>>, %arg6: memref<2x1x192xf32, #tpu.memory_space<vmem>>, %arg7: memref<2x4x16x64xbf16, #tpu.memory_space<vmem>>, %arg8: memref<2x1x64xf32, #tpu.memory_space<vmem>>, %arg9: memref<2x1x64xf32, #tpu.memory_space<vmem>>, %arg10: memref<2x1x64xf32, #tpu.memory_space<vmem>>, %arg11: memref<2x64x128xbf16, #tpu.memory_space<vmem>>, %arg12: memref<2x1x128xf32, #tpu.memory_space<vmem>>, %arg13: memref<2x128x64xbf16, #tpu.memory_space<vmem>>, %arg14: memref<2x1x64xf32, #tpu.memory_space<vmem>>, %arg15: memref<2x1x64xf32, #tpu.memory_space<vmem>>, %arg16: memref<2x1x64xf32, #tpu.memory_space<vmem>>, %arg17: memref<64x128xbf16, #tpu.memory_space<vmem>>, %arg18: memref<1x128xf32, #tpu.memory_space<vmem>>, %arg19: memref<2x128xf32, #tpu.memory_space<vmem>>) attributes {dimension_semantics = [#tpu.dimension_semantics<arbitrary>], iteration_bounds = array<i64: 1>, scalar_prefetch = 0 : i64, scratch_operands = 0 : i64, tpu.core_type = #tpu.core_type<tc>, window_params = [{pipeline_mode = #tpu.pipeline_mode<synchronous>, transform_indices = @transform_0, window_bounds = array<i64: 16, 64>}, {pipeline_mode = #tpu.pipeline_mode<synchronous>, transform_indices = @transform_1, window_bounds = array<i64: 16, 16>}, {pipeline_mode = #tpu.pipeline_mode<synchronous>, transform_indices = @transform_2, window_bounds = array<i64: 1, 64>}, {pipeline_mode = #tpu.pipeline_mode<synchronous>, transform_indices = @transform_3, window_bounds = array<i64: 1, 64>}, {pipeline_mode = #tpu.pipeline_mode<synchronous>, transform_indices = @transform_4, window_bounds = array<i64: 2, 64, 192>}, {pipeline_mode = #tpu.pipeline_mode<synchronous>, transform_indices = @transform_5, window_bounds = array<i64: 2, 1, 192>}, {pipeline_mode = #tpu.pipeline_mode<synchronous>, transform_indices = @transform_6, window_bounds = array<i64: 2, 4, 16, 64>}, {pipeline_mode = #tpu.pipeline_mode<synchronous>, transform_indices = @transform_7, window_bounds = array<i64: 2, 1, 64>}, {pipeline_mode = #tpu.pipeline_mode<synchronous>, transform_indices = @transform_8, window_bounds = array<i64: 2, 1, 64>}, {pipeline_mode = #tpu.pipeline_mode<synchronous>, transform_indices = @transform_9, window_bounds = array<i64: 2, 1, 64>}, {pipeline_mode = #tpu.pipeline_mode<synchronous>, transform_indices = @transform_10, window_bounds = array<i64: 2, 64, 128>}, {pipeline_mode = #tpu.pipeline_mode<synchronous>, transform_indices = @transform_11, window_bounds = array<i64: 2, 1, 128>}, {pipeline_mode = #tpu.pipeline_mode<synchronous>, transform_indices = @transform_12, window_bounds = array<i64: 2, 128, 64>}, {pipeline_mode = #tpu.pipeline_mode<synchronous>, transform_indices = @transform_13, window_bounds = array<i64: 2, 1, 64>}, {pipeline_mode = #tpu.pipeline_mode<synchronous>, transform_indices = @transform_14, window_bounds = array<i64: 2, 1, 64>}, {pipeline_mode = #tpu.pipeline_mode<synchronous>, transform_indices = @transform_15, window_bounds = array<i64: 2, 1, 64>}, {pipeline_mode = #tpu.pipeline_mode<synchronous>, transform_indices = @transform_16, window_bounds = array<i64: 64, 128>}, {pipeline_mode = #tpu.pipeline_mode<synchronous>, transform_indices = @transform_17, window_bounds = array<i64: 1, 128>}, {pipeline_mode = #tpu.pipeline_mode<synchronous>, transform_indices = @transform_18, window_bounds = array<i64: 2, 128>}]} {
    %c0 = arith.constant 0 : index
    %c0_0 = arith.constant 0 : index
    %0 = vector.load %arg1[%c0, %c0_0] : memref<16x64xbf16, #tpu.memory_space<vmem>>, vector<16x64xbf16>
    %1 = arith.extf %0 : vector<16x64xbf16> to vector<16x64xf32>
    %c0_1 = arith.constant 0 : index
    %c0_2 = arith.constant 0 : index
    %2 = vector.load %arg3[%c0_1, %c0_2] : memref<1x64xf32, #tpu.memory_space<vmem>>, vector<1x64xf32>
    %c0_3 = arith.constant 0 : index
    %c0_4 = arith.constant 0 : index
    %3 = vector.load %arg4[%c0_3, %c0_4] : memref<1x64xf32, #tpu.memory_space<vmem>>, vector<1x64xf32>
    %cst = arith.constant dense<0.000000e+00> : vector<16xf32>
    %4 = vector.multi_reduction <add>, %1, %cst [1] : vector<16x64xf32> to vector<16xf32>
    %5 = vector.shape_cast %4 : vector<16xf32> to vector<16x1xf32>
    %cst_5 = arith.constant 6.400000e+01 : f32
    %6 = vector.broadcast %cst_5 : f32 to vector<16x1xf32>
    %7 = arith.divf %5, %6 : vector<16x1xf32>
    %8 = vector.broadcast %7 : vector<16x1xf32> to vector<16x64xf32>
    %9 = arith.subf %1, %8 : vector<16x64xf32>
    %10 = arith.mulf %9, %9 : vector<16x64xf32>
    %cst_6 = arith.constant dense<0.000000e+00> : vector<16xf32>
    %11 = vector.multi_reduction <add>, %10, %cst_6 [1] : vector<16x64xf32> to vector<16xf32>
    %12 = vector.shape_cast %11 : vector<16xf32> to vector<16x1xf32>
    %cst_7 = arith.constant 6.400000e+01 : f32
    %13 = vector.broadcast %cst_7 : f32 to vector<16x1xf32>
    %14 = arith.divf %12, %13 : vector<16x1xf32>
    %15 = vector.broadcast %7 : vector<16x1xf32> to vector<16x64xf32>
    %16 = arith.subf %1, %15 : vector<16x64xf32>
    %cst_8 = arith.constant 9.99999996E-13 : f32
    %17 = vector.broadcast %cst_8 : f32 to vector<16x1xf32>
    %18 = arith.addf %14, %17 : vector<16x1xf32>
    %19 = math.rsqrt %18 : vector<16x1xf32>
    %20 = vector.broadcast %19 : vector<16x1xf32> to vector<16x64xf32>
    %21 = arith.mulf %16, %20 : vector<16x64xf32>
    %22 = vector.broadcast %2 : vector<1x64xf32> to vector<16x64xf32>
    %23 = arith.mulf %21, %22 : vector<16x64xf32>
    %24 = vector.broadcast %3 : vector<1x64xf32> to vector<16x64xf32>
    %25 = arith.addf %23, %24 : vector<16x64xf32>
    %c0_9 = arith.constant 0 : index
    %c0_10 = arith.constant 0 : index
    %26 = vector.load %arg2[%c0_9, %c0_10] : memref<16x16xf32, #tpu.memory_space<vmem>>, vector<16x16xf32>
    %27 = arith.truncf %25 : vector<16x64xf32> to vector<16x64xbf16>
    %c0_11 = arith.constant 0 : index
    %c0_12 = arith.constant 0 : index
    %c0_13 = arith.constant 0 : index
    %28 = vector.load %arg5[%c0_11, %c0_12, %c0_13] : memref<2x64x192xbf16, #tpu.memory_space<vmem>>, vector<1x64x192xbf16>
    %29 = vector.shape_cast %28 : vector<1x64x192xbf16> to vector<64x192xbf16>
    %cst_14 = arith.constant dense<0.000000e+00> : vector<16x192xf32>
    %30 = tpu.matmul %27, %29, %cst_14 {dimension_numbers = #tpu.dot_dimension_numbers<[1], [0], [0], [1], [0, 0, 1, 1], [], []>} : vector<16x64xbf16>, vector<64x192xbf16>, vector<16x192xf32> -> vector<16x192xf32>
    %c0_15 = arith.constant 0 : index
    %c0_16 = arith.constant 0 : index
    %c0_17 = arith.constant 0 : index
    %31 = vector.load %arg6[%c0_15, %c0_16, %c0_17] : memref<2x1x192xf32, #tpu.memory_space<vmem>>, vector<1x1x192xf32>
    %32 = vector.shape_cast %31 : vector<1x1x192xf32> to vector<1x192xf32>
    %33 = vector.broadcast %32 : vector<1x192xf32> to vector<16x192xf32>
    %34 = arith.addf %30, %33 : vector<16x192xf32>
    %35 = arith.truncf %34 : vector<16x192xf32> to vector<16x192xbf16>
    %c0_18 = arith.constant 0 : index
    %c0_19 = arith.constant 0 : index
    %c0_20 = arith.constant 0 : index
    %c0_21 = arith.constant 0 : index
    %36 = vector.load %arg7[%c0_18, %c0_19, %c0_20, %c0_21] : memref<2x4x16x64xbf16, #tpu.memory_space<vmem>>, vector<1x4x16x64xbf16>
    %37 = vector.shape_cast %36 : vector<1x4x16x64xbf16> to vector<4x16x64xbf16>
    %38 = vector.extract_strided_slice %35 {offsets = [0, 0], sizes = [16, 16], strides = [1, 1]} : vector<16x192xbf16> to vector<16x16xbf16>
    %39 = vector.extract_strided_slice %35 {offsets = [0, 64], sizes = [16, 16], strides = [1, 1]} : vector<16x192xbf16> to vector<16x16xbf16>
    %40 = vector.extract_strided_slice %35 {offsets = [0, 128], sizes = [16, 16], strides = [1, 1]} : vector<16x192xbf16> to vector<16x16xbf16>
    %cst_22 = arith.constant dense<0.000000e+00> : vector<16x16xf32>
    %41 = tpu.matmul %38, %39, %cst_22 {dimension_numbers = #tpu.dot_dimension_numbers<[1], [1], [0], [0], [0, 0, 1, 0], [], []>} : vector<16x16xbf16>, vector<16x16xbf16>, vector<16x16xf32> -> vector<16x16xf32>
    %cst_23 = arith.constant 2.500000e-01 : f32
    %42 = vector.broadcast %cst_23 : f32 to vector<16x16xf32>
    %43 = arith.mulf %41, %42 : vector<16x16xf32>
    %44 = arith.addf %43, %26 : vector<16x16xf32>
    %cst_24 = arith.constant dense<0xFF800000> : vector<16xf32>
    %45 = vector.multi_reduction <maximumf>, %44, %cst_24 [1] : vector<16x16xf32> to vector<16xf32>
    %46 = vector.shape_cast %45 : vector<16xf32> to vector<16x1xf32>
    %47 = vector.broadcast %46 : vector<16x1xf32> to vector<16x16xf32>
    %48 = arith.subf %44, %47 : vector<16x16xf32>
    %49 = math.exp %48 : vector<16x16xf32>
    %cst_25 = arith.constant dense<0.000000e+00> : vector<16xf32>
    %50 = vector.multi_reduction <add>, %49, %cst_25 [1] : vector<16x16xf32> to vector<16xf32>
    %51 = vector.shape_cast %50 : vector<16xf32> to vector<16x1xf32>
    %52 = tpu.reciprocal %51 {approx = true} : vector<16x1xf32> -> vector<16x1xf32>
    %53 = vector.broadcast %52 : vector<16x1xf32> to vector<16x16xf32>
    %54 = arith.mulf %49, %53 : vector<16x16xf32>
    %55 = arith.truncf %54 : vector<16x16xf32> to vector<16x16xbf16>
    %cst_26 = arith.constant dense<0.000000e+00> : vector<16x16xf32>
    %56 = tpu.matmul %55, %40, %cst_26 {dimension_numbers = #tpu.dot_dimension_numbers<[1], [0], [0], [1], [0, 0, 1, 1], [], []>} : vector<16x16xbf16>, vector<16x16xbf16>, vector<16x16xf32> -> vector<16x16xf32>
    %57 = arith.truncf %56 : vector<16x16xf32> to vector<16x16xbf16>
    %58 = vector.extract_strided_slice %37 {offsets = [0, 0, 0], sizes = [1, 16, 64], strides = [1, 1, 1]} : vector<4x16x64xbf16> to vector<1x16x64xbf16>
    %59 = vector.shape_cast %58 : vector<1x16x64xbf16> to vector<16x64xbf16>
    %cst_27 = arith.constant dense<0.000000e+00> : vector<16x64xf32>
    %60 = tpu.matmul %57, %59, %cst_27 {dimension_numbers = #tpu.dot_dimension_numbers<[1], [0], [0], [1], [0, 0, 1, 1], [], []>} : vector<16x16xbf16>, vector<16x64xbf16>, vector<16x64xf32> -> vector<16x64xf32>
    %61 = vector.extract_strided_slice %35 {offsets = [0, 16], sizes = [16, 16], strides = [1, 1]} : vector<16x192xbf16> to vector<16x16xbf16>
    %62 = vector.extract_strided_slice %35 {offsets = [0, 80], sizes = [16, 16], strides = [1, 1]} : vector<16x192xbf16> to vector<16x16xbf16>
    %63 = vector.extract_strided_slice %35 {offsets = [0, 144], sizes = [16, 16], strides = [1, 1]} : vector<16x192xbf16> to vector<16x16xbf16>
    %cst_28 = arith.constant dense<0.000000e+00> : vector<16x16xf32>
    %64 = tpu.matmul %61, %62, %cst_28 {dimension_numbers = #tpu.dot_dimension_numbers<[1], [1], [0], [0], [0, 0, 1, 0], [], []>} : vector<16x16xbf16>, vector<16x16xbf16>, vector<16x16xf32> -> vector<16x16xf32>
    %cst_29 = arith.constant 2.500000e-01 : f32
    %65 = vector.broadcast %cst_29 : f32 to vector<16x16xf32>
    %66 = arith.mulf %64, %65 : vector<16x16xf32>
    %67 = arith.addf %66, %26 : vector<16x16xf32>
    %cst_30 = arith.constant dense<0xFF800000> : vector<16xf32>
    %68 = vector.multi_reduction <maximumf>, %67, %cst_30 [1] : vector<16x16xf32> to vector<16xf32>
    %69 = vector.shape_cast %68 : vector<16xf32> to vector<16x1xf32>
    %70 = vector.broadcast %69 : vector<16x1xf32> to vector<16x16xf32>
    %71 = arith.subf %67, %70 : vector<16x16xf32>
    %72 = math.exp %71 : vector<16x16xf32>
    %cst_31 = arith.constant dense<0.000000e+00> : vector<16xf32>
    %73 = vector.multi_reduction <add>, %72, %cst_31 [1] : vector<16x16xf32> to vector<16xf32>
    %74 = vector.shape_cast %73 : vector<16xf32> to vector<16x1xf32>
    %75 = tpu.reciprocal %74 {approx = true} : vector<16x1xf32> -> vector<16x1xf32>
    %76 = vector.broadcast %75 : vector<16x1xf32> to vector<16x16xf32>
    %77 = arith.mulf %72, %76 : vector<16x16xf32>
    %78 = arith.truncf %77 : vector<16x16xf32> to vector<16x16xbf16>
    %cst_32 = arith.constant dense<0.000000e+00> : vector<16x16xf32>
    %79 = tpu.matmul %78, %63, %cst_32 {dimension_numbers = #tpu.dot_dimension_numbers<[1], [0], [0], [1], [0, 0, 1, 1], [], []>} : vector<16x16xbf16>, vector<16x16xbf16>, vector<16x16xf32> -> vector<16x16xf32>
    %80 = arith.truncf %79 : vector<16x16xf32> to vector<16x16xbf16>
    %81 = vector.extract_strided_slice %37 {offsets = [1, 0, 0], sizes = [1, 16, 64], strides = [1, 1, 1]} : vector<4x16x64xbf16> to vector<1x16x64xbf16>
    %82 = vector.shape_cast %81 : vector<1x16x64xbf16> to vector<16x64xbf16>
    %cst_33 = arith.constant dense<0.000000e+00> : vector<16x64xf32>
    %83 = tpu.matmul %80, %82, %cst_33 {dimension_numbers = #tpu.dot_dimension_numbers<[1], [0], [0], [1], [0, 0, 1, 1], [], []>} : vector<16x16xbf16>, vector<16x64xbf16>, vector<16x64xf32> -> vector<16x64xf32>
    %84 = arith.addf %60, %83 : vector<16x64xf32>
    %85 = vector.extract_strided_slice %35 {offsets = [0, 32], sizes = [16, 16], strides = [1, 1]} : vector<16x192xbf16> to vector<16x16xbf16>
    %86 = vector.extract_strided_slice %35 {offsets = [0, 96], sizes = [16, 16], strides = [1, 1]} : vector<16x192xbf16> to vector<16x16xbf16>
    %87 = vector.extract_strided_slice %35 {offsets = [0, 160], sizes = [16, 16], strides = [1, 1]} : vector<16x192xbf16> to vector<16x16xbf16>
    %cst_34 = arith.constant dense<0.000000e+00> : vector<16x16xf32>
    %88 = tpu.matmul %85, %86, %cst_34 {dimension_numbers = #tpu.dot_dimension_numbers<[1], [1], [0], [0], [0, 0, 1, 0], [], []>} : vector<16x16xbf16>, vector<16x16xbf16>, vector<16x16xf32> -> vector<16x16xf32>
    %cst_35 = arith.constant 2.500000e-01 : f32
    %89 = vector.broadcast %cst_35 : f32 to vector<16x16xf32>
    %90 = arith.mulf %88, %89 : vector<16x16xf32>
    %91 = arith.addf %90, %26 : vector<16x16xf32>
    %cst_36 = arith.constant dense<0xFF800000> : vector<16xf32>
    %92 = vector.multi_reduction <maximumf>, %91, %cst_36 [1] : vector<16x16xf32> to vector<16xf32>
    %93 = vector.shape_cast %92 : vector<16xf32> to vector<16x1xf32>
    %94 = vector.broadcast %93 : vector<16x1xf32> to vector<16x16xf32>
    %95 = arith.subf %91, %94 : vector<16x16xf32>
    %96 = math.exp %95 : vector<16x16xf32>
    %cst_37 = arith.constant dense<0.000000e+00> : vector<16xf32>
    %97 = vector.multi_reduction <add>, %96, %cst_37 [1] : vector<16x16xf32> to vector<16xf32>
    %98 = vector.shape_cast %97 : vector<16xf32> to vector<16x1xf32>
    %99 = tpu.reciprocal %98 {approx = true} : vector<16x1xf32> -> vector<16x1xf32>
    %100 = vector.broadcast %99 : vector<16x1xf32> to vector<16x16xf32>
    %101 = arith.mulf %96, %100 : vector<16x16xf32>
    %102 = arith.truncf %101 : vector<16x16xf32> to vector<16x16xbf16>
    %cst_38 = arith.constant dense<0.000000e+00> : vector<16x16xf32>
    %103 = tpu.matmul %102, %87, %cst_38 {dimension_numbers = #tpu.dot_dimension_numbers<[1], [0], [0], [1], [0, 0, 1, 1], [], []>} : vector<16x16xbf16>, vector<16x16xbf16>, vector<16x16xf32> -> vector<16x16xf32>
    %104 = arith.truncf %103 : vector<16x16xf32> to vector<16x16xbf16>
    %105 = vector.extract_strided_slice %37 {offsets = [2, 0, 0], sizes = [1, 16, 64], strides = [1, 1, 1]} : vector<4x16x64xbf16> to vector<1x16x64xbf16>
    %106 = vector.shape_cast %105 : vector<1x16x64xbf16> to vector<16x64xbf16>
    %cst_39 = arith.constant dense<0.000000e+00> : vector<16x64xf32>
    %107 = tpu.matmul %104, %106, %cst_39 {dimension_numbers = #tpu.dot_dimension_numbers<[1], [0], [0], [1], [0, 0, 1, 1], [], []>} : vector<16x16xbf16>, vector<16x64xbf16>, vector<16x64xf32> -> vector<16x64xf32>
    %108 = arith.addf %84, %107 : vector<16x64xf32>
    %109 = vector.extract_strided_slice %35 {offsets = [0, 48], sizes = [16, 16], strides = [1, 1]} : vector<16x192xbf16> to vector<16x16xbf16>
    %110 = vector.extract_strided_slice %35 {offsets = [0, 112], sizes = [16, 16], strides = [1, 1]} : vector<16x192xbf16> to vector<16x16xbf16>
    %111 = vector.extract_strided_slice %35 {offsets = [0, 176], sizes = [16, 16], strides = [1, 1]} : vector<16x192xbf16> to vector<16x16xbf16>
    %cst_40 = arith.constant dense<0.000000e+00> : vector<16x16xf32>
    %112 = tpu.matmul %109, %110, %cst_40 {dimension_numbers = #tpu.dot_dimension_numbers<[1], [1], [0], [0], [0, 0, 1, 0], [], []>} : vector<16x16xbf16>, vector<16x16xbf16>, vector<16x16xf32> -> vector<16x16xf32>
    %cst_41 = arith.constant 2.500000e-01 : f32
    %113 = vector.broadcast %cst_41 : f32 to vector<16x16xf32>
    %114 = arith.mulf %112, %113 : vector<16x16xf32>
    %115 = arith.addf %114, %26 : vector<16x16xf32>
    %cst_42 = arith.constant dense<0xFF800000> : vector<16xf32>
    %116 = vector.multi_reduction <maximumf>, %115, %cst_42 [1] : vector<16x16xf32> to vector<16xf32>
    %117 = vector.shape_cast %116 : vector<16xf32> to vector<16x1xf32>
    %118 = vector.broadcast %117 : vector<16x1xf32> to vector<16x16xf32>
    %119 = arith.subf %115, %118 : vector<16x16xf32>
    %120 = math.exp %119 : vector<16x16xf32>
    %cst_43 = arith.constant dense<0.000000e+00> : vector<16xf32>
    %121 = vector.multi_reduction <add>, %120, %cst_43 [1] : vector<16x16xf32> to vector<16xf32>
    %122 = vector.shape_cast %121 : vector<16xf32> to vector<16x1xf32>
    %123 = tpu.reciprocal %122 {approx = true} : vector<16x1xf32> -> vector<16x1xf32>
    %124 = vector.broadcast %123 : vector<16x1xf32> to vector<16x16xf32>
    %125 = arith.mulf %120, %124 : vector<16x16xf32>
    %126 = arith.truncf %125 : vector<16x16xf32> to vector<16x16xbf16>
    %cst_44 = arith.constant dense<0.000000e+00> : vector<16x16xf32>
    %127 = tpu.matmul %126, %111, %cst_44 {dimension_numbers = #tpu.dot_dimension_numbers<[1], [0], [0], [1], [0, 0, 1, 1], [], []>} : vector<16x16xbf16>, vector<16x16xbf16>, vector<16x16xf32> -> vector<16x16xf32>
    %128 = arith.truncf %127 : vector<16x16xf32> to vector<16x16xbf16>
    %129 = vector.extract_strided_slice %37 {offsets = [3, 0, 0], sizes = [1, 16, 64], strides = [1, 1, 1]} : vector<4x16x64xbf16> to vector<1x16x64xbf16>
    %130 = vector.shape_cast %129 : vector<1x16x64xbf16> to vector<16x64xbf16>
    %cst_45 = arith.constant dense<0.000000e+00> : vector<16x64xf32>
    %131 = tpu.matmul %128, %130, %cst_45 {dimension_numbers = #tpu.dot_dimension_numbers<[1], [0], [0], [1], [0, 0, 1, 1], [], []>} : vector<16x16xbf16>, vector<16x64xbf16>, vector<16x64xf32> -> vector<16x64xf32>
    %132 = arith.addf %108, %131 : vector<16x64xf32>
    %c0_46 = arith.constant 0 : index
    %c0_47 = arith.constant 0 : index
    %c0_48 = arith.constant 0 : index
    %133 = vector.load %arg8[%c0_46, %c0_47, %c0_48] : memref<2x1x64xf32, #tpu.memory_space<vmem>>, vector<1x1x64xf32>
    %134 = vector.shape_cast %133 : vector<1x1x64xf32> to vector<1x64xf32>
    %135 = vector.broadcast %134 : vector<1x64xf32> to vector<16x64xf32>
    %136 = arith.addf %132, %135 : vector<16x64xf32>
    %137 = arith.addf %136, %25 : vector<16x64xf32>
    %c0_49 = arith.constant 0 : index
    %c0_50 = arith.constant 0 : index
    %c0_51 = arith.constant 0 : index
    %138 = vector.load %arg9[%c0_49, %c0_50, %c0_51] : memref<2x1x64xf32, #tpu.memory_space<vmem>>, vector<1x1x64xf32>
    %139 = vector.shape_cast %138 : vector<1x1x64xf32> to vector<1x64xf32>
    %c0_52 = arith.constant 0 : index
    %c0_53 = arith.constant 0 : index
    %c0_54 = arith.constant 0 : index
    %140 = vector.load %arg10[%c0_52, %c0_53, %c0_54] : memref<2x1x64xf32, #tpu.memory_space<vmem>>, vector<1x1x64xf32>
    %141 = vector.shape_cast %140 : vector<1x1x64xf32> to vector<1x64xf32>
    %cst_55 = arith.constant dense<0.000000e+00> : vector<16xf32>
    %142 = vector.multi_reduction <add>, %137, %cst_55 [1] : vector<16x64xf32> to vector<16xf32>
    %143 = vector.shape_cast %142 : vector<16xf32> to vector<16x1xf32>
    %cst_56 = arith.constant 6.400000e+01 : f32
    %144 = vector.broadcast %cst_56 : f32 to vector<16x1xf32>
    %145 = arith.divf %143, %144 : vector<16x1xf32>
    %146 = vector.broadcast %145 : vector<16x1xf32> to vector<16x64xf32>
    %147 = arith.subf %137, %146 : vector<16x64xf32>
    %148 = arith.mulf %147, %147 : vector<16x64xf32>
    %cst_57 = arith.constant dense<0.000000e+00> : vector<16xf32>
    %149 = vector.multi_reduction <add>, %148, %cst_57 [1] : vector<16x64xf32> to vector<16xf32>
    %150 = vector.shape_cast %149 : vector<16xf32> to vector<16x1xf32>
    %cst_58 = arith.constant 6.400000e+01 : f32
    %151 = vector.broadcast %cst_58 : f32 to vector<16x1xf32>
    %152 = arith.divf %150, %151 : vector<16x1xf32>
    %153 = vector.broadcast %145 : vector<16x1xf32> to vector<16x64xf32>
    %154 = arith.subf %137, %153 : vector<16x64xf32>
    %cst_59 = arith.constant 9.99999996E-13 : f32
    %155 = vector.broadcast %cst_59 : f32 to vector<16x1xf32>
    %156 = arith.addf %152, %155 : vector<16x1xf32>
    %157 = math.rsqrt %156 : vector<16x1xf32>
    %158 = vector.broadcast %157 : vector<16x1xf32> to vector<16x64xf32>
    %159 = arith.mulf %154, %158 : vector<16x64xf32>
    %160 = vector.broadcast %139 : vector<1x64xf32> to vector<16x64xf32>
    %161 = arith.mulf %159, %160 : vector<16x64xf32>
    %162 = vector.broadcast %141 : vector<1x64xf32> to vector<16x64xf32>
    %163 = arith.addf %161, %162 : vector<16x64xf32>
    %164 = arith.truncf %163 : vector<16x64xf32> to vector<16x64xbf16>
    %c0_60 = arith.constant 0 : index
    %c0_61 = arith.constant 0 : index
    %c0_62 = arith.constant 0 : index
    %165 = vector.load %arg11[%c0_60, %c0_61, %c0_62] : memref<2x64x128xbf16, #tpu.memory_space<vmem>>, vector<1x64x128xbf16>
    %166 = vector.shape_cast %165 : vector<1x64x128xbf16> to vector<64x128xbf16>
    %cst_63 = arith.constant dense<0.000000e+00> : vector<16x128xf32>
    %167 = tpu.matmul %164, %166, %cst_63 {dimension_numbers = #tpu.dot_dimension_numbers<[1], [0], [0], [1], [0, 0, 1, 1], [], []>} : vector<16x64xbf16>, vector<64x128xbf16>, vector<16x128xf32> -> vector<16x128xf32>
    %c0_64 = arith.constant 0 : index
    %c0_65 = arith.constant 0 : index
    %c0_66 = arith.constant 0 : index
    %168 = vector.load %arg12[%c0_64, %c0_65, %c0_66] : memref<2x1x128xf32, #tpu.memory_space<vmem>>, vector<1x1x128xf32>
    %169 = vector.shape_cast %168 : vector<1x1x128xf32> to vector<1x128xf32>
    %170 = vector.broadcast %169 : vector<1x128xf32> to vector<16x128xf32>
    %171 = arith.addf %167, %170 : vector<16x128xf32>
    %cst_67 = arith.constant 5.000000e-01 : f32
    %172 = vector.broadcast %cst_67 : f32 to vector<16x128xf32>
    %173 = arith.mulf %172, %171 : vector<16x128xf32>
    %cst_68 = arith.constant 0.707106769 : f32
    %174 = vector.broadcast %cst_68 : f32 to vector<16x128xf32>
    %175 = arith.mulf %171, %174 : vector<16x128xf32>
    %176 = math.erf %175 : vector<16x128xf32>
    %cst_69 = arith.constant 1.000000e+00 : f32
    %177 = vector.broadcast %cst_69 : f32 to vector<16x128xf32>
    %178 = arith.addf %177, %176 : vector<16x128xf32>
    %179 = arith.mulf %173, %178 : vector<16x128xf32>
    %180 = arith.truncf %179 : vector<16x128xf32> to vector<16x128xbf16>
    %c0_70 = arith.constant 0 : index
    %c0_71 = arith.constant 0 : index
    %c0_72 = arith.constant 0 : index
    %181 = vector.load %arg13[%c0_70, %c0_71, %c0_72] : memref<2x128x64xbf16, #tpu.memory_space<vmem>>, vector<1x128x64xbf16>
    %182 = vector.shape_cast %181 : vector<1x128x64xbf16> to vector<128x64xbf16>
    %cst_73 = arith.constant dense<0.000000e+00> : vector<16x64xf32>
    %183 = tpu.matmul %180, %182, %cst_73 {dimension_numbers = #tpu.dot_dimension_numbers<[1], [0], [0], [1], [0, 0, 1, 1], [], []>} : vector<16x128xbf16>, vector<128x64xbf16>, vector<16x64xf32> -> vector<16x64xf32>
    %c0_74 = arith.constant 0 : index
    %c0_75 = arith.constant 0 : index
    %c0_76 = arith.constant 0 : index
    %184 = vector.load %arg14[%c0_74, %c0_75, %c0_76] : memref<2x1x64xf32, #tpu.memory_space<vmem>>, vector<1x1x64xf32>
    %185 = vector.shape_cast %184 : vector<1x1x64xf32> to vector<1x64xf32>
    %186 = vector.broadcast %185 : vector<1x64xf32> to vector<16x64xf32>
    %187 = arith.addf %183, %186 : vector<16x64xf32>
    %188 = arith.addf %187, %163 : vector<16x64xf32>
    %c0_77 = arith.constant 0 : index
    %c0_78 = arith.constant 0 : index
    %c0_79 = arith.constant 0 : index
    %189 = vector.load %arg15[%c0_77, %c0_78, %c0_79] : memref<2x1x64xf32, #tpu.memory_space<vmem>>, vector<1x1x64xf32>
    %190 = vector.shape_cast %189 : vector<1x1x64xf32> to vector<1x64xf32>
    %c0_80 = arith.constant 0 : index
    %c0_81 = arith.constant 0 : index
    %c0_82 = arith.constant 0 : index
    %191 = vector.load %arg16[%c0_80, %c0_81, %c0_82] : memref<2x1x64xf32, #tpu.memory_space<vmem>>, vector<1x1x64xf32>
    %192 = vector.shape_cast %191 : vector<1x1x64xf32> to vector<1x64xf32>
    %cst_83 = arith.constant dense<0.000000e+00> : vector<16xf32>
    %193 = vector.multi_reduction <add>, %188, %cst_83 [1] : vector<16x64xf32> to vector<16xf32>
    %194 = vector.shape_cast %193 : vector<16xf32> to vector<16x1xf32>
    %cst_84 = arith.constant 6.400000e+01 : f32
    %195 = vector.broadcast %cst_84 : f32 to vector<16x1xf32>
    %196 = arith.divf %194, %195 : vector<16x1xf32>
    %197 = vector.broadcast %196 : vector<16x1xf32> to vector<16x64xf32>
    %198 = arith.subf %188, %197 : vector<16x64xf32>
    %199 = arith.mulf %198, %198 : vector<16x64xf32>
    %cst_85 = arith.constant dense<0.000000e+00> : vector<16xf32>
    %200 = vector.multi_reduction <add>, %199, %cst_85 [1] : vector<16x64xf32> to vector<16xf32>
    %201 = vector.shape_cast %200 : vector<16xf32> to vector<16x1xf32>
    %cst_86 = arith.constant 6.400000e+01 : f32
    %202 = vector.broadcast %cst_86 : f32 to vector<16x1xf32>
    %203 = arith.divf %201, %202 : vector<16x1xf32>
    %204 = vector.broadcast %196 : vector<16x1xf32> to vector<16x64xf32>
    %205 = arith.subf %188, %204 : vector<16x64xf32>
    %cst_87 = arith.constant 9.99999996E-13 : f32
    %206 = vector.broadcast %cst_87 : f32 to vector<16x1xf32>
    %207 = arith.addf %203, %206 : vector<16x1xf32>
    %208 = math.rsqrt %207 : vector<16x1xf32>
    %209 = vector.broadcast %208 : vector<16x1xf32> to vector<16x64xf32>
    %210 = arith.mulf %205, %209 : vector<16x64xf32>
    %211 = vector.broadcast %190 : vector<1x64xf32> to vector<16x64xf32>
    %212 = arith.mulf %210, %211 : vector<16x64xf32>
    %213 = vector.broadcast %192 : vector<1x64xf32> to vector<16x64xf32>
    %214 = arith.addf %212, %213 : vector<16x64xf32>
    %215 = arith.truncf %214 : vector<16x64xf32> to vector<16x64xbf16>
    %c1 = arith.constant 1 : index
    %c0_88 = arith.constant 0 : index
    %c0_89 = arith.constant 0 : index
    %216 = vector.load %arg5[%c1, %c0_88, %c0_89] : memref<2x64x192xbf16, #tpu.memory_space<vmem>>, vector<1x64x192xbf16>
    %217 = vector.shape_cast %216 : vector<1x64x192xbf16> to vector<64x192xbf16>
    %cst_90 = arith.constant dense<0.000000e+00> : vector<16x192xf32>
    %218 = tpu.matmul %215, %217, %cst_90 {dimension_numbers = #tpu.dot_dimension_numbers<[1], [0], [0], [1], [0, 0, 1, 1], [], []>} : vector<16x64xbf16>, vector<64x192xbf16>, vector<16x192xf32> -> vector<16x192xf32>
    %c1_91 = arith.constant 1 : index
    %c0_92 = arith.constant 0 : index
    %c0_93 = arith.constant 0 : index
    %219 = vector.load %arg6[%c1_91, %c0_92, %c0_93] : memref<2x1x192xf32, #tpu.memory_space<vmem>>, vector<1x1x192xf32>
    %220 = vector.shape_cast %219 : vector<1x1x192xf32> to vector<1x192xf32>
    %221 = vector.broadcast %220 : vector<1x192xf32> to vector<16x192xf32>
    %222 = arith.addf %218, %221 : vector<16x192xf32>
    %223 = arith.truncf %222 : vector<16x192xf32> to vector<16x192xbf16>
    %c1_94 = arith.constant 1 : index
    %c0_95 = arith.constant 0 : index
    %c0_96 = arith.constant 0 : index
    %c0_97 = arith.constant 0 : index
    %224 = vector.load %arg7[%c1_94, %c0_95, %c0_96, %c0_97] : memref<2x4x16x64xbf16, #tpu.memory_space<vmem>>, vector<1x4x16x64xbf16>
    %225 = vector.shape_cast %224 : vector<1x4x16x64xbf16> to vector<4x16x64xbf16>
    %226 = vector.extract_strided_slice %223 {offsets = [0, 0], sizes = [16, 16], strides = [1, 1]} : vector<16x192xbf16> to vector<16x16xbf16>
    %227 = vector.extract_strided_slice %223 {offsets = [0, 64], sizes = [16, 16], strides = [1, 1]} : vector<16x192xbf16> to vector<16x16xbf16>
    %228 = vector.extract_strided_slice %223 {offsets = [0, 128], sizes = [16, 16], strides = [1, 1]} : vector<16x192xbf16> to vector<16x16xbf16>
    %cst_98 = arith.constant dense<0.000000e+00> : vector<16x16xf32>
    %229 = tpu.matmul %226, %227, %cst_98 {dimension_numbers = #tpu.dot_dimension_numbers<[1], [1], [0], [0], [0, 0, 1, 0], [], []>} : vector<16x16xbf16>, vector<16x16xbf16>, vector<16x16xf32> -> vector<16x16xf32>
    %cst_99 = arith.constant 2.500000e-01 : f32
    %230 = vector.broadcast %cst_99 : f32 to vector<16x16xf32>
    %231 = arith.mulf %229, %230 : vector<16x16xf32>
    %232 = arith.addf %231, %26 : vector<16x16xf32>
    %cst_100 = arith.constant dense<0xFF800000> : vector<16xf32>
    %233 = vector.multi_reduction <maximumf>, %232, %cst_100 [1] : vector<16x16xf32> to vector<16xf32>
    %234 = vector.shape_cast %233 : vector<16xf32> to vector<16x1xf32>
    %235 = vector.broadcast %234 : vector<16x1xf32> to vector<16x16xf32>
    %236 = arith.subf %232, %235 : vector<16x16xf32>
    %237 = math.exp %236 : vector<16x16xf32>
    %cst_101 = arith.constant dense<0.000000e+00> : vector<16xf32>
    %238 = vector.multi_reduction <add>, %237, %cst_101 [1] : vector<16x16xf32> to vector<16xf32>
    %239 = vector.shape_cast %238 : vector<16xf32> to vector<16x1xf32>
    %240 = tpu.reciprocal %239 {approx = true} : vector<16x1xf32> -> vector<16x1xf32>
    %241 = vector.broadcast %240 : vector<16x1xf32> to vector<16x16xf32>
    %242 = arith.mulf %237, %241 : vector<16x16xf32>
    %243 = arith.truncf %242 : vector<16x16xf32> to vector<16x16xbf16>
    %cst_102 = arith.constant dense<0.000000e+00> : vector<16x16xf32>
    %244 = tpu.matmul %243, %228, %cst_102 {dimension_numbers = #tpu.dot_dimension_numbers<[1], [0], [0], [1], [0, 0, 1, 1], [], []>} : vector<16x16xbf16>, vector<16x16xbf16>, vector<16x16xf32> -> vector<16x16xf32>
    %245 = arith.truncf %244 : vector<16x16xf32> to vector<16x16xbf16>
    %246 = vector.extract_strided_slice %225 {offsets = [0, 0, 0], sizes = [1, 16, 64], strides = [1, 1, 1]} : vector<4x16x64xbf16> to vector<1x16x64xbf16>
    %247 = vector.shape_cast %246 : vector<1x16x64xbf16> to vector<16x64xbf16>
    %cst_103 = arith.constant dense<0.000000e+00> : vector<16x64xf32>
    %248 = tpu.matmul %245, %247, %cst_103 {dimension_numbers = #tpu.dot_dimension_numbers<[1], [0], [0], [1], [0, 0, 1, 1], [], []>} : vector<16x16xbf16>, vector<16x64xbf16>, vector<16x64xf32> -> vector<16x64xf32>
    %249 = vector.extract_strided_slice %223 {offsets = [0, 16], sizes = [16, 16], strides = [1, 1]} : vector<16x192xbf16> to vector<16x16xbf16>
    %250 = vector.extract_strided_slice %223 {offsets = [0, 80], sizes = [16, 16], strides = [1, 1]} : vector<16x192xbf16> to vector<16x16xbf16>
    %251 = vector.extract_strided_slice %223 {offsets = [0, 144], sizes = [16, 16], strides = [1, 1]} : vector<16x192xbf16> to vector<16x16xbf16>
    %cst_104 = arith.constant dense<0.000000e+00> : vector<16x16xf32>
    %252 = tpu.matmul %249, %250, %cst_104 {dimension_numbers = #tpu.dot_dimension_numbers<[1], [1], [0], [0], [0, 0, 1, 0], [], []>} : vector<16x16xbf16>, vector<16x16xbf16>, vector<16x16xf32> -> vector<16x16xf32>
    %cst_105 = arith.constant 2.500000e-01 : f32
    %253 = vector.broadcast %cst_105 : f32 to vector<16x16xf32>
    %254 = arith.mulf %252, %253 : vector<16x16xf32>
    %255 = arith.addf %254, %26 : vector<16x16xf32>
    %cst_106 = arith.constant dense<0xFF800000> : vector<16xf32>
    %256 = vector.multi_reduction <maximumf>, %255, %cst_106 [1] : vector<16x16xf32> to vector<16xf32>
    %257 = vector.shape_cast %256 : vector<16xf32> to vector<16x1xf32>
    %258 = vector.broadcast %257 : vector<16x1xf32> to vector<16x16xf32>
    %259 = arith.subf %255, %258 : vector<16x16xf32>
    %260 = math.exp %259 : vector<16x16xf32>
    %cst_107 = arith.constant dense<0.000000e+00> : vector<16xf32>
    %261 = vector.multi_reduction <add>, %260, %cst_107 [1] : vector<16x16xf32> to vector<16xf32>
    %262 = vector.shape_cast %261 : vector<16xf32> to vector<16x1xf32>
    %263 = tpu.reciprocal %262 {approx = true} : vector<16x1xf32> -> vector<16x1xf32>
    %264 = vector.broadcast %263 : vector<16x1xf32> to vector<16x16xf32>
    %265 = arith.mulf %260, %264 : vector<16x16xf32>
    %266 = arith.truncf %265 : vector<16x16xf32> to vector<16x16xbf16>
    %cst_108 = arith.constant dense<0.000000e+00> : vector<16x16xf32>
    %267 = tpu.matmul %266, %251, %cst_108 {dimension_numbers = #tpu.dot_dimension_numbers<[1], [0], [0], [1], [0, 0, 1, 1], [], []>} : vector<16x16xbf16>, vector<16x16xbf16>, vector<16x16xf32> -> vector<16x16xf32>
    %268 = arith.truncf %267 : vector<16x16xf32> to vector<16x16xbf16>
    %269 = vector.extract_strided_slice %225 {offsets = [1, 0, 0], sizes = [1, 16, 64], strides = [1, 1, 1]} : vector<4x16x64xbf16> to vector<1x16x64xbf16>
    %270 = vector.shape_cast %269 : vector<1x16x64xbf16> to vector<16x64xbf16>
    %cst_109 = arith.constant dense<0.000000e+00> : vector<16x64xf32>
    %271 = tpu.matmul %268, %270, %cst_109 {dimension_numbers = #tpu.dot_dimension_numbers<[1], [0], [0], [1], [0, 0, 1, 1], [], []>} : vector<16x16xbf16>, vector<16x64xbf16>, vector<16x64xf32> -> vector<16x64xf32>
    %272 = arith.addf %248, %271 : vector<16x64xf32>
    %273 = vector.extract_strided_slice %223 {offsets = [0, 32], sizes = [16, 16], strides = [1, 1]} : vector<16x192xbf16> to vector<16x16xbf16>
    %274 = vector.extract_strided_slice %223 {offsets = [0, 96], sizes = [16, 16], strides = [1, 1]} : vector<16x192xbf16> to vector<16x16xbf16>
    %275 = vector.extract_strided_slice %223 {offsets = [0, 160], sizes = [16, 16], strides = [1, 1]} : vector<16x192xbf16> to vector<16x16xbf16>
    %cst_110 = arith.constant dense<0.000000e+00> : vector<16x16xf32>
    %276 = tpu.matmul %273, %274, %cst_110 {dimension_numbers = #tpu.dot_dimension_numbers<[1], [1], [0], [0], [0, 0, 1, 0], [], []>} : vector<16x16xbf16>, vector<16x16xbf16>, vector<16x16xf32> -> vector<16x16xf32>
    %cst_111 = arith.constant 2.500000e-01 : f32
    %277 = vector.broadcast %cst_111 : f32 to vector<16x16xf32>
    %278 = arith.mulf %276, %277 : vector<16x16xf32>
    %279 = arith.addf %278, %26 : vector<16x16xf32>
    %cst_112 = arith.constant dense<0xFF800000> : vector<16xf32>
    %280 = vector.multi_reduction <maximumf>, %279, %cst_112 [1] : vector<16x16xf32> to vector<16xf32>
    %281 = vector.shape_cast %280 : vector<16xf32> to vector<16x1xf32>
    %282 = vector.broadcast %281 : vector<16x1xf32> to vector<16x16xf32>
    %283 = arith.subf %279, %282 : vector<16x16xf32>
    %284 = math.exp %283 : vector<16x16xf32>
    %cst_113 = arith.constant dense<0.000000e+00> : vector<16xf32>
    %285 = vector.multi_reduction <add>, %284, %cst_113 [1] : vector<16x16xf32> to vector<16xf32>
    %286 = vector.shape_cast %285 : vector<16xf32> to vector<16x1xf32>
    %287 = tpu.reciprocal %286 {approx = true} : vector<16x1xf32> -> vector<16x1xf32>
    %288 = vector.broadcast %287 : vector<16x1xf32> to vector<16x16xf32>
    %289 = arith.mulf %284, %288 : vector<16x16xf32>
    %290 = arith.truncf %289 : vector<16x16xf32> to vector<16x16xbf16>
    %cst_114 = arith.constant dense<0.000000e+00> : vector<16x16xf32>
    %291 = tpu.matmul %290, %275, %cst_114 {dimension_numbers = #tpu.dot_dimension_numbers<[1], [0], [0], [1], [0, 0, 1, 1], [], []>} : vector<16x16xbf16>, vector<16x16xbf16>, vector<16x16xf32> -> vector<16x16xf32>
    %292 = arith.truncf %291 : vector<16x16xf32> to vector<16x16xbf16>
    %293 = vector.extract_strided_slice %225 {offsets = [2, 0, 0], sizes = [1, 16, 64], strides = [1, 1, 1]} : vector<4x16x64xbf16> to vector<1x16x64xbf16>
    %294 = vector.shape_cast %293 : vector<1x16x64xbf16> to vector<16x64xbf16>
    %cst_115 = arith.constant dense<0.000000e+00> : vector<16x64xf32>
    %295 = tpu.matmul %292, %294, %cst_115 {dimension_numbers = #tpu.dot_dimension_numbers<[1], [0], [0], [1], [0, 0, 1, 1], [], []>} : vector<16x16xbf16>, vector<16x64xbf16>, vector<16x64xf32> -> vector<16x64xf32>
    %296 = arith.addf %272, %295 : vector<16x64xf32>
    %297 = vector.extract_strided_slice %223 {offsets = [0, 48], sizes = [16, 16], strides = [1, 1]} : vector<16x192xbf16> to vector<16x16xbf16>
    %298 = vector.extract_strided_slice %223 {offsets = [0, 112], sizes = [16, 16], strides = [1, 1]} : vector<16x192xbf16> to vector<16x16xbf16>
    %299 = vector.extract_strided_slice %223 {offsets = [0, 176], sizes = [16, 16], strides = [1, 1]} : vector<16x192xbf16> to vector<16x16xbf16>
    %cst_116 = arith.constant dense<0.000000e+00> : vector<16x16xf32>
    %300 = tpu.matmul %297, %298, %cst_116 {dimension_numbers = #tpu.dot_dimension_numbers<[1], [1], [0], [0], [0, 0, 1, 0], [], []>} : vector<16x16xbf16>, vector<16x16xbf16>, vector<16x16xf32> -> vector<16x16xf32>
    %cst_117 = arith.constant 2.500000e-01 : f32
    %301 = vector.broadcast %cst_117 : f32 to vector<16x16xf32>
    %302 = arith.mulf %300, %301 : vector<16x16xf32>
    %303 = arith.addf %302, %26 : vector<16x16xf32>
    %cst_118 = arith.constant dense<0xFF800000> : vector<16xf32>
    %304 = vector.multi_reduction <maximumf>, %303, %cst_118 [1] : vector<16x16xf32> to vector<16xf32>
    %305 = vector.shape_cast %304 : vector<16xf32> to vector<16x1xf32>
    %306 = vector.broadcast %305 : vector<16x1xf32> to vector<16x16xf32>
    %307 = arith.subf %303, %306 : vector<16x16xf32>
    %308 = math.exp %307 : vector<16x16xf32>
    %cst_119 = arith.constant dense<0.000000e+00> : vector<16xf32>
    %309 = vector.multi_reduction <add>, %308, %cst_119 [1] : vector<16x16xf32> to vector<16xf32>
    %310 = vector.shape_cast %309 : vector<16xf32> to vector<16x1xf32>
    %311 = tpu.reciprocal %310 {approx = true} : vector<16x1xf32> -> vector<16x1xf32>
    %312 = vector.broadcast %311 : vector<16x1xf32> to vector<16x16xf32>
    %313 = arith.mulf %308, %312 : vector<16x16xf32>
    %314 = arith.truncf %313 : vector<16x16xf32> to vector<16x16xbf16>
    %cst_120 = arith.constant dense<0.000000e+00> : vector<16x16xf32>
    %315 = tpu.matmul %314, %299, %cst_120 {dimension_numbers = #tpu.dot_dimension_numbers<[1], [0], [0], [1], [0, 0, 1, 1], [], []>} : vector<16x16xbf16>, vector<16x16xbf16>, vector<16x16xf32> -> vector<16x16xf32>
    %316 = arith.truncf %315 : vector<16x16xf32> to vector<16x16xbf16>
    %317 = vector.extract_strided_slice %225 {offsets = [3, 0, 0], sizes = [1, 16, 64], strides = [1, 1, 1]} : vector<4x16x64xbf16> to vector<1x16x64xbf16>
    %318 = vector.shape_cast %317 : vector<1x16x64xbf16> to vector<16x64xbf16>
    %cst_121 = arith.constant dense<0.000000e+00> : vector<16x64xf32>
    %319 = tpu.matmul %316, %318, %cst_121 {dimension_numbers = #tpu.dot_dimension_numbers<[1], [0], [0], [1], [0, 0, 1, 1], [], []>} : vector<16x16xbf16>, vector<16x64xbf16>, vector<16x64xf32> -> vector<16x64xf32>
    %320 = arith.addf %296, %319 : vector<16x64xf32>
    %c1_122 = arith.constant 1 : index
    %c0_123 = arith.constant 0 : index
    %c0_124 = arith.constant 0 : index
    %321 = vector.load %arg8[%c1_122, %c0_123, %c0_124] : memref<2x1x64xf32, #tpu.memory_space<vmem>>, vector<1x1x64xf32>
    %322 = vector.shape_cast %321 : vector<1x1x64xf32> to vector<1x64xf32>
    %323 = vector.broadcast %322 : vector<1x64xf32> to vector<16x64xf32>
    %324 = arith.addf %320, %323 : vector<16x64xf32>
    %325 = arith.addf %324, %214 : vector<16x64xf32>
    %c1_125 = arith.constant 1 : index
    %c0_126 = arith.constant 0 : index
    %c0_127 = arith.constant 0 : index
    %326 = vector.load %arg9[%c1_125, %c0_126, %c0_127] : memref<2x1x64xf32, #tpu.memory_space<vmem>>, vector<1x1x64xf32>
    %327 = vector.shape_cast %326 : vector<1x1x64xf32> to vector<1x64xf32>
    %c1_128 = arith.constant 1 : index
    %c0_129 = arith.constant 0 : index
    %c0_130 = arith.constant 0 : index
    %328 = vector.load %arg10[%c1_128, %c0_129, %c0_130] : memref<2x1x64xf32, #tpu.memory_space<vmem>>, vector<1x1x64xf32>
    %329 = vector.shape_cast %328 : vector<1x1x64xf32> to vector<1x64xf32>
    %cst_131 = arith.constant dense<0.000000e+00> : vector<16xf32>
    %330 = vector.multi_reduction <add>, %325, %cst_131 [1] : vector<16x64xf32> to vector<16xf32>
    %331 = vector.shape_cast %330 : vector<16xf32> to vector<16x1xf32>
    %cst_132 = arith.constant 6.400000e+01 : f32
    %332 = vector.broadcast %cst_132 : f32 to vector<16x1xf32>
    %333 = arith.divf %331, %332 : vector<16x1xf32>
    %334 = vector.broadcast %333 : vector<16x1xf32> to vector<16x64xf32>
    %335 = arith.subf %325, %334 : vector<16x64xf32>
    %336 = arith.mulf %335, %335 : vector<16x64xf32>
    %cst_133 = arith.constant dense<0.000000e+00> : vector<16xf32>
    %337 = vector.multi_reduction <add>, %336, %cst_133 [1] : vector<16x64xf32> to vector<16xf32>
    %338 = vector.shape_cast %337 : vector<16xf32> to vector<16x1xf32>
    %cst_134 = arith.constant 6.400000e+01 : f32
    %339 = vector.broadcast %cst_134 : f32 to vector<16x1xf32>
    %340 = arith.divf %338, %339 : vector<16x1xf32>
    %341 = vector.broadcast %333 : vector<16x1xf32> to vector<16x64xf32>
    %342 = arith.subf %325, %341 : vector<16x64xf32>
    %cst_135 = arith.constant 9.99999996E-13 : f32
    %343 = vector.broadcast %cst_135 : f32 to vector<16x1xf32>
    %344 = arith.addf %340, %343 : vector<16x1xf32>
    %345 = math.rsqrt %344 : vector<16x1xf32>
    %346 = vector.broadcast %345 : vector<16x1xf32> to vector<16x64xf32>
    %347 = arith.mulf %342, %346 : vector<16x64xf32>
    %348 = vector.broadcast %327 : vector<1x64xf32> to vector<16x64xf32>
    %349 = arith.mulf %347, %348 : vector<16x64xf32>
    %350 = vector.broadcast %329 : vector<1x64xf32> to vector<16x64xf32>
    %351 = arith.addf %349, %350 : vector<16x64xf32>
    %352 = arith.truncf %351 : vector<16x64xf32> to vector<16x64xbf16>
    %c1_136 = arith.constant 1 : index
    %c0_137 = arith.constant 0 : index
    %c0_138 = arith.constant 0 : index
    %353 = vector.load %arg11[%c1_136, %c0_137, %c0_138] : memref<2x64x128xbf16, #tpu.memory_space<vmem>>, vector<1x64x128xbf16>
    %354 = vector.shape_cast %353 : vector<1x64x128xbf16> to vector<64x128xbf16>
    %cst_139 = arith.constant dense<0.000000e+00> : vector<16x128xf32>
    %355 = tpu.matmul %352, %354, %cst_139 {dimension_numbers = #tpu.dot_dimension_numbers<[1], [0], [0], [1], [0, 0, 1, 1], [], []>} : vector<16x64xbf16>, vector<64x128xbf16>, vector<16x128xf32> -> vector<16x128xf32>
    %c1_140 = arith.constant 1 : index
    %c0_141 = arith.constant 0 : index
    %c0_142 = arith.constant 0 : index
    %356 = vector.load %arg12[%c1_140, %c0_141, %c0_142] : memref<2x1x128xf32, #tpu.memory_space<vmem>>, vector<1x1x128xf32>
    %357 = vector.shape_cast %356 : vector<1x1x128xf32> to vector<1x128xf32>
    %358 = vector.broadcast %357 : vector<1x128xf32> to vector<16x128xf32>
    %359 = arith.addf %355, %358 : vector<16x128xf32>
    %cst_143 = arith.constant 5.000000e-01 : f32
    %360 = vector.broadcast %cst_143 : f32 to vector<16x128xf32>
    %361 = arith.mulf %360, %359 : vector<16x128xf32>
    %cst_144 = arith.constant 0.707106769 : f32
    %362 = vector.broadcast %cst_144 : f32 to vector<16x128xf32>
    %363 = arith.mulf %359, %362 : vector<16x128xf32>
    %364 = math.erf %363 : vector<16x128xf32>
    %cst_145 = arith.constant 1.000000e+00 : f32
    %365 = vector.broadcast %cst_145 : f32 to vector<16x128xf32>
    %366 = arith.addf %365, %364 : vector<16x128xf32>
    %367 = arith.mulf %361, %366 : vector<16x128xf32>
    %368 = arith.truncf %367 : vector<16x128xf32> to vector<16x128xbf16>
    %c1_146 = arith.constant 1 : index
    %c0_147 = arith.constant 0 : index
    %c0_148 = arith.constant 0 : index
    %369 = vector.load %arg13[%c1_146, %c0_147, %c0_148] : memref<2x128x64xbf16, #tpu.memory_space<vmem>>, vector<1x128x64xbf16>
    %370 = vector.shape_cast %369 : vector<1x128x64xbf16> to vector<128x64xbf16>
    %cst_149 = arith.constant dense<0.000000e+00> : vector<16x64xf32>
    %371 = tpu.matmul %368, %370, %cst_149 {dimension_numbers = #tpu.dot_dimension_numbers<[1], [0], [0], [1], [0, 0, 1, 1], [], []>} : vector<16x128xbf16>, vector<128x64xbf16>, vector<16x64xf32> -> vector<16x64xf32>
    %c1_150 = arith.constant 1 : index
    %c0_151 = arith.constant 0 : index
    %c0_152 = arith.constant 0 : index
    %372 = vector.load %arg14[%c1_150, %c0_151, %c0_152] : memref<2x1x64xf32, #tpu.memory_space<vmem>>, vector<1x1x64xf32>
    %373 = vector.shape_cast %372 : vector<1x1x64xf32> to vector<1x64xf32>
    %374 = vector.broadcast %373 : vector<1x64xf32> to vector<16x64xf32>
    %375 = arith.addf %371, %374 : vector<16x64xf32>
    %376 = arith.addf %375, %351 : vector<16x64xf32>
    %c1_153 = arith.constant 1 : index
    %c0_154 = arith.constant 0 : index
    %c0_155 = arith.constant 0 : index
    %377 = vector.load %arg15[%c1_153, %c0_154, %c0_155] : memref<2x1x64xf32, #tpu.memory_space<vmem>>, vector<1x1x64xf32>
    %378 = vector.shape_cast %377 : vector<1x1x64xf32> to vector<1x64xf32>
    %c1_156 = arith.constant 1 : index
    %c0_157 = arith.constant 0 : index
    %c0_158 = arith.constant 0 : index
    %379 = vector.load %arg16[%c1_156, %c0_157, %c0_158] : memref<2x1x64xf32, #tpu.memory_space<vmem>>, vector<1x1x64xf32>
    %380 = vector.shape_cast %379 : vector<1x1x64xf32> to vector<1x64xf32>
    %cst_159 = arith.constant dense<0.000000e+00> : vector<16xf32>
    %381 = vector.multi_reduction <add>, %376, %cst_159 [1] : vector<16x64xf32> to vector<16xf32>
    %382 = vector.shape_cast %381 : vector<16xf32> to vector<16x1xf32>
    %cst_160 = arith.constant 6.400000e+01 : f32
    %383 = vector.broadcast %cst_160 : f32 to vector<16x1xf32>
    %384 = arith.divf %382, %383 : vector<16x1xf32>
    %385 = vector.broadcast %384 : vector<16x1xf32> to vector<16x64xf32>
    %386 = arith.subf %376, %385 : vector<16x64xf32>
    %387 = arith.mulf %386, %386 : vector<16x64xf32>
    %cst_161 = arith.constant dense<0.000000e+00> : vector<16xf32>
    %388 = vector.multi_reduction <add>, %387, %cst_161 [1] : vector<16x64xf32> to vector<16xf32>
    %389 = vector.shape_cast %388 : vector<16xf32> to vector<16x1xf32>
    %cst_162 = arith.constant 6.400000e+01 : f32
    %390 = vector.broadcast %cst_162 : f32 to vector<16x1xf32>
    %391 = arith.divf %389, %390 : vector<16x1xf32>
    %392 = vector.broadcast %384 : vector<16x1xf32> to vector<16x64xf32>
    %393 = arith.subf %376, %392 : vector<16x64xf32>
    %cst_163 = arith.constant 9.99999996E-13 : f32
    %394 = vector.broadcast %cst_163 : f32 to vector<16x1xf32>
    %395 = arith.addf %391, %394 : vector<16x1xf32>
    %396 = math.rsqrt %395 : vector<16x1xf32>
    %397 = vector.broadcast %396 : vector<16x1xf32> to vector<16x64xf32>
    %398 = arith.mulf %393, %397 : vector<16x64xf32>
    %399 = vector.broadcast %378 : vector<1x64xf32> to vector<16x64xf32>
    %400 = arith.mulf %398, %399 : vector<16x64xf32>
    %401 = vector.broadcast %380 : vector<1x64xf32> to vector<16x64xf32>
    %402 = arith.addf %400, %401 : vector<16x64xf32>
    %403 = vector.extract_strided_slice %402 {offsets = [0, 0], sizes = [1, 64], strides = [1, 1]} : vector<16x64xf32> to vector<1x64xf32>
    %404 = vector.extract_strided_slice %402 {offsets = [8, 0], sizes = [1, 64], strides = [1, 1]} : vector<16x64xf32> to vector<1x64xf32>
    %405 = tpu.concatenate %403, %404 in 0 : vector<1x64xf32>, vector<1x64xf32> -> vector<2x64xf32>
    %406 = arith.truncf %405 : vector<2x64xf32> to vector<2x64xbf16>
    %c0_164 = arith.constant 0 : index
    %c0_165 = arith.constant 0 : index
    %407 = vector.load %arg17[%c0_164, %c0_165] : memref<64x128xbf16, #tpu.memory_space<vmem>>, vector<64x128xbf16>
    %cst_166 = arith.constant dense<0.000000e+00> : vector<2x128xf32>
    %408 = tpu.matmul %406, %407, %cst_166 {dimension_numbers = #tpu.dot_dimension_numbers<[1], [0], [0], [1], [0, 0, 1, 1], [], []>} : vector<2x64xbf16>, vector<64x128xbf16>, vector<2x128xf32> -> vector<2x128xf32>
    %c0_167 = arith.constant 0 : index
    %c0_168 = arith.constant 0 : index
    %409 = vector.load %arg18[%c0_167, %c0_168] : memref<1x128xf32, #tpu.memory_space<vmem>>, vector<1x128xf32>
    %410 = vector.broadcast %409 : vector<1x128xf32> to vector<2x128xf32>
    %411 = arith.addf %408, %410 : vector<2x128xf32>
    %c0_169 = arith.constant 0 : index
    %c0_170 = arith.constant 0 : index
    %412 = vector.load %arg19[%c0_169, %c0_170] : memref<2x128xf32, #tpu.memory_space<vmem>>, vector<2x128xf32>
    tpu.vector_store %arg19[%c0_169, %c0_170], %411 {strides = array<i32>} : memref<2x128xf32, #tpu.memory_space<vmem>>, vector<2x128xf32>,
    return
  }
  func.func @transform_0(%arg0: i32) -> (i32, i32) {
    %c0_i32 = arith.constant 0 : i32
    %c0_i32_0 = arith.constant 0 : i32
    %c0_i32_1 = arith.constant 0 : i32
    return %c0_i32, %c0_i32_0 : i32, i32
  }
  func.func @transform_1(%arg0: i32) -> (i32, i32) {
    %c0_i32 = arith.constant 0 : i32
    %c0_i32_0 = arith.constant 0 : i32
    %c0_i32_1 = arith.constant 0 : i32
    return %c0_i32, %c0_i32_0 : i32, i32
  }
  func.func @transform_2(%arg0: i32) -> (i32, i32) {
    %c0_i32 = arith.constant 0 : i32
    %c0_i32_0 = arith.constant 0 : i32
    %c0_i32_1 = arith.constant 0 : i32
    return %c0_i32, %c0_i32_0 : i32, i32
  }
  func.func @transform_3(%arg0: i32) -> (i32, i32) {
    %c0_i32 = arith.constant 0 : i32
    %c0_i32_0 = arith.constant 0 : i32
    %c0_i32_1 = arith.constant 0 : i32
    return %c0_i32, %c0_i32_0 : i32, i32
  }
  func.func @transform_4(%arg0: i32) -> (i32, i32, i32) {
    %c0_i32 = arith.constant 0 : i32
    %c0_i32_0 = arith.constant 0 : i32
    %c0_i32_1 = arith.constant 0 : i32
    %c0_i32_2 = arith.constant 0 : i32
    return %c0_i32, %c0_i32_0, %c0_i32_1 : i32, i32, i32
  }
  func.func @transform_5(%arg0: i32) -> (i32, i32, i32) {
    %c0_i32 = arith.constant 0 : i32
    %c0_i32_0 = arith.constant 0 : i32
    %c0_i32_1 = arith.constant 0 : i32
    %c0_i32_2 = arith.constant 0 : i32
    return %c0_i32, %c0_i32_0, %c0_i32_1 : i32, i32, i32
  }
  func.func @transform_6(%arg0: i32) -> (i32, i32, i32, i32) {
    %c0_i32 = arith.constant 0 : i32
    %c0_i32_0 = arith.constant 0 : i32
    %c0_i32_1 = arith.constant 0 : i32
    %c0_i32_2 = arith.constant 0 : i32
    %c0_i32_3 = arith.constant 0 : i32
    return %c0_i32, %c0_i32_0, %c0_i32_1, %c0_i32_2 : i32, i32, i32, i32
  }
  func.func @transform_7(%arg0: i32) -> (i32, i32, i32) {
    %c0_i32 = arith.constant 0 : i32
    %c0_i32_0 = arith.constant 0 : i32
    %c0_i32_1 = arith.constant 0 : i32
    %c0_i32_2 = arith.constant 0 : i32
    return %c0_i32, %c0_i32_0, %c0_i32_1 : i32, i32, i32
  }
  func.func @transform_8(%arg0: i32) -> (i32, i32, i32) {
    %c0_i32 = arith.constant 0 : i32
    %c0_i32_0 = arith.constant 0 : i32
    %c0_i32_1 = arith.constant 0 : i32
    %c0_i32_2 = arith.constant 0 : i32
    return %c0_i32, %c0_i32_0, %c0_i32_1 : i32, i32, i32
  }
  func.func @transform_9(%arg0: i32) -> (i32, i32, i32) {
    %c0_i32 = arith.constant 0 : i32
    %c0_i32_0 = arith.constant 0 : i32
    %c0_i32_1 = arith.constant 0 : i32
    %c0_i32_2 = arith.constant 0 : i32
    return %c0_i32, %c0_i32_0, %c0_i32_1 : i32, i32, i32
  }
  func.func @transform_10(%arg0: i32) -> (i32, i32, i32) {
    %c0_i32 = arith.constant 0 : i32
    %c0_i32_0 = arith.constant 0 : i32
    %c0_i32_1 = arith.constant 0 : i32
    %c0_i32_2 = arith.constant 0 : i32
    return %c0_i32, %c0_i32_0, %c0_i32_1 : i32, i32, i32
  }
  func.func @transform_11(%arg0: i32) -> (i32, i32, i32) {
    %c0_i32 = arith.constant 0 : i32
    %c0_i32_0 = arith.constant 0 : i32
    %c0_i32_1 = arith.constant 0 : i32
    %c0_i32_2 = arith.constant 0 : i32
    return %c0_i32, %c0_i32_0, %c0_i32_1 : i32, i32, i32
  }
  func.func @transform_12(%arg0: i32) -> (i32, i32, i32) {
    %c0_i32 = arith.constant 0 : i32
    %c0_i32_0 = arith.constant 0 : i32
    %c0_i32_1 = arith.constant 0 : i32
    %c0_i32_2 = arith.constant 0 : i32
    return %c0_i32, %c0_i32_0, %c0_i32_1 : i32, i32, i32
  }
  func.func @transform_13(%arg0: i32) -> (i32, i32, i32) {
    %c0_i32 = arith.constant 0 : i32
    %c0_i32_0 = arith.constant 0 : i32
    %c0_i32_1 = arith.constant 0 : i32
    %c0_i32_2 = arith.constant 0 : i32
    return %c0_i32, %c0_i32_0, %c0_i32_1 : i32, i32, i32
  }
  func.func @transform_14(%arg0: i32) -> (i32, i32, i32) {
    %c0_i32 = arith.constant 0 : i32
    %c0_i32_0 = arith.constant 0 : i32
    %c0_i32_1 = arith.constant 0 : i32
    %c0_i32_2 = arith.constant 0 : i32
    return %c0_i32, %c0_i32_0, %c0_i32_1 : i32, i32, i32
  }
  func.func @transform_15(%arg0: i32) -> (i32, i32, i32) {
    %c0_i32 = arith.constant 0 : i32
    %c0_i32_0 = arith.constant 0 : i32
    %c0_i32_1 = arith.constant 0 : i32
    %c0_i32_2 = arith.constant 0 : i32
    return %c0_i32, %c0_i32_0, %c0_i32_1 : i32, i32, i32
  }
  func.func @transform_16(%arg0: i32) -> (i32, i32) {
    %c0_i32 = arith.constant 0 : i32
    %c0_i32_0 = arith.constant 0 : i32
    %c0_i32_1 = arith.constant 0 : i32
    return %c0_i32, %c0_i32_0 : i32, i32
  }
  func.func @transform_17(%arg0: i32) -> (i32, i32) {
    %c0_i32 = arith.constant 0 : i32
    %c0_i32_0 = arith.constant 0 : i32
    %c0_i32_1 = arith.constant 0 : i32
    return %c0_i32, %c0_i32_0 : i32, i32
  }
  func.func @transform_18(%arg0: i32) -> (i32, i32) {
    %c0_i32 = arith.constant 0 : i32
    %c0_i32_0 = arith.constant 0 : i32
    %c0_i32_1 = arith.constant 0 : i32
    return %c0_i32, %c0_i32_0 : i32, i32
  }
}

</mosaic_0001>

<llo_original>
// kernel: bert_with_softmax_forward.1
$region0: #{bert_with_softmax_forward.1}
  #allocation0 [shape = 'u32[]', space=smem, size = 0x4, offset = 0x4, fixed_abs, tag = 'smem constant byte address 0x4 - core index']
  #allocation1 [shape = 'u32[144,128]{1,0:T(1,128)}', space=vmem, size = 0x12000, scoped, tag = 'internal scratch']
  %s0 = inlined_call_operand.vmem [shape: bf16[16,64], index: 0, kind: input, shape index: {}]
  %s1 = inlined_call_operand.vmem [shape: f32[16,16], index: 1, kind: input, shape index: {}]
  %s2 = inlined_call_operand.vmem [shape: f32[1,64], index: 2, kind: input, shape index: {}]
  %s3 = inlined_call_operand.vmem [shape: f32[1,64], index: 3, kind: input, shape index: {}]
  %s4 = inlined_call_operand.vmem [shape: bf16[2,64,192], index: 4, kind: input, shape index: {}]
  %s5 = inlined_call_operand.vmem [shape: f32[2,1,192], index: 5, kind: input, shape index: {}]
  %s6 = inlined_call_operand.vmem [shape: bf16[2,4,16,64], index: 6, kind: input, shape index: {}]
  %s7 = inlined_call_operand.vmem [shape: f32[2,1,64], index: 7, kind: input, shape index: {}]
  %s8 = inlined_call_operand.vmem [shape: f32[2,1,64], index: 8, kind: input, shape index: {}]
  %s9 = inlined_call_operand.vmem [shape: f32[2,1,64], index: 9, kind: input, shape index: {}]
  %s10 = inlined_call_operand.vmem [shape: bf16[2,64,128], index: 10, kind: input, shape index: {}]
  %s11 = inlined_call_operand.vmem [shape: f32[2,1,128], index: 11, kind: input, shape index: {}]
  %s12 = inlined_call_operand.vmem [shape: bf16[2,128,64], index: 12, kind: input, shape index: {}]
  %s13 = inlined_call_operand.vmem [shape: f32[2,1,64], index: 13, kind: input, shape index: {}]
  %s14 = inlined_call_operand.vmem [shape: f32[2,1,64], index: 14, kind: input, shape index: {}]
  %s15 = inlined_call_operand.vmem [shape: f32[2,1,64], index: 15, kind: input, shape index: {}]
  %s16 = inlined_call_operand.vmem [shape: bf16[64,128], index: 16, kind: input, shape index: {}]
  %s17 = inlined_call_operand.vmem [shape: f32[1,128], index: 17, kind: input, shape index: {}]
  %s18 = inlined_call_operand.hbm [shape: f32[2,128], index: 18, kind: output, shape index: {}]
  %s19 = sld [smem:[#allocation0]]
  $region82: #{bert_with_softmax_forward.1} parent=0
    _
  %s21 = ssub.s32 1, %s19
  %s22 = scalar_select 0, %s21, %s19
  $region1: #{bert_with_softmax_forward.1} parent=0
    #allocation2 [shape = 'u8[1024]{0}', space=vmem, size = 0x400, scoped, tag = 'output window, operand 0, single buffered']
    #allocation3 [shape = 's32[1]{0}', space=sflag, size = 0x4, scoped, tag = 'scoped memory for bert_with_softmax_forward.1']
    %23 = vsyncpa [#allocation3], 0
    // Predicated region
    $region2: #{bert_with_softmax_forward.1} parent=1 // pred_check
      _
    $region3: #{bert_with_softmax_forward.1} parent=1 // pred_check_branch
      %25 = sbr.rel (0) target = $region5
    $region4: #{bert_with_softmax_forward.1} parent=1 // pred_region
      _
    $region5: #{bert_with_softmax_forward.1} parent=1 // pred_fallthru
      _
    // Predicated region
    $region6: #{bert_with_softmax_forward.1} parent=1 // pred_check
      _
    $region7: #{bert_with_softmax_forward.1} parent=1 // pred_check_branch
      %27 = sbr.rel (0) target = $region9
    $region8: #{bert_with_softmax_forward.1} parent=1 // pred_region
      _
    $region9: #{bert_with_softmax_forward.1} parent=1 // pred_fallthru
      _
    // Predicated region
    $region10: #{bert_with_softmax_forward.1} parent=1 // pred_check
      _
    $region11: #{bert_with_softmax_forward.1} parent=1 // pred_check_branch
      %29 = sbr.rel (0) target = $region13
    $region12: #{bert_with_softmax_forward.1} parent=1 // pred_region
      _
    $region13: #{bert_with_softmax_forward.1} parent=1 // pred_fallthru
      _
    // Predicated region
    $region14: #{bert_with_softmax_forward.1} parent=1 // pred_check
      _
    $region15: #{bert_with_softmax_forward.1} parent=1 // pred_check_branch
      %31 = sbr.rel (0) target = $region17
    $region16: #{bert_with_softmax_forward.1} parent=1 // pred_region
      _
    $region17: #{bert_with_softmax_forward.1} parent=1 // pred_fallthru
      _
    // Predicated region
    $region18: #{bert_with_softmax_forward.1} parent=1 // pred_check
      _
    $region19: #{bert_with_softmax_forward.1} parent=1 // pred_check_branch
      %33 = sbr.rel (0) target = $region21
    $region20: #{bert_with_softmax_forward.1} parent=1 // pred_region
      _
    $region21: #{bert_with_softmax_forward.1} parent=1 // pred_fallthru
      _
    // Predicated region
    $region22: #{bert_with_softmax_forward.1} parent=1 // pred_check
      _
    $region23: #{bert_with_softmax_forward.1} parent=1 // pred_check_branch
      %35 = sbr.rel (0) target = $region25
    $region24: #{bert_with_softmax_forward.1} parent=1 // pred_region
      _
    $region25: #{bert_with_softmax_forward.1} parent=1 // pred_fallthru
      _
    // Predicated region
    $region26: #{bert_with_softmax_forward.1} parent=1 // pred_check
      _
    $region27: #{bert_with_softmax_forward.1} parent=1 // pred_check_branch
      %37 = sbr.rel (0) target = $region29
    $region28: #{bert_with_softmax_forward.1} parent=1 // pred_region
      _
    $region29: #{bert_with_softmax_forward.1} parent=1 // pred_fallthru
      _
    // Predicated region
    $region30: #{bert_with_softmax_forward.1} parent=1 // pred_check
      _
    $region31: #{bert_with_softmax_forward.1} parent=1 // pred_check_branch
      %39 = sbr.rel (0) target = $region33
    $region32: #{bert_with_softmax_forward.1} parent=1 // pred_region
      _
    $region33: #{bert_with_softmax_forward.1} parent=1 // pred_fallthru
      _
    // Predicated region
    $region34: #{bert_with_softmax_forward.1} parent=1 // pred_check
      _
    $region35: #{bert_with_softmax_forward.1} parent=1 // pred_check_branch
      %41 = sbr.rel (0) target = $region37
    $region36: #{bert_with_softmax_forward.1} parent=1 // pred_region
      _
    $region37: #{bert_with_softmax_forward.1} parent=1 // pred_fallthru
      _
    // Predicated region
    $region38: #{bert_with_softmax_forward.1} parent=1 // pred_check
      _
    $region39: #{bert_with_softmax_forward.1} parent=1 // pred_check_branch
      %43 = sbr.rel (0) target = $region41
    $region40: #{bert_with_softmax_forward.1} parent=1 // pred_region
      _
    $region41: #{bert_with_softmax_forward.1} parent=1 // pred_fallthru
      _
    // Predicated region
    $region42: #{bert_with_softmax_forward.1} parent=1 // pred_check
      _
    $region43: #{bert_with_softmax_forward.1} parent=1 // pred_check_branch
      %45 = sbr.rel (0) target = $region45
    $region44: #{bert_with_softmax_forward.1} parent=1 // pred_region
      _
    $region45: #{bert_with_softmax_forward.1} parent=1 // pred_fallthru
      _
    // Predicated region
    $region46: #{bert_with_softmax_forward.1} parent=1 // pred_check
      _
    $region47: #{bert_with_softmax_forward.1} parent=1 // pred_check_branch
      %47 = sbr.rel (0) target = $region49
    $region48: #{bert_with_softmax_forward.1} parent=1 // pred_region
      _
    $region49: #{bert_with_softmax_forward.1} parent=1 // pred_fallthru
      _
    // Predicated region
    $region50: #{bert_with_softmax_forward.1} parent=1 // pred_check
      _
    $region51: #{bert_with_softmax_forward.1} parent=1 // pred_check_branch
      %49 = sbr.rel (0) target = $region53
    $region52: #{bert_with_softmax_forward.1} parent=1 // pred_region
      _
    $region53: #{bert_with_softmax_forward.1} parent=1 // pred_fallthru
      _
    // Predicated region
    $region54: #{bert_with_softmax_forward.1} parent=1 // pred_check
      _
    $region55: #{bert_with_softmax_forward.1} parent=1 // pred_check_branch
      %51 = sbr.rel (0) target = $region57
    $region56: #{bert_with_softmax_forward.1} parent=1 // pred_region
      _
    $region57: #{bert_with_softmax_forward.1} parent=1 // pred_fallthru
      _
    // Predicated region
    $region58: #{bert_with_softmax_forward.1} parent=1 // pred_check
      _
    $region59: #{bert_with_softmax_forward.1} parent=1 // pred_check_branch
      %53 = sbr.rel (0) target = $region61
    $region60: #{bert_with_softmax_forward.1} parent=1 // pred_region
      _
    $region61: #{bert_with_softmax_forward.1} parent=1 // pred_fallthru
      _
    // Predicated region
    $region62: #{bert_with_softmax_forward.1} parent=1 // pred_check
      _
    $region63: #{bert_with_softmax_forward.1} parent=1 // pred_check_branch
      %55 = sbr.rel (0) target = $region65
    $region64: #{bert_with_softmax_forward.1} parent=1 // pred_region
      _
    $region65: #{bert_with_softmax_forward.1} parent=1 // pred_fallthru
      _
    // Predicated region
    $region66: #{bert_with_softmax_forward.1} parent=1 // pred_check
      _
    $region67: #{bert_with_softmax_forward.1} parent=1 // pred_check_branch
      %57 = sbr.rel (0) target = $region69
    $region68: #{bert_with_softmax_forward.1} parent=1 // pred_region
      _
    $region69: #{bert_with_softmax_forward.1} parent=1 // pred_fallthru
      _
    // Predicated region
    $region70: #{bert_with_softmax_forward.1} parent=1 // pred_check
      _
    $region71: #{bert_with_softmax_forward.1} parent=1 // pred_check_branch
      %59 = sbr.rel (0) target = $region73
    $region72: #{bert_with_softmax_forward.1} parent=1 // pred_region
      _
    $region73: #{bert_with_softmax_forward.1} parent=1 // pred_fallthru
      _
    %v61 = vld [vmem:[%s0] sm:$0xf]
    %v62 = vld [vmem:[%s0 + $0x4] sm:$0xf]
    %v63 = vunpack.c.l.bf16 %v61
    %v64 = vunpack.c.l.bf16 %v62
    %v65 = vld [vmem:[%s2] sm:$0x1]
    %v66 = vld [vmem:[%s3] sm:$0x1]
    %vm67 = vcmask 523264
    %v68 = vsel %vm67, %v63, 0.0
    %69 = vadd.xlane.f32.xlu0 %v68
    %v70 = vpop.xlane.xlu0 %69
    %v71 = vsel %vm67, %v64, 0.0
    %72 = vadd.xlane.f32.xlu0 %v71
    %v73 = vpop.xlane.xlu0 %72
    %v74 = vrcp.pop 64.0
    %v75 = vmul.f32 %v70, %v74
    %v76 = vmul.f32 %v73, %v74
    %v77 = vsub.f32 %v63, %v75
    %v78 = vsub.f32 %v64, %v76
    %v79 = vmul.f32 %v77, %v77
    %v80 = vmul.f32 %v78, %v78
    %v81 = vsel %vm67, %v79, 0.0
    %82 = vadd.xlane.f32.xlu0 %v81
    %v83 = vpop.xlane.xlu0 %82
    %v84 = vsel %vm67, %v80, 0.0
    %85 = vadd.xlane.f32.xlu0 %v84
    %v86 = vpop.xlane.xlu0 %85
    %v87 = vmul.f32 %v83, %v74
    %v88 = vmul.f32 %v86, %v74
    %v89 = vadd.f32 %v87, 1e-12
    %v90 = vadd.f32 %v88, 1e-12
    %v91 = vrsqrt.pop %v89
    %v92 = vrsqrt.pop %v90
    %v93 = vmul.f32 %v77, %v91
    %v94 = vmul.f32 %v78, %v92
    %v96 = vlaneseq
    %v97 = vshrl.u32 %v96, 7
    %v98 = vsub.s32 0, %v97
    %v99 = vrot.slane %v65, %v98
    %v101 = vmul.f32 %v93, %v99
    %v102 = vmul.f32 %v94, %v99
    %v104 = vlaneseq
    %v105 = vshrl.u32 %v104, 7
    %v106 = vsub.s32 0, %v105
    %v107 = vrot.slane %v66, %v106
    %v109 = vadd.f32 %v101, %v107
    %v110 = vadd.f32 %v102, %v107
    %v111 = vld [vmem:[%s1] sm:$0xff]
    %v112 = vld [vmem:[%s1 + $0x8] sm:$0xff]
    %v113 = vpack.c.bf16 %v110, %v109
    %v114 = vld [vmem:[%s4] sm:$0xff]
    %v115 = vld [vmem:[%s4 + $0x8] sm:$0xff]
    %v116 = vld [vmem:[%s4 + $0x10] sm:$0xff]
    %v117 = vld [vmem:[%s4 + $0x18] sm:$0xff]
    %v118 = vld [vmem:[%s4 + $0x20] sm:$0xff]
    %v119 = vld [vmem:[%s4 + $0x28] sm:$0xff]
    %v120 = vld [vmem:[%s4 + $0x30] sm:$0xff]
    %v121 = vld [vmem:[%s4 + $0x38] sm:$0xff]
    %v122 = vld [vmem:[%s5] sm:$0x3]
    %v124 = vlaneseq
    %v125 = vshrl.u32 %v124, 7
    %v126 = vsub.s32 0, %v125
    %v127 = vrot.slane %v122, %v126
    %v128 = vlaneseq
    %v129 = vshrl.u32 %v128, 7
    %v130 = vsub.s32 1, %v129
    %v131 = vrot.slane %v122, %v130
    %v142 = vunpack.c.l.b16 %v114
    %v143 = vunpack.c.h.b16 %v114
    %v144 = vunpack.c.l.b16 %v115
    %v145 = vunpack.c.h.b16 %v115
    %v146 = vunpack.c.l.b16 %v116
    %v147 = vunpack.c.h.b16 %v116
    %v148 = vunpack.c.l.b16 %v117
    %v149 = vunpack.c.h.b16 %v117
    %v150 = vunpack.c.l.b16 %v118
    %v151 = vunpack.c.h.b16 %v118
    %v152 = vunpack.c.l.b16 %v119
    %v153 = vunpack.c.h.b16 %v119
    %v154 = vunpack.c.l.b16 %v120
    %v155 = vunpack.c.h.b16 %v120
    %v156 = vunpack.c.l.b16 %v121
    %v157 = vunpack.c.h.b16 %v121
    %v158 = vpack.c.b16 %v144, %v142
    %v159 = vpack.c.b16 %v145, %v143
    %v160 = vpack.c.b16 %v148, %v146
    %v161 = vpack.c.b16 %v149, %v147
    %v162 = vpack.c.b16 %v152, %v150
    %v163 = vpack.c.b16 %v153, %v151
    %v164 = vpack.c.b16 %v156, %v154
    %v165 = vpack.c.b16 %v157, %v155
    %v175 = vsel %vm67, %v113, 0
    %177 = vmatprep.subr.bf16.mxu0 0
    %178 = vmatpush1.bf16.msra.mxu0 0
    %179 = vmatprep.subr.bf16.mxu0 0
    %180 = vmatpush1.bf16.msra.mxu0 0
    %181 = vmatprep.subr.bf16.mxu0 0
    %182 = vmatpush1.bf16.msra.mxu0 0
    %183 = vmatprep.subr.bf16.mxu0 0
    %184 = vmatpush1.bf16.msra.mxu0 0
    %185 = vmatprep.subr.bf16.mxu0 %v165
    %186 = vmatpush1.bf16.msra.mxu0 %v164
    %187 = vmatprep.subr.bf16.mxu0 %v163
    %188 = vmatpush1.bf16.msra.mxu0 %v162
    %189 = vmatprep.subr.bf16.mxu0 %v161
    %190 = vmatpush1.bf16.msra.mxu0 %v160
    %191 = vmatprep.subr.bf16.mxu0 %v159
    %192 = vmatpush1.bf16.msra.mxu0 %v158
    %193 = vmatprep.subr.bf16.mxu0 0
    %194 = vmatpush2.bf16.msra.mxu0 0
    %195 = vmatprep.subr.bf16.mxu0 0
    %196 = vmatpush2.bf16.msra.mxu0 0
    %197 = vmatprep.subr.bf16.mxu0 0
    %198 = vmatpush2.bf16.msra.mxu0 0
    %199 = vmatprep.subr.bf16.mxu0 0
    %200 = vmatpush2.bf16.msra.mxu0 0
    %201 = vmatprep.subr.bf16.mxu0 0
    %202 = vmatpush2.bf16.msra.mxu0 0
    %203 = vmatprep.subr.bf16.mxu0 0
    %204 = vmatpush2.bf16.msra.mxu0 0
    %205 = vmatprep.subr.bf16.mxu0 0
    %206 = vmatpush2.bf16.msra.mxu0 0
    %207 = vmatprep.subr.bf16.mxu0 0
    %208 = vmatpush2.bf16.msra.mxu0 0
    %209 = vmatprep.mubr.bf16.mxu0 0
    %210 = vmatmul.mubr.bf16.gmra.mxu0 %v175
    %v211 = vpop.f32.mrf.mxu0
    %v212 = vadd.f32 %v127, %v211
    %v213 = vpop.f32.mrf.mxu0
    %v214 = vadd.f32 %v131, %v213
    %v215 = vpop.f32.mrf.mxu0
    %v216 = vadd.f32 %v127, %v215
    %v217 = vpop.f32.mrf.mxu0
    %v218 = vadd.f32 %v131, %v217
    %219 = vdwg.mxu0
    %v220 = vpack.c.bf16 %v216, %v212
    %v221 = vpack.c.bf16 %v218, %v214
    %v222 = vld [vmem:[%s6] sm:$0xf]
    %v223 = vld [vmem:[%s6 + $0x4] sm:$0xf]
    %v224 = vld [vmem:[%s6 + $0x8] sm:$0xf]
    %v225 = vld [vmem:[%s6 + $0xc] sm:$0xf]
    %v226 = vld [vmem:[%s6 + $0x10] sm:$0xf]
    %v227 = vld [vmem:[%s6 + $0x14] sm:$0xf]
    %v228 = vld [vmem:[%s6 + $0x18] sm:$0xf]
    %v229 = vld [vmem:[%s6 + $0x1c] sm:$0xf]
    %231 = vrot.lane.b32.xlu0 %v220, 64
    %v232 = vpop.permute.xlu0 %231
    %vm233 = vcmask 130048
    %v235 = vsel %vm233, %v220, 0
    %v238 = vsel %vm233, %v232, 0
    %240 = vmatprep.subr.bf16.mxu0 0
    %241 = vmatpush1.bf16.xpose.msra.mxu0 0
    %242 = vmatprep.subr.bf16.mxu0 0
    %243 = vmatpush1.bf16.xpose.msra.mxu0 0
    %244 = vmatprep.subr.bf16.mxu0 0
    %245 = vmatpush1.bf16.xpose.msra.mxu0 0
    %246 = vmatprep.subr.bf16.mxu0 0
    %247 = vmatpush1.bf16.xpose.msra.mxu0 0
    %248 = vmatprep.subr.bf16.mxu0 0
    %249 = vmatpush1.bf16.xpose.msra.mxu0 0
    %250 = vmatprep.subr.bf16.mxu0 0
    %251 = vmatpush1.bf16.xpose.msra.mxu0 0
    %252 = vmatprep.subr.bf16.mxu0 0
    %253 = vmatpush1.bf16.xpose.msra.mxu0 0
    %254 = vmatprep.subr.bf16.mxu0 0
    %255 = vmatpush1.bf16.xpose.msra.mxu0 %v238
    %256 = vmatprep.subr.bf16.mxu0 0
    %257 = vmatpush2.bf16.xpose.msra.mxu0 0
    %258 = vmatprep.subr.bf16.mxu0 0
    %259 = vmatpush2.bf16.xpose.msra.mxu0 0
    %260 = vmatprep.subr.bf16.mxu0 0
    %261 = vmatpush2.bf16.xpose.msra.mxu0 0
    %262 = vmatprep.subr.bf16.mxu0 0
    %263 = vmatpush2.bf16.xpose.msra.mxu0 0
    %264 = vmatprep.subr.bf16.mxu0 0
    %265 = vmatpush2.bf16.xpose.msra.mxu0 0
    %266 = vmatprep.subr.bf16.mxu0 0
    %267 = vmatpush2.bf16.xpose.msra.mxu0 0
    %268 = vmatprep.subr.bf16.mxu0 0
    %269 = vmatpush2.bf16.xpose.msra.mxu0 0
    %270 = vmatprep.subr.bf16.mxu0 0
    %271 = vmatpush2.bf16.xpose.msra.mxu0 0
    %272 = vmatprep.mubr.bf16.mxu0 0
    %273 = vmatmul.mubr.bf16.gmra.mxu0 %v235
    %v274 = vpop.f32.mrf.mxu0
    %v275 = vadd.f32 0.0, %v274
    %v276 = vpop.f32.mrf.mxu0
    %v277 = vpop.f32.mrf.mxu0
    %v278 = vadd.f32 0.0, %v277
    %v279 = vpop.f32.mrf.mxu0
    %280 = vdwg.mxu0
    %v281 = vmul.f32 %v275, 0.25
    %v282 = vmul.f32 %v278, 0.25
    %v283 = vadd.f32 %v281, %v111
    %v284 = vadd.f32 %v282, %v112
    %v285 = vsel %vm233, %v283, -inf
    %286 = vmax.xlane.f32.xlu0 %v285
    %v287 = vpop.xlane.xlu0 %286
    %v288 = vsel %vm233, %v284, -inf
    %289 = vmax.xlane.f32.xlu0 %v288
    %v290 = vpop.xlane.xlu0 %289
    %v291 = vsub.f32 %v283, %v287
    %v292 = vsub.f32 %v284, %v290
    %v293 = vmul.f32 %v291, 1.442695
    %v294 = vpow.pop %v293
    %v295 = vmul.f32 %v292, 1.442695
    %v296 = vpow.pop %v295
    %v297 = vsel %vm233, %v294, 0.0
    %298 = vadd.xlane.f32.xlu0 %v297
    %v299 = vpop.xlane.xlu0 %298
    %v300 = vsel %vm233, %v296, 0.0
    %301 = vadd.xlane.f32.xlu0 %v300
    %v302 = vpop.xlane.xlu0 %301
    %v303 = vrcp.pop %v299
    %v304 = vrcp.pop %v302
    %v305 = vmul.f32 %v294, %v303
    %v306 = vmul.f32 %v296, %v304
    %v307 = vpack.c.bf16 %v306, %v305
    %v309 = vsel %vm233, %v307, 0
    %311 = vmatprep.subr.bf16.mxu0 0
    %312 = vmatpush1.bf16.msra.mxu0 0
    %313 = vmatprep.subr.bf16.mxu0 0
    %314 = vmatpush1.bf16.msra.mxu0 0
    %315 = vmatprep.subr.bf16.mxu0 0
    %316 = vmatpush1.bf16.msra.mxu0 0
    %317 = vmatprep.subr.bf16.mxu0 0
    %318 = vmatpush1.bf16.msra.mxu0 0
    %319 = vmatprep.subr.bf16.mxu0 0
    %320 = vmatpush1.bf16.msra.mxu0 0
    %321 = vmatprep.subr.bf16.mxu0 0
    %322 = vmatpush1.bf16.msra.mxu0 0
    %323 = vmatprep.subr.bf16.mxu0 0
    %324 = vmatpush1.bf16.msra.mxu0 0
    %325 = vmatprep.subr.bf16.mxu0 0
    %326 = vmatpush1.bf16.msra.mxu0 %v221
    %327 = vmatprep.subr.bf16.mxu0 0
    %328 = vmatpush2.bf16.msra.mxu0 0
    %329 = vmatprep.subr.bf16.mxu0 0
    %330 = vmatpush2.bf16.msra.mxu0 0
    %331 = vmatprep.subr.bf16.mxu0 0
    %332 = vmatpush2.bf16.msra.mxu0 0
    %333 = vmatprep.subr.bf16.mxu0 0
    %334 = vmatpush2.bf16.msra.mxu0 0
    %335 = vmatprep.subr.bf16.mxu0 0
    %336 = vmatpush2.bf16.msra.mxu0 0
    %337 = vmatprep.subr.bf16.mxu0 0
    %338 = vmatpush2.bf16.msra.mxu0 0
    %339 = vmatprep.subr.bf16.mxu0 0
    %340 = vmatpush2.bf16.msra.mxu0 0
    %341 = vmatprep.subr.bf16.mxu0 0
    %342 = vmatpush2.bf16.msra.mxu0 0
    %343 = vmatprep.mubr.bf16.mxu0 0
    %344 = vmatmul.mubr.bf16.gmra.mxu0 %v309
    %v345 = vpop.f32.mrf.mxu0
    %v346 = vadd.f32 0.0, %v345
    %v347 = vpop.f32.mrf.mxu0
    %v348 = vpop.f32.mrf.mxu0
    %v349 = vadd.f32 0.0, %v348
    %v350 = vpop.f32.mrf.mxu0
    %351 = vdwg.mxu0
    %v352 = vpack.c.bf16 %v349, %v346
    %353 = vrot.lane.b32.xlu0 %v220, 112
    %v354 = vpop.permute.xlu0 %353
    %355 = vrot.lane.b32.xlu0 %v220, 48
    %v356 = vpop.permute.xlu0 %355
    %v358 = vsel %vm233, %v354, 0
    %v361 = vsel %vm233, %v356, 0
    %363 = vmatprep.subr.bf16.mxu0 0
    %364 = vmatpush1.bf16.xpose.msra.mxu0 0
    %365 = vmatprep.subr.bf16.mxu0 0
    %366 = vmatpush1.bf16.xpose.msra.mxu0 0
    %367 = vmatprep.subr.bf16.mxu0 0
    %368 = vmatpush1.bf16.xpose.msra.mxu0 0
    %369 = vmatprep.subr.bf16.mxu0 0
    %370 = vmatpush1.bf16.xpose.msra.mxu0 0
    %371 = vmatprep.subr.bf16.mxu0 0
    %372 = vmatpush1.bf16.xpose.msra.mxu0 0
    %373 = vmatprep.subr.bf16.mxu0 0
    %374 = vmatpush1.bf16.xpose.msra.mxu0 0
    %375 = vmatprep.subr.bf16.mxu0 0
    %376 = vmatpush1.bf16.xpose.msra.mxu0 0
    %377 = vmatprep.subr.bf16.mxu0 0
    %378 = vmatpush1.bf16.xpose.msra.mxu0 %v361
    %379 = vmatprep.subr.bf16.mxu0 0
    %380 = vmatpush2.bf16.xpose.msra.mxu0 0
    %381 = vmatprep.subr.bf16.mxu0 0
    %382 = vmatpush2.bf16.xpose.msra.mxu0 0
    %383 = vmatprep.subr.bf16.mxu0 0
    %384 = vmatpush2.bf16.xpose.msra.mxu0 0
    %385 = vmatprep.subr.bf16.mxu0 0
    %386 = vmatpush2.bf16.xpose.msra.mxu0 0
    %387 = vmatprep.subr.bf16.mxu0 0
    %388 = vmatpush2.bf16.xpose.msra.mxu0 0
    %389 = vmatprep.subr.bf16.mxu0 0
    %390 = vmatpush2.bf16.xpose.msra.mxu0 0
    %391 = vmatprep.subr.bf16.mxu0 0
    %392 = vmatpush2.bf16.xpose.msra.mxu0 0
    %393 = vmatprep.subr.bf16.mxu0 0
    %394 = vmatpush2.bf16.xpose.msra.mxu0 0
    %395 = vmatprep.mubr.bf16.mxu0 0
    %396 = vmatmul.mubr.bf16.gmra.mxu0 %v358
    %v397 = vpop.f32.mrf.mxu0
    %v398 = vadd.f32 0.0, %v397
    %v399 = vpop.f32.mrf.mxu0
    %v400 = vpop.f32.mrf.mxu0
    %v401 = vadd.f32 0.0, %v400
    %v402 = vpop.f32.mrf.mxu0
    %403 = vdwg.mxu0
    %v404 = vmul.f32 %v398, 0.25
    %v405 = vmul.f32 %v401, 0.25
    %v406 = vadd.f32 %v404, %v111
    %v407 = vadd.f32 %v405, %v112
    %v408 = vsel %vm233, %v406, -inf
    %409 = vmax.xlane.f32.xlu0 %v408
    %v410 = vpop.xlane.xlu0 %409
    %v411 = vsel %vm233, %v407, -inf
    %412 = vmax.xlane.f32.xlu0 %v411
    %v413 = vpop.xlane.xlu0 %412
    %v414 = vsub.f32 %v406, %v410
    %v415 = vsub.f32 %v407, %v413
    %v416 = vmul.f32 %v414, 1.442695
    %v417 = vpow.pop %v416
    %v418 = vmul.f32 %v415, 1.442695
    %v419 = vpow.pop %v418
    %v420 = vsel %vm233, %v417, 0.0
    %421 = vadd.xlane.f32.xlu0 %v420
    %v422 = vpop.xlane.xlu0 %421
    %v423 = vsel %vm233, %v419, 0.0
    %424 = vadd.xlane.f32.xlu0 %v423
    %v425 = vpop.xlane.xlu0 %424
    %v426 = vrcp.pop %v422
    %v427 = vrcp.pop %v425
    %v428 = vmul.f32 %v417, %v426
    %v429 = vmul.f32 %v419, %v427
    %v430 = vpack.c.bf16 %v429, %v428
    %432 = vrot.lane.b32.xlu0 %v221, 112
    %v433 = vpop.permute.xlu0 %432
    %v436 = vsel %vm233, %v430, 0
    %438 = vmatprep.subr.bf16.mxu0 0
    %439 = vmatpush1.bf16.msra.mxu0 0
    %440 = vmatprep.subr.bf16.mxu0 0
    %441 = vmatpush1.bf16.msra.mxu0 0
    %442 = vmatprep.subr.bf16.mxu0 0
    %443 = vmatpush1.bf16.msra.mxu0 0
    %444 = vmatprep.subr.bf16.mxu0 0
    %445 = vmatpush1.bf16.msra.mxu0 0
    %446 = vmatprep.subr.bf16.mxu0 0
    %447 = vmatpush1.bf16.msra.mxu0 0
    %448 = vmatprep.subr.bf16.mxu0 0
    %449 = vmatpush1.bf16.msra.mxu0 0
    %450 = vmatprep.subr.bf16.mxu0 0
    %451 = vmatpush1.bf16.msra.mxu0 0
    %452 = vmatprep.subr.bf16.mxu0 0
    %453 = vmatpush1.bf16.msra.mxu0 %v433
    %454 = vmatprep.subr.bf16.mxu0 0
    %455 = vmatpush2.bf16.msra.mxu0 0
    %456 = vmatprep.subr.bf16.mxu0 0
    %457 = vmatpush2.bf16.msra.mxu0 0
    %458 = vmatprep.subr.bf16.mxu0 0
    %459 = vmatpush2.bf16.msra.mxu0 0
    %460 = vmatprep.subr.bf16.mxu0 0
    %461 = vmatpush2.bf16.msra.mxu0 0
    %462 = vmatprep.subr.bf16.mxu0 0
    %463 = vmatpush2.bf16.msra.mxu0 0
    %464 = vmatprep.subr.bf16.mxu0 0
    %465 = vmatpush2.bf16.msra.mxu0 0
    %466 = vmatprep.subr.bf16.mxu0 0
    %467 = vmatpush2.bf16.msra.mxu0 0
    %468 = vmatprep.subr.bf16.mxu0 0
    %469 = vmatpush2.bf16.msra.mxu0 0
    %470 = vmatprep.mubr.bf16.mxu0 0
    %471 = vmatmul.mubr.bf16.gmra.mxu0 %v436
    %v472 = vpop.f32.mrf.mxu0
    %v473 = vadd.f32 0.0, %v472
    %v474 = vpop.f32.mrf.mxu0
    %v475 = vpop.f32.mrf.mxu0
    %v476 = vadd.f32 0.0, %v475
    %v477 = vpop.f32.mrf.mxu0
    %478 = vdwg.mxu0
    %v479 = vpack.c.bf16 %v476, %v473
    %v482 = vunpack.c.l.b16 %v224
    %v483 = vunpack.c.l.b16 %v225
    %v484 = vpack.c.b16 %v483, %v482
    %v487 = vsel %vm233, %v479, 0
    %489 = vmatprep.subr.bf16.mxu0 0
    %490 = vmatpush1.bf16.msra.mxu0 0
    %491 = vmatprep.subr.bf16.mxu0 0
    %492 = vmatpush1.bf16.msra.mxu0 0
    %493 = vmatprep.subr.bf16.mxu0 0
    %494 = vmatpush1.bf16.msra.mxu0 0
    %495 = vmatprep.subr.bf16.mxu0 0
    %496 = vmatpush1.bf16.msra.mxu0 0
    %497 = vmatprep.subr.bf16.mxu0 0
    %498 = vmatpush1.bf16.msra.mxu0 0
    %499 = vmatprep.subr.bf16.mxu0 0
    %500 = vmatpush1.bf16.msra.mxu0 0
    %501 = vmatprep.subr.bf16.mxu0 0
    %502 = vmatpush1.bf16.msra.mxu0 0
    %503 = vmatprep.subr.bf16.mxu0 0
    %504 = vmatpush1.bf16.msra.mxu0 %v484
    %505 = vmatprep.subr.bf16.mxu0 0
    %506 = vmatpush2.bf16.msra.mxu0 0
    %507 = vmatprep.subr.bf16.mxu0 0
    %508 = vmatpush2.bf16.msra.mxu0 0
    %509 = vmatprep.subr.bf16.mxu0 0
    %510 = vmatpush2.bf16.msra.mxu0 0
    %511 = vmatprep.subr.bf16.mxu0 0
    %512 = vmatpush2.bf16.msra.mxu0 0
    %513 = vmatprep.subr.bf16.mxu0 0
    %514 = vmatpush2.bf16.msra.mxu0 0
    %515 = vmatprep.subr.bf16.mxu0 0
    %516 = vmatpush2.bf16.msra.mxu0 0
    %517 = vmatprep.subr.bf16.mxu0 0
    %518 = vmatpush2.bf16.msra.mxu0 0
    %519 = vmatprep.subr.bf16.mxu0 0
    %520 = vmatpush2.bf16.msra.mxu0 0
    %521 = vmatprep.mubr.bf16.mxu0 0
    %522 = vmatmul.mubr.bf16.gmra.mxu0 %v487
    %v523 = vpop.f32.mrf.mxu0
    %v524 = vadd.f32 0.0, %v523
    %v525 = vpop.f32.mrf.mxu0
    %v526 = vpop.f32.mrf.mxu0
    %v527 = vadd.f32 0.0, %v526
    %v528 = vpop.f32.mrf.mxu0
    %529 = vdwg.mxu0
    %v532 = vunpack.c.l.b16 %v222
    %v533 = vunpack.c.l.b16 %v223
    %v534 = vpack.c.b16 %v533, %v532
    %v537 = vsel %vm233, %v352, 0
    %539 = vmatprep.subr.bf16.mxu0 0
    %540 = vmatpush1.bf16.msra.mxu0 0
    %541 = vmatprep.subr.bf16.mxu0 0
    %542 = vmatpush1.bf16.msra.mxu0 0
    %543 = vmatprep.subr.bf16.mxu0 0
    %544 = vmatpush1.bf16.msra.mxu0 0
    %545 = vmatprep.subr.bf16.mxu0 0
    %546 = vmatpush1.bf16.msra.mxu0 0
    %547 = vmatprep.subr.bf16.mxu0 0
    %548 = vmatpush1.bf16.msra.mxu0 0
    %549 = vmatprep.subr.bf16.mxu0 0
    %550 = vmatpush1.bf16.msra.mxu0 0
    %551 = vmatprep.subr.bf16.mxu0 0
    %552 = vmatpush1.bf16.msra.mxu0 0
    %553 = vmatprep.subr.bf16.mxu0 0
    %554 = vmatpush1.bf16.msra.mxu0 %v534
    %555 = vmatprep.subr.bf16.mxu0 0
    %556 = vmatpush2.bf16.msra.mxu0 0
    %557 = vmatprep.subr.bf16.mxu0 0
    %558 = vmatpush2.bf16.msra.mxu0 0
    %559 = vmatprep.subr.bf16.mxu0 0
    %560 = vmatpush2.bf16.msra.mxu0 0
    %561 = vmatprep.subr.bf16.mxu0 0
    %562 = vmatpush2.bf16.msra.mxu0 0
    %563 = vmatprep.subr.bf16.mxu0 0
    %564 = vmatpush2.bf16.msra.mxu0 0
    %565 = vmatprep.subr.bf16.mxu0 0
    %566 = vmatpush2.bf16.msra.mxu0 0
    %567 = vmatprep.subr.bf16.mxu0 0
    %568 = vmatpush2.bf16.msra.mxu0 0
    %569 = vmatprep.subr.bf16.mxu0 0
    %570 = vmatpush2.bf16.msra.mxu0 0
    %571 = vmatprep.mubr.bf16.mxu0 0
    %572 = vmatmul.mubr.bf16.gmra.mxu0 %v537
    %v573 = vpop.f32.mrf.mxu0
    %v574 = vadd.f32 %v524, %v573
    %v575 = vpop.f32.mrf.mxu0
    %v576 = vpop.f32.mrf.mxu0
    %v577 = vadd.f32 %v527, %v576
    %v578 = vpop.f32.mrf.mxu0
    %579 = vdwg.mxu0
    %580 = vrot.lane.b32.xlu0 %v220, 96
    %v581 = vpop.permute.xlu0 %580
    %582 = vrot.lane.b32.xlu0 %v220, 32
    %v583 = vpop.permute.xlu0 %582
    %v585 = vsel %vm233, %v581, 0
    %v588 = vsel %vm233, %v583, 0
    %590 = vmatprep.subr.bf16.mxu0 0
    %591 = vmatpush1.bf16.xpose.msra.mxu0 0
    %592 = vmatprep.subr.bf16.mxu0 0
    %593 = vmatpush1.bf16.xpose.msra.mxu0 0
    %594 = vmatprep.subr.bf16.mxu0 0
    %595 = vmatpush1.bf16.xpose.msra.mxu0 0
    %596 = vmatprep.subr.bf16.mxu0 0
    %597 = vmatpush1.bf16.xpose.msra.mxu0 0
    %598 = vmatprep.subr.bf16.mxu0 0
    %599 = vmatpush1.bf16.xpose.msra.mxu0 0
    %600 = vmatprep.subr.bf16.mxu0 0
    %601 = vmatpush1.bf16.xpose.msra.mxu0 0
    %602 = vmatprep.subr.bf16.mxu0 0
    %603 = vmatpush1.bf16.xpose.msra.mxu0 0
    %604 = vmatprep.subr.bf16.mxu0 0
    %605 = vmatpush1.bf16.xpose.msra.mxu0 %v588
    %606 = vmatprep.subr.bf16.mxu0 0
    %607 = vmatpush2.bf16.xpose.msra.mxu0 0
    %608 = vmatprep.subr.bf16.mxu0 0
    %609 = vmatpush2.bf16.xpose.msra.mxu0 0
    %610 = vmatprep.subr.bf16.mxu0 0
    %611 = vmatpush2.bf16.xpose.msra.mxu0 0
    %612 = vmatprep.subr.bf16.mxu0 0
    %613 = vmatpush2.bf16.xpose.msra.mxu0 0
    %614 = vmatprep.subr.bf16.mxu0 0
    %615 = vmatpush2.bf16.xpose.msra.mxu0 0
    %616 = vmatprep.subr.bf16.mxu0 0
    %617 = vmatpush2.bf16.xpose.msra.mxu0 0
    %618 = vmatprep.subr.bf16.mxu0 0
    %619 = vmatpush2.bf16.xpose.msra.mxu0 0
    %620 = vmatprep.subr.bf16.mxu0 0
    %621 = vmatpush2.bf16.xpose.msra.mxu0 0
    %622 = vmatprep.mubr.bf16.mxu0 0
    %623 = vmatmul.mubr.bf16.gmra.mxu0 %v585
    %v624 = vpop.f32.mrf.mxu0
    %v625 = vadd.f32 0.0, %v624
    %v626 = vpop.f32.mrf.mxu0
    %v627 = vpop.f32.mrf.mxu0
    %v628 = vadd.f32 0.0, %v627
    %v629 = vpop.f32.mrf.mxu0
    %630 = vdwg.mxu0
    %v631 = vmul.f32 %v625, 0.25
    %v632 = vmul.f32 %v628, 0.25
    %v633 = vadd.f32 %v631, %v111
    %v634 = vadd.f32 %v632, %v112
    %v635 = vsel %vm233, %v633, -inf
    %636 = vmax.xlane.f32.xlu0 %v635
    %v637 = vpop.xlane.xlu0 %636
    %v638 = vsel %vm233, %v634, -inf
    %639 = vmax.xlane.f32.xlu0 %v638
    %v640 = vpop.xlane.xlu0 %639
    %v641 = vsub.f32 %v633, %v637
    %v642 = vsub.f32 %v634, %v640
    %v643 = vmul.f32 %v641, 1.442695
    %v644 = vpow.pop %v643
    %v645 = vmul.f32 %v642, 1.442695
    %v646 = vpow.pop %v645
    %v647 = vsel %vm233, %v644, 0.0
    %648 = vadd.xlane.f32.xlu0 %v647
    %v649 = vpop.xlane.xlu0 %648
    %v650 = vsel %vm233, %v646, 0.0
    %651 = vadd.xlane.f32.xlu0 %v650
    %v652 = vpop.xlane.xlu0 %651
    %v653 = vrcp.pop %v649
    %v654 = vrcp.pop %v652
    %v655 = vmul.f32 %v644, %v653
    %v656 = vmul.f32 %v646, %v654
    %v657 = vpack.c.bf16 %v656, %v655
    %658 = vrot.lane.b32.xlu0 %v221, 96
    %v659 = vpop.permute.xlu0 %658
    %v662 = vsel %vm233, %v657, 0
    %664 = vmatprep.subr.bf16.mxu0 0
    %665 = vmatpush1.bf16.msra.mxu0 0
    %666 = vmatprep.subr.bf16.mxu0 0
    %667 = vmatpush1.bf16.msra.mxu0 0
    %668 = vmatprep.subr.bf16.mxu0 0
    %669 = vmatpush1.bf16.msra.mxu0 0
    %670 = vmatprep.subr.bf16.mxu0 0
    %671 = vmatpush1.bf16.msra.mxu0 0
    %672 = vmatprep.subr.bf16.mxu0 0
    %673 = vmatpush1.bf16.msra.mxu0 0
    %674 = vmatprep.subr.bf16.mxu0 0
    %675 = vmatpush1.bf16.msra.mxu0 0
    %676 = vmatprep.subr.bf16.mxu0 0
    %677 = vmatpush1.bf16.msra.mxu0 0
    %678 = vmatprep.subr.bf16.mxu0 0
    %679 = vmatpush1.bf16.msra.mxu0 %v659
    %680 = vmatprep.subr.bf16.mxu0 0
    %681 = vmatpush2.bf16.msra.mxu0 0
    %682 = vmatprep.subr.bf16.mxu0 0
    %683 = vmatpush2.bf16.msra.mxu0 0
    %684 = vmatprep.subr.bf16.mxu0 0
    %685 = vmatpush2.bf16.msra.mxu0 0
    %686 = vmatprep.subr.bf16.mxu0 0
    %687 = vmatpush2.bf16.msra.mxu0 0
    %688 = vmatprep.subr.bf16.mxu0 0
    %689 = vmatpush2.bf16.msra.mxu0 0
    %690 = vmatprep.subr.bf16.mxu0 0
    %691 = vmatpush2.bf16.msra.mxu0 0
    %692 = vmatprep.subr.bf16.mxu0 0
    %693 = vmatpush2.bf16.msra.mxu0 0
    %694 = vmatprep.subr.bf16.mxu0 0
    %695 = vmatpush2.bf16.msra.mxu0 0
    %696 = vmatprep.mubr.bf16.mxu0 0
    %697 = vmatmul.mubr.bf16.gmra.mxu0 %v662
    %v698 = vpop.f32.mrf.mxu0
    %v699 = vadd.f32 0.0, %v698
    %v700 = vpop.f32.mrf.mxu0
    %v701 = vpop.f32.mrf.mxu0
    %v702 = vadd.f32 0.0, %v701
    %v703 = vpop.f32.mrf.mxu0
    %704 = vdwg.mxu0
    %v705 = vpack.c.bf16 %v702, %v699
    %v708 = vunpack.c.l.b16 %v226
    %v709 = vunpack.c.l.b16 %v227
    %v710 = vpack.c.b16 %v709, %v708
    %v713 = vsel %vm233, %v705, 0
    %715 = vmatprep.subr.bf16.mxu0 0
    %716 = vmatpush1.bf16.msra.mxu0 0
    %717 = vmatprep.subr.bf16.mxu0 0
    %718 = vmatpush1.bf16.msra.mxu0 0
    %719 = vmatprep.subr.bf16.mxu0 0
    %720 = vmatpush1.bf16.msra.mxu0 0
    %721 = vmatprep.subr.bf16.mxu0 0
    %722 = vmatpush1.bf16.msra.mxu0 0
    %723 = vmatprep.subr.bf16.mxu0 0
    %724 = vmatpush1.bf16.msra.mxu0 0
    %725 = vmatprep.subr.bf16.mxu0 0
    %726 = vmatpush1.bf16.msra.mxu0 0
    %727 = vmatprep.subr.bf16.mxu0 0
    %728 = vmatpush1.bf16.msra.mxu0 0
    %729 = vmatprep.subr.bf16.mxu0 0
    %730 = vmatpush1.bf16.msra.mxu0 %v710
    %731 = vmatprep.subr.bf16.mxu0 0
    %732 = vmatpush2.bf16.msra.mxu0 0
    %733 = vmatprep.subr.bf16.mxu0 0
    %734 = vmatpush2.bf16.msra.mxu0 0
    %735 = vmatprep.subr.bf16.mxu0 0
    %736 = vmatpush2.bf16.msra.mxu0 0
    %737 = vmatprep.subr.bf16.mxu0 0
    %738 = vmatpush2.bf16.msra.mxu0 0
    %739 = vmatprep.subr.bf16.mxu0 0
    %740 = vmatpush2.bf16.msra.mxu0 0
    %741 = vmatprep.subr.bf16.mxu0 0
    %742 = vmatpush2.bf16.msra.mxu0 0
    %743 = vmatprep.subr.bf16.mxu0 0
    %744 = vmatpush2.bf16.msra.mxu0 0
    %745 = vmatprep.subr.bf16.mxu0 0
    %746 = vmatpush2.bf16.msra.mxu0 0
    %747 = vmatprep.mubr.bf16.mxu0 0
    %748 = vmatmul.mubr.bf16.gmra.mxu0 %v713
    %v749 = vpop.f32.mrf.mxu0
    %v750 = vadd.f32 0.0, %v749
    %v751 = vpop.f32.mrf.mxu0
    %v752 = vpop.f32.mrf.mxu0
    %v753 = vadd.f32 0.0, %v752
    %v754 = vpop.f32.mrf.mxu0
    %755 = vdwg.mxu0
    %v756 = vadd.f32 %v574, %v750
    %v757 = vadd.f32 %v577, %v753
    %758 = vrot.lane.b32.xlu0 %v220, 80
    %v759 = vpop.permute.xlu0 %758
    %760 = vrot.lane.b32.xlu0 %v220, 16
    %v761 = vpop.permute.xlu0 %760
    %v763 = vsel %vm233, %v759, 0
    %v766 = vsel %vm233, %v761, 0
    %768 = vmatprep.subr.bf16.mxu0 0
    %769 = vmatpush1.bf16.xpose.msra.mxu0 0
    %770 = vmatprep.subr.bf16.mxu0 0
    %771 = vmatpush1.bf16.xpose.msra.mxu0 0
    %772 = vmatprep.subr.bf16.mxu0 0
    %773 = vmatpush1.bf16.xpose.msra.mxu0 0
    %774 = vmatprep.subr.bf16.mxu0 0
    %775 = vmatpush1.bf16.xpose.msra.mxu0 0
    %776 = vmatprep.subr.bf16.mxu0 0
    %777 = vmatpush1.bf16.xpose.msra.mxu0 0
    %778 = vmatprep.subr.bf16.mxu0 0
    %779 = vmatpush1.bf16.xpose.msra.mxu0 0
    %780 = vmatprep.subr.bf16.mxu0 0
    %781 = vmatpush1.bf16.xpose.msra.mxu0 0
    %782 = vmatprep.subr.bf16.mxu0 0
    %783 = vmatpush1.bf16.xpose.msra.mxu0 %v766
    %784 = vmatprep.subr.bf16.mxu0 0
    %785 = vmatpush2.bf16.xpose.msra.mxu0 0
    %786 = vmatprep.subr.bf16.mxu0 0
    %787 = vmatpush2.bf16.xpose.msra.mxu0 0
    %788 = vmatprep.subr.bf16.mxu0 0
    %789 = vmatpush2.bf16.xpose.msra.mxu0 0
    %790 = vmatprep.subr.bf16.mxu0 0
    %791 = vmatpush2.bf16.xpose.msra.mxu0 0
    %792 = vmatprep.subr.bf16.mxu0 0
    %793 = vmatpush2.bf16.xpose.msra.mxu0 0
    %794 = vmatprep.subr.bf16.mxu0 0
    %795 = vmatpush2.bf16.xpose.msra.mxu0 0
    %796 = vmatprep.subr.bf16.mxu0 0
    %797 = vmatpush2.bf16.xpose.msra.mxu0 0
    %798 = vmatprep.subr.bf16.mxu0 0
    %799 = vmatpush2.bf16.xpose.msra.mxu0 0
    %800 = vmatprep.mubr.bf16.mxu0 0
    %801 = vmatmul.mubr.bf16.gmra.mxu0 %v763
    %v802 = vpop.f32.mrf.mxu0
    %v803 = vadd.f32 0.0, %v802
    %v804 = vpop.f32.mrf.mxu0
    %v805 = vpop.f32.mrf.mxu0
    %v806 = vadd.f32 0.0, %v805
    %v807 = vpop.f32.mrf.mxu0
    %808 = vdwg.mxu0
    %v809 = vmul.f32 %v803, 0.25
    %v810 = vmul.f32 %v806, 0.25
    %v811 = vadd.f32 %v809, %v111
    %v812 = vadd.f32 %v810, %v112
    %v813 = vsel %vm233, %v811, -inf
    %814 = vmax.xlane.f32.xlu0 %v813
    %v815 = vpop.xlane.xlu0 %814
    %v816 = vsel %vm233, %v812, -inf
    %817 = vmax.xlane.f32.xlu0 %v816
    %v818 = vpop.xlane.xlu0 %817
    %v819 = vsub.f32 %v811, %v815
    %v820 = vsub.f32 %v812, %v818
    %v821 = vmul.f32 %v819, 1.442695
    %v822 = vpow.pop %v821
    %v823 = vmul.f32 %v820, 1.442695
    %v824 = vpow.pop %v823
    %v825 = vsel %vm233, %v822, 0.0
    %826 = vadd.xlane.f32.xlu0 %v825
    %v827 = vpop.xlane.xlu0 %826
    %v828 = vsel %vm233, %v824, 0.0
    %829 = vadd.xlane.f32.xlu0 %v828
    %v830 = vpop.xlane.xlu0 %829
    %v831 = vrcp.pop %v827
    %v832 = vrcp.pop %v830
    %v833 = vmul.f32 %v822, %v831
    %v834 = vmul.f32 %v824, %v832
    %v835 = vpack.c.bf16 %v834, %v833
    %836 = vrot.lane.b32.xlu0 %v221, 80
    %v837 = vpop.permute.xlu0 %836
    %v840 = vsel %vm233, %v835, 0
    %842 = vmatprep.subr.bf16.mxu0 0
    %843 = vmatpush1.bf16.msra.mxu0 0
    %844 = vmatprep.subr.bf16.mxu0 0
    %845 = vmatpush1.bf16.msra.mxu0 0
    %846 = vmatprep.subr.bf16.mxu0 0
    %847 = vmatpush1.bf16.msra.mxu0 0
    %848 = vmatprep.subr.bf16.mxu0 0
    %849 = vmatpush1.bf16.msra.mxu0 0
    %850 = vmatprep.subr.bf16.mxu0 0
    %851 = vmatpush1.bf16.msra.mxu0 0
    %852 = vmatprep.subr.bf16.mxu0 0
    %853 = vmatpush1.bf16.msra.mxu0 0
    %854 = vmatprep.subr.bf16.mxu0 0
    %855 = vmatpush1.bf16.msra.mxu0 0
    %856 = vmatprep.subr.bf16.mxu0 0
    %857 = vmatpush1.bf16.msra.mxu0 %v837
    %858 = vmatprep.subr.bf16.mxu0 0
    %859 = vmatpush2.bf16.msra.mxu0 0
    %860 = vmatprep.subr.bf16.mxu0 0
    %861 = vmatpush2.bf16.msra.mxu0 0
    %862 = vmatprep.subr.bf16.mxu0 0
    %863 = vmatpush2.bf16.msra.mxu0 0
    %864 = vmatprep.subr.bf16.mxu0 0
    %865 = vmatpush2.bf16.msra.mxu0 0
    %866 = vmatprep.subr.bf16.mxu0 0
    %867 = vmatpush2.bf16.msra.mxu0 0
    %868 = vmatprep.subr.bf16.mxu0 0
    %869 = vmatpush2.bf16.msra.mxu0 0
    %870 = vmatprep.subr.bf16.mxu0 0
    %871 = vmatpush2.bf16.msra.mxu0 0
    %872 = vmatprep.subr.bf16.mxu0 0
    %873 = vmatpush2.bf16.msra.mxu0 0
    %874 = vmatprep.mubr.bf16.mxu0 0
    %875 = vmatmul.mubr.bf16.gmra.mxu0 %v840
    %v876 = vpop.f32.mrf.mxu0
    %v877 = vadd.f32 0.0, %v876
    %v878 = vpop.f32.mrf.mxu0
    %v879 = vpop.f32.mrf.mxu0
    %v880 = vadd.f32 0.0, %v879
    %v881 = vpop.f32.mrf.mxu0
    %882 = vdwg.mxu0
    %v883 = vpack.c.bf16 %v880, %v877
    %v886 = vunpack.c.l.b16 %v228
    %v887 = vunpack.c.l.b16 %v229
    %v888 = vpack.c.b16 %v887, %v886
    %v891 = vsel %vm233, %v883, 0
    %893 = vmatprep.subr.bf16.mxu0 0
    %894 = vmatpush1.bf16.msra.mxu0 0
    %895 = vmatprep.subr.bf16.mxu0 0
    %896 = vmatpush1.bf16.msra.mxu0 0
    %897 = vmatprep.subr.bf16.mxu0 0
    %898 = vmatpush1.bf16.msra.mxu0 0
    %899 = vmatprep.subr.bf16.mxu0 0
    %900 = vmatpush1.bf16.msra.mxu0 0
    %901 = vmatprep.subr.bf16.mxu0 0
    %902 = vmatpush1.bf16.msra.mxu0 0
    %903 = vmatprep.subr.bf16.mxu0 0
    %904 = vmatpush1.bf16.msra.mxu0 0
    %905 = vmatprep.subr.bf16.mxu0 0
    %906 = vmatpush1.bf16.msra.mxu0 0
    %907 = vmatprep.subr.bf16.mxu0 0
    %908 = vmatpush1.bf16.msra.mxu0 %v888
    %909 = vmatprep.subr.bf16.mxu0 0
    %910 = vmatpush2.bf16.msra.mxu0 0
    %911 = vmatprep.subr.bf16.mxu0 0
    %912 = vmatpush2.bf16.msra.mxu0 0
    %913 = vmatprep.subr.bf16.mxu0 0
    %914 = vmatpush2.bf16.msra.mxu0 0
    %915 = vmatprep.subr.bf16.mxu0 0
    %916 = vmatpush2.bf16.msra.mxu0 0
    %917 = vmatprep.subr.bf16.mxu0 0
    %918 = vmatpush2.bf16.msra.mxu0 0
    %919 = vmatprep.subr.bf16.mxu0 0
    %920 = vmatpush2.bf16.msra.mxu0 0
    %921 = vmatprep.subr.bf16.mxu0 0
    %922 = vmatpush2.bf16.msra.mxu0 0
    %923 = vmatprep.subr.bf16.mxu0 0
    %924 = vmatpush2.bf16.msra.mxu0 0
    %925 = vmatprep.mubr.bf16.mxu0 0
    %926 = vmatmul.mubr.bf16.gmra.mxu0 %v891
    %v927 = vpop.f32.mrf.mxu0
    %v928 = vadd.f32 0.0, %v927
    %v929 = vpop.f32.mrf.mxu0
    %v930 = vpop.f32.mrf.mxu0
    %v931 = vadd.f32 0.0, %v930
    %v932 = vpop.f32.mrf.mxu0
    %933 = vdwg.mxu0
    %v934 = vadd.f32 %v756, %v928
    %v935 = vadd.f32 %v757, %v931
    %v936 = vld [vmem:[%s7] sm:$0x1]
    %v938 = vlaneseq
    %v939 = vshrl.u32 %v938, 7
    %v940 = vsub.s32 0, %v939
    %v941 = vrot.slane %v936, %v940
    %v943 = vadd.f32 %v934, %v941
    %v944 = vadd.f32 %v935, %v941
    %v945 = vadd.f32 %v943, %v109
    %v946 = vadd.f32 %v944, %v110
    %v947 = vld [vmem:[%s8] sm:$0x1]
    %v948 = vld [vmem:[%s9] sm:$0x1]
    %v949 = vsel %vm67, %v945, 0.0
    %950 = vadd.xlane.f32.xlu0 %v949
    %v951 = vpop.xlane.xlu0 %950
    %v952 = vsel %vm67, %v946, 0.0
    %953 = vadd.xlane.f32.xlu0 %v952
    %v954 = vpop.xlane.xlu0 %953
    %v955 = vmul.f32 %v951, %v74
    %v956 = vmul.f32 %v954, %v74
    %v957 = vsub.f32 %v945, %v955
    %v958 = vsub.f32 %v946, %v956
    %v959 = vmul.f32 %v957, %v957
    %v960 = vmul.f32 %v958, %v958
    %v961 = vsel %vm67, %v959, 0.0
    %962 = vadd.xlane.f32.xlu0 %v961
    %v963 = vpop.xlane.xlu0 %962
    %v964 = vsel %vm67, %v960, 0.0
    %965 = vadd.xlane.f32.xlu0 %v964
    %v966 = vpop.xlane.xlu0 %965
    %v967 = vmul.f32 %v963, %v74
    %v968 = vmul.f32 %v966, %v74
    %v969 = vadd.f32 %v967, 1e-12
    %v970 = vadd.f32 %v968, 1e-12
    %v971 = vrsqrt.pop %v969
    %v972 = vrsqrt.pop %v970
    %v973 = vmul.f32 %v957, %v971
    %v974 = vmul.f32 %v958, %v972
    %v976 = vlaneseq
    %v977 = vshrl.u32 %v976, 7
    %v978 = vsub.s32 0, %v977
    %v979 = vrot.slane %v947, %v978
    %v981 = vmul.f32 %v973, %v979
    %v982 = vmul.f32 %v974, %v979
    %v984 = vlaneseq
    %v985 = vshrl.u32 %v984, 7
    %v986 = vsub.s32 0, %v985
    %v987 = vrot.slane %v948, %v986
    %v989 = vadd.f32 %v981, %v987
    %v990 = vadd.f32 %v982, %v987
    %v991 = vpack.c.bf16 %v990, %v989
    %v992 = vld [vmem:[%s10] sm:$0xf]
    %v993 = vld [vmem:[%s10 + $0x4] sm:$0xf]
    %v994 = vld [vmem:[%s10 + $0x8] sm:$0xf]
    %v995 = vld [vmem:[%s10 + $0xc] sm:$0xf]
    %v996 = vld [vmem:[%s10 + $0x10] sm:$0xf]
    %v997 = vld [vmem:[%s10 + $0x14] sm:$0xf]
    %v998 = vld [vmem:[%s10 + $0x18] sm:$0xf]
    %v999 = vld [vmem:[%s10 + $0x1c] sm:$0xf]
    %v1000 = vld [vmem:[%s11] sm:$0x1]
    %v1002 = vlaneseq
    %v1003 = vshrl.u32 %v1002, 7
    %v1004 = vsub.s32 0, %v1003
    %v1005 = vrot.slane %v1000, %v1004
    %v1015 = vunpack.c.l.b16 %v992
    %v1016 = vunpack.c.l.b16 %v993
    %v1017 = vunpack.c.l.b16 %v994
    %v1018 = vunpack.c.l.b16 %v995
    %v1019 = vunpack.c.l.b16 %v996
    %v1020 = vunpack.c.l.b16 %v997
    %v1021 = vunpack.c.l.b16 %v998
    %v1022 = vunpack.c.l.b16 %v999
    %v1023 = vpack.c.b16 %v1016, %v1015
    %v1024 = vpack.c.b16 %v1018, %v1017
    %v1025 = vpack.c.b16 %v1020, %v1019
    %v1026 = vpack.c.b16 %v1022, %v1021
    %v1032 = vsel %vm67, %v991, 0
    %1034 = vmatprep.subr.bf16.mxu0 0
    %1035 = vmatpush1.bf16.msra.mxu0 0
    %1036 = vmatprep.subr.bf16.mxu0 0
    %1037 = vmatpush1.bf16.msra.mxu0 0
    %1038 = vmatprep.subr.bf16.mxu0 0
    %1039 = vmatpush1.bf16.msra.mxu0 0
    %1040 = vmatprep.subr.bf16.mxu0 0
    %1041 = vmatpush1.bf16.msra.mxu0 0
    %1042 = vmatprep.subr.bf16.mxu0 0
    %1043 = vmatpush1.bf16.msra.mxu0 %v1026
    %1044 = vmatprep.subr.bf16.mxu0 0
    %1045 = vmatpush1.bf16.msra.mxu0 %v1025
    %1046 = vmatprep.subr.bf16.mxu0 0
    %1047 = vmatpush1.bf16.msra.mxu0 %v1024
    %1048 = vmatprep.subr.bf16.mxu0 0
    %1049 = vmatpush1.bf16.msra.mxu0 %v1023
    %1050 = vmatprep.subr.bf16.mxu0 0
    %1051 = vmatpush2.bf16.msra.mxu0 0
    %1052 = vmatprep.subr.bf16.mxu0 0
    %1053 = vmatpush2.bf16.msra.mxu0 0
    %1054 = vmatprep.subr.bf16.mxu0 0
    %1055 = vmatpush2.bf16.msra.mxu0 0
    %1056 = vmatprep.subr.bf16.mxu0 0
    %1057 = vmatpush2.bf16.msra.mxu0 0
    %1058 = vmatprep.subr.bf16.mxu0 0
    %1059 = vmatpush2.bf16.msra.mxu0 0
    %1060 = vmatprep.subr.bf16.mxu0 0
    %1061 = vmatpush2.bf16.msra.mxu0 0
    %1062 = vmatprep.subr.bf16.mxu0 0
    %1063 = vmatpush2.bf16.msra.mxu0 0
    %1064 = vmatprep.subr.bf16.mxu0 0
    %1065 = vmatpush2.bf16.msra.mxu0 0
    %1066 = vmatprep.mubr.bf16.mxu0 0
    %1067 = vmatmul.mubr.bf16.gmra.mxu0 %v1032
    %v1068 = vpop.f32.mrf.mxu0
    %v1069 = vadd.f32 %v1005, %v1068
    %v1070 = vpop.f32.mrf.mxu0
    %v1071 = vpop.f32.mrf.mxu0
    %v1072 = vadd.f32 %v1005, %v1071
    %v1073 = vpop.f32.mrf.mxu0
    %1074 = vdwg.mxu0
    %v1075 = vmul.f32 %v1069, 0.5
    %v1076 = vmul.f32 %v1072, 0.5
    %v1077 = vmul.f32 %v1069, 0.70710677
    %v1078 = vmul.f32 %v1072, 0.70710677
    %v1079 = verf.f32.pop %v1077
    %v1080 = verf.f32.pop %v1078
    %v1081 = vadd.f32 %v1079, 1.0
    %v1082 = vadd.f32 %v1080, 1.0
    %v1083 = vmul.f32 %v1075, %v1081
    %v1084 = vmul.f32 %v1076, %v1082
    %v1085 = vpack.c.bf16 %v1084, %v1083
    %v1086 = vld [vmem:[%s12] sm:$0xf]
    %v1087 = vld [vmem:[%s12 + $0x4] sm:$0xf]
    %v1088 = vld [vmem:[%s12 + $0x8] sm:$0xf]
    %v1089 = vld [vmem:[%s12 + $0xc] sm:$0xf]
    %v1090 = vld [vmem:[%s12 + $0x10] sm:$0xf]
    %v1091 = vld [vmem:[%s12 + $0x14] sm:$0xf]
    %v1092 = vld [vmem:[%s12 + $0x18] sm:$0xf]
    %v1093 = vld [vmem:[%s12 + $0x1c] sm:$0xf]
    %v1094 = vld [vmem:[%s12 + $0x20] sm:$0xf]
    %v1095 = vld [vmem:[%s12 + $0x24] sm:$0xf]
    %v1096 = vld [vmem:[%s12 + $0x28] sm:$0xf]
    %v1097 = vld [vmem:[%s12 + $0x2c] sm:$0xf]
    %v1098 = vld [vmem:[%s12 + $0x30] sm:$0xf]
    %v1099 = vld [vmem:[%s12 + $0x34] sm:$0xf]
    %v1100 = vld [vmem:[%s12 + $0x38] sm:$0xf]
    %v1101 = vld [vmem:[%s12 + $0x3c] sm:$0xf]
    %v1102 = vld [vmem:[%s13] sm:$0x1]
    %v1104 = vlaneseq
    %v1105 = vshrl.u32 %v1104, 7
    %v1106 = vsub.s32 0, %v1105
    %v1107 = vrot.slane %v1102, %v1106
    %v1125 = vunpack.c.l.b16 %v1086
    %v1126 = vunpack.c.l.b16 %v1087
    %v1127 = vunpack.c.l.b16 %v1088
    %v1128 = vunpack.c.l.b16 %v1089
    %v1129 = vunpack.c.l.b16 %v1090
    %v1130 = vunpack.c.l.b16 %v1091
    %v1131 = vunpack.c.l.b16 %v1092
    %v1132 = vunpack.c.l.b16 %v1093
    %v1133 = vunpack.c.l.b16 %v1094
    %v1134 = vunpack.c.l.b16 %v1095
    %v1135 = vunpack.c.l.b16 %v1096
    %v1136 = vunpack.c.l.b16 %v1097
    %v1137 = vunpack.c.l.b16 %v1098
    %v1138 = vunpack.c.l.b16 %v1099
    %v1139 = vunpack.c.l.b16 %v1100
    %v1140 = vunpack.c.l.b16 %v1101
    %v1141 = vpack.c.b16 %v1126, %v1125
    %v1142 = vpack.c.b16 %v1128, %v1127
    %v1143 = vpack.c.b16 %v1130, %v1129
    %v1144 = vpack.c.b16 %v1132, %v1131
    %v1145 = vpack.c.b16 %v1134, %v1133
    %v1146 = vpack.c.b16 %v1136, %v1135
    %v1147 = vpack.c.b16 %v1138, %v1137
    %v1148 = vpack.c.b16 %v1140, %v1139
    %1157 = vmatprep.subr.bf16.mxu0 0
    %1158 = vmatpush1.bf16.msra.mxu0 %v1148
    %1159 = vmatprep.subr.bf16.mxu0 0
    %1160 = vmatpush1.bf16.msra.mxu0 %v1147
    %1161 = vmatprep.subr.bf16.mxu0 0
    %1162 = vmatpush1.bf16.msra.mxu0 %v1146
    %1163 = vmatprep.subr.bf16.mxu0 0
    %1164 = vmatpush1.bf16.msra.mxu0 %v1145
    %1165 = vmatprep.subr.bf16.mxu0 0
    %1166 = vmatpush1.bf16.msra.mxu0 %v1144
    %1167 = vmatprep.subr.bf16.mxu0 0
    %1168 = vmatpush1.bf16.msra.mxu0 %v1143
    %1169 = vmatprep.subr.bf16.mxu0 0
    %1170 = vmatpush1.bf16.msra.mxu0 %v1142
    %1171 = vmatprep.subr.bf16.mxu0 0
    %1172 = vmatpush1.bf16.msra.mxu0 %v1141
    %1173 = vmatprep.subr.bf16.mxu0 0
    %1174 = vmatpush2.bf16.msra.mxu0 0
    %1175 = vmatprep.subr.bf16.mxu0 0
    %1176 = vmatpush2.bf16.msra.mxu0 0
    %1177 = vmatprep.subr.bf16.mxu0 0
    %1178 = vmatpush2.bf16.msra.mxu0 0
    %1179 = vmatprep.subr.bf16.mxu0 0
    %1180 = vmatpush2.bf16.msra.mxu0 0
    %1181 = vmatprep.subr.bf16.mxu0 0
    %1182 = vmatpush2.bf16.msra.mxu0 0
    %1183 = vmatprep.subr.bf16.mxu0 0
    %1184 = vmatpush2.bf16.msra.mxu0 0
    %1185 = vmatprep.subr.bf16.mxu0 0
    %1186 = vmatpush2.bf16.msra.mxu0 0
    %1187 = vmatprep.subr.bf16.mxu0 0
    %1188 = vmatpush2.bf16.msra.mxu0 0
    %1189 = vmatprep.mubr.bf16.mxu0 0
    %1190 = vmatmul.mubr.bf16.gmra.mxu0 %v1085
    %v1191 = vpop.f32.mrf.mxu0
    %v1192 = vadd.f32 %v1107, %v1191
    %v1193 = vpop.f32.mrf.mxu0
    %v1194 = vpop.f32.mrf.mxu0
    %v1195 = vadd.f32 %v1107, %v1194
    %v1196 = vpop.f32.mrf.mxu0
    %1197 = vdwg.mxu0
    %v1198 = vadd.f32 %v1192, %v989
    %v1199 = vadd.f32 %v1195, %v990
    %v1200 = vld [vmem:[%s14] sm:$0x1]
    %v1201 = vld [vmem:[%s15] sm:$0x1]
    %v1202 = vsel %vm67, %v1198, 0.0
    %1203 = vadd.xlane.f32.xlu0 %v1202
    %v1204 = vpop.xlane.xlu0 %1203
    %v1205 = vsel %vm67, %v1199, 0.0
    %1206 = vadd.xlane.f32.xlu0 %v1205
    %v1207 = vpop.xlane.xlu0 %1206
    %v1208 = vmul.f32 %v1204, %v74
    %v1209 = vmul.f32 %v1207, %v74
    %v1210 = vsub.f32 %v1198, %v1208
    %v1211 = vsub.f32 %v1199, %v1209
    %v1212 = vmul.f32 %v1210, %v1210
    %v1213 = vmul.f32 %v1211, %v1211
    %v1214 = vsel %vm67, %v1212, 0.0
    %1215 = vadd.xlane.f32.xlu0 %v1214
    %v1216 = vpop.xlane.xlu0 %1215
    %v1217 = vsel %vm67, %v1213, 0.0
    %1218 = vadd.xlane.f32.xlu0 %v1217
    %v1219 = vpop.xlane.xlu0 %1218
    %v1220 = vmul.f32 %v1216, %v74
    %v1221 = vmul.f32 %v1219, %v74
    %v1222 = vadd.f32 %v1220, 1e-12
    %v1223 = vadd.f32 %v1221, 1e-12
    %v1224 = vrsqrt.pop %v1222
    %v1225 = vrsqrt.pop %v1223
    %v1226 = vmul.f32 %v1210, %v1224
    %v1227 = vmul.f32 %v1211, %v1225
    %v1229 = vlaneseq
    %v1230 = vshrl.u32 %v1229, 7
    %v1231 = vsub.s32 0, %v1230
    %v1232 = vrot.slane %v1200, %v1231
    %v1234 = vmul.f32 %v1226, %v1232
    %v1235 = vmul.f32 %v1227, %v1232
    %v1237 = vlaneseq
    %v1238 = vshrl.u32 %v1237, 7
    %v1239 = vsub.s32 0, %v1238
    %v1240 = vrot.slane %v1201, %v1239
    %v1242 = vadd.f32 %v1234, %v1240
    %v1243 = vadd.f32 %v1235, %v1240
    %v1244 = vpack.c.bf16 %v1243, %v1242
    %s1245 = scalar_lea.vmem %s4, 64
    %v1246 = vld [vmem:[%s1245] sm:$0xff]
    %v1247 = vld [vmem:[%s1245 + $0x8] sm:$0xff]
    %v1248 = vld [vmem:[%s1245 + $0x10] sm:$0xff]
    %v1249 = vld [vmem:[%s1245 + $0x18] sm:$0xff]
    %v1250 = vld [vmem:[%s1245 + $0x20] sm:$0xff]
    %v1251 = vld [vmem:[%s1245 + $0x28] sm:$0xff]
    %v1252 = vld [vmem:[%s1245 + $0x30] sm:$0xff]
    %v1253 = vld [vmem:[%s1245 + $0x38] sm:$0xff]
    %s1254 = scalar_lea.vmem %s5, 2
    %v1255 = vld [vmem:[%s1254] sm:$0x3]
    %v1257 = vlaneseq
    %v1258 = vshrl.u32 %v1257, 7
    %v1259 = vsub.s32 0, %v1258
    %v1260 = vrot.slane %v1255, %v1259
    %v1261 = vlaneseq
    %v1262 = vshrl.u32 %v1261, 7
    %v1263 = vsub.s32 1, %v1262
    %v1264 = vrot.slane %v1255, %v1263
    %v1275 = vunpack.c.l.b16 %v1246
    %v1276 = vunpack.c.h.b16 %v1246
    %v1277 = vunpack.c.l.b16 %v1247
    %v1278 = vunpack.c.h.b16 %v1247
    %v1279 = vunpack.c.l.b16 %v1248
    %v1280 = vunpack.c.h.b16 %v1248
    %v1281 = vunpack.c.l.b16 %v1249
    %v1282 = vunpack.c.h.b16 %v1249
    %v1283 = vunpack.c.l.b16 %v1250
    %v1284 = vunpack.c.h.b16 %v1250
    %v1285 = vunpack.c.l.b16 %v1251
    %v1286 = vunpack.c.h.b16 %v1251
    %v1287 = vunpack.c.l.b16 %v1252
    %v1288 = vunpack.c.h.b16 %v1252
    %v1289 = vunpack.c.l.b16 %v1253
    %v1290 = vunpack.c.h.b16 %v1253
    %v1291 = vpack.c.b16 %v1277, %v1275
    %v1292 = vpack.c.b16 %v1278, %v1276
    %v1293 = vpack.c.b16 %v1281, %v1279
    %v1294 = vpack.c.b16 %v1282, %v1280
    %v1295 = vpack.c.b16 %v1285, %v1283
    %v1296 = vpack.c.b16 %v1286, %v1284
    %v1297 = vpack.c.b16 %v1289, %v1287
    %v1298 = vpack.c.b16 %v1290, %v1288
    %v1308 = vsel %vm67, %v1244, 0
    %1310 = vmatprep.subr.bf16.mxu0 0
    %1311 = vmatpush1.bf16.msra.mxu0 0
    %1312 = vmatprep.subr.bf16.mxu0 0
    %1313 = vmatpush1.bf16.msra.mxu0 0
    %1314 = vmatprep.subr.bf16.mxu0 0
    %1315 = vmatpush1.bf16.msra.mxu0 0
    %1316 = vmatprep.subr.bf16.mxu0 0
    %1317 = vmatpush1.bf16.msra.mxu0 0
    %1318 = vmatprep.subr.bf16.mxu0 %v1298
    %1319 = vmatpush1.bf16.msra.mxu0 %v1297
    %1320 = vmatprep.subr.bf16.mxu0 %v1296
    %1321 = vmatpush1.bf16.msra.mxu0 %v1295
    %1322 = vmatprep.subr.bf16.mxu0 %v1294
    %1323 = vmatpush1.bf16.msra.mxu0 %v1293
    %1324 = vmatprep.subr.bf16.mxu0 %v1292
    %1325 = vmatpush1.bf16.msra.mxu0 %v1291
    %1326 = vmatprep.subr.bf16.mxu0 0
    %1327 = vmatpush2.bf16.msra.mxu0 0
    %1328 = vmatprep.subr.bf16.mxu0 0
    %1329 = vmatpush2.bf16.msra.mxu0 0
    %1330 = vmatprep.subr.bf16.mxu0 0
    %1331 = vmatpush2.bf16.msra.mxu0 0
    %1332 = vmatprep.subr.bf16.mxu0 0
    %1333 = vmatpush2.bf16.msra.mxu0 0
    %1334 = vmatprep.subr.bf16.mxu0 0
    %1335 = vmatpush2.bf16.msra.mxu0 0
    %1336 = vmatprep.subr.bf16.mxu0 0
    %1337 = vmatpush2.bf16.msra.mxu0 0
    %1338 = vmatprep.subr.bf16.mxu0 0
    %1339 = vmatpush2.bf16.msra.mxu0 0
    %1340 = vmatprep.subr.bf16.mxu0 0
    %1341 = vmatpush2.bf16.msra.mxu0 0
    %1342 = vmatprep.mubr.bf16.mxu0 0
    %1343 = vmatmul.mubr.bf16.gmra.mxu0 %v1308
    %v1344 = vpop.f32.mrf.mxu0
    %v1345 = vadd.f32 %v1260, %v1344
    %v1346 = vpop.f32.mrf.mxu0
    %v1347 = vadd.f32 %v1264, %v1346
    %v1348 = vpop.f32.mrf.mxu0
    %v1349 = vadd.f32 %v1260, %v1348
    %v1350 = vpop.f32.mrf.mxu0
    %v1351 = vadd.f32 %v1264, %v1350
    %1352 = vdwg.mxu0
    %v1353 = vpack.c.bf16 %v1349, %v1345
    %v1354 = vpack.c.bf16 %v1351, %v1347
    %s1355 = scalar_lea.vmem %s6, 32
    %v1356 = vld [vmem:[%s1355] sm:$0xf]
    %v1357 = vld [vmem:[%s1355 + $0x4] sm:$0xf]
    %v1358 = vld [vmem:[%s1355 + $0x8] sm:$0xf]
    %v1359 = vld [vmem:[%s1355 + $0xc] sm:$0xf]
    %v1360 = vld [vmem:[%s1355 + $0x10] sm:$0xf]
    %v1361 = vld [vmem:[%s1355 + $0x14] sm:$0xf]
    %v1362 = vld [vmem:[%s1355 + $0x18] sm:$0xf]
    %v1363 = vld [vmem:[%s1355 + $0x1c] sm:$0xf]
    %1365 = vrot.lane.b32.xlu0 %v1353, 64
    %v1366 = vpop.permute.xlu0 %1365
    %v1368 = vsel %vm233, %v1353, 0
    %v1371 = vsel %vm233, %v1366, 0
    %1373 = vmatprep.subr.bf16.mxu0 0
    %1374 = vmatpush1.bf16.xpose.msra.mxu0 0
    %1375 = vmatprep.subr.bf16.mxu0 0
    %1376 = vmatpush1.bf16.xpose.msra.mxu0 0
    %1377 = vmatprep.subr.bf16.mxu0 0
    %1378 = vmatpush1.bf16.xpose.msra.mxu0 0
    %1379 = vmatprep.subr.bf16.mxu0 0
    %1380 = vmatpush1.bf16.xpose.msra.mxu0 0
    %1381 = vmatprep.subr.bf16.mxu0 0
    %1382 = vmatpush1.bf16.xpose.msra.mxu0 0
    %1383 = vmatprep.subr.bf16.mxu0 0
    %1384 = vmatpush1.bf16.xpose.msra.mxu0 0
    %1385 = vmatprep.subr.bf16.mxu0 0
    %1386 = vmatpush1.bf16.xpose.msra.mxu0 0
    %1387 = vmatprep.subr.bf16.mxu0 0
    %1388 = vmatpush1.bf16.xpose.msra.mxu0 %v1371
    %1389 = vmatprep.subr.bf16.mxu0 0
    %1390 = vmatpush2.bf16.xpose.msra.mxu0 0
    %1391 = vmatprep.subr.bf16.mxu0 0
    %1392 = vmatpush2.bf16.xpose.msra.mxu0 0
    %1393 = vmatprep.subr.bf16.mxu0 0
    %1394 = vmatpush2.bf16.xpose.msra.mxu0 0
    %1395 = vmatprep.subr.bf16.mxu0 0
    %1396 = vmatpush2.bf16.xpose.msra.mxu0 0
    %1397 = vmatprep.subr.bf16.mxu0 0
    %1398 = vmatpush2.bf16.xpose.msra.mxu0 0
    %1399 = vmatprep.subr.bf16.mxu0 0
    %1400 = vmatpush2.bf16.xpose.msra.mxu0 0
    %1401 = vmatprep.subr.bf16.mxu0 0
    %1402 = vmatpush2.bf16.xpose.msra.mxu0 0
    %1403 = vmatprep.subr.bf16.mxu0 0
    %1404 = vmatpush2.bf16.xpose.msra.mxu0 0
    %1405 = vmatprep.mubr.bf16.mxu0 0
    %1406 = vmatmul.mubr.bf16.gmra.mxu0 %v1368
    %v1407 = vpop.f32.mrf.mxu0
    %v1408 = vadd.f32 0.0, %v1407
    %v1409 = vpop.f32.mrf.mxu0
    %v1410 = vpop.f32.mrf.mxu0
    %v1411 = vadd.f32 0.0, %v1410
    %v1412 = vpop.f32.mrf.mxu0
    %1413 = vdwg.mxu0
    %v1414 = vmul.f32 %v1408, 0.25
    %v1415 = vmul.f32 %v1411, 0.25
    %v1416 = vadd.f32 %v1414, %v111
    %v1417 = vadd.f32 %v1415, %v112
    %v1418 = vsel %vm233, %v1416, -inf
    %1419 = vmax.xlane.f32.xlu0 %v1418
    %v1420 = vpop.xlane.xlu0 %1419
    %v1421 = vsel %vm233, %v1417, -inf
    %1422 = vmax.xlane.f32.xlu0 %v1421
    %v1423 = vpop.xlane.xlu0 %1422
    %v1424 = vsub.f32 %v1416, %v1420
    %v1425 = vsub.f32 %v1417, %v1423
    %v1426 = vmul.f32 %v1424, 1.442695
    %v1427 = vpow.pop %v1426
    %v1428 = vmul.f32 %v1425, 1.442695
    %v1429 = vpow.pop %v1428
    %v1430 = vsel %vm233, %v1427, 0.0
    %1431 = vadd.xlane.f32.xlu0 %v1430
    %v1432 = vpop.xlane.xlu0 %1431
    %v1433 = vsel %vm233, %v1429, 0.0
    %1434 = vadd.xlane.f32.xlu0 %v1433
    %v1435 = vpop.xlane.xlu0 %1434
    %v1436 = vrcp.pop %v1432
    %v1437 = vrcp.pop %v1435
    %v1438 = vmul.f32 %v1427, %v1436
    %v1439 = vmul.f32 %v1429, %v1437
    %v1440 = vpack.c.bf16 %v1439, %v1438
    %v1442 = vsel %vm233, %v1440, 0
    %1444 = vmatprep.subr.bf16.mxu0 0
    %1445 = vmatpush1.bf16.msra.mxu0 0
    %1446 = vmatprep.subr.bf16.mxu0 0
    %1447 = vmatpush1.bf16.msra.mxu0 0
    %1448 = vmatprep.subr.bf16.mxu0 0
    %1449 = vmatpush1.bf16.msra.mxu0 0
    %1450 = vmatprep.subr.bf16.mxu0 0
    %1451 = vmatpush1.bf16.msra.mxu0 0
    %1452 = vmatprep.subr.bf16.mxu0 0
    %1453 = vmatpush1.bf16.msra.mxu0 0
    %1454 = vmatprep.subr.bf16.mxu0 0
    %1455 = vmatpush1.bf16.msra.mxu0 0
    %1456 = vmatprep.subr.bf16.mxu0 0
    %1457 = vmatpush1.bf16.msra.mxu0 0
    %1458 = vmatprep.subr.bf16.mxu0 0
    %1459 = vmatpush1.bf16.msra.mxu0 %v1354
    %1460 = vmatprep.subr.bf16.mxu0 0
    %1461 = vmatpush2.bf16.msra.mxu0 0
    %1462 = vmatprep.subr.bf16.mxu0 0
    %1463 = vmatpush2.bf16.msra.mxu0 0
    %1464 = vmatprep.subr.bf16.mxu0 0
    %1465 = vmatpush2.bf16.msra.mxu0 0
    %1466 = vmatprep.subr.bf16.mxu0 0
    %1467 = vmatpush2.bf16.msra.mxu0 0
    %1468 = vmatprep.subr.bf16.mxu0 0
    %1469 = vmatpush2.bf16.msra.mxu0 0
    %1470 = vmatprep.subr.bf16.mxu0 0
    %1471 = vmatpush2.bf16.msra.mxu0 0
    %1472 = vmatprep.subr.bf16.mxu0 0
    %1473 = vmatpush2.bf16.msra.mxu0 0
    %1474 = vmatprep.subr.bf16.mxu0 0
    %1475 = vmatpush2.bf16.msra.mxu0 0
    %1476 = vmatprep.mubr.bf16.mxu0 0
    %1477 = vmatmul.mubr.bf16.gmra.mxu0 %v1442
    %v1478 = vpop.f32.mrf.mxu0
    %v1479 = vadd.f32 0.0, %v1478
    %v1480 = vpop.f32.mrf.mxu0
    %v1481 = vpop.f32.mrf.mxu0
    %v1482 = vadd.f32 0.0, %v1481
    %v1483 = vpop.f32.mrf.mxu0
    %1484 = vdwg.mxu0
    %v1485 = vpack.c.bf16 %v1482, %v1479
    %1486 = vrot.lane.b32.xlu0 %v1353, 112
    %v1487 = vpop.permute.xlu0 %1486
    %1488 = vrot.lane.b32.xlu0 %v1353, 48
    %v1489 = vpop.permute.xlu0 %1488
    %v1491 = vsel %vm233, %v1487, 0
    %v1494 = vsel %vm233, %v1489, 0
    %1496 = vmatprep.subr.bf16.mxu0 0
    %1497 = vmatpush1.bf16.xpose.msra.mxu0 0
    %1498 = vmatprep.subr.bf16.mxu0 0
    %1499 = vmatpush1.bf16.xpose.msra.mxu0 0
    %1500 = vmatprep.subr.bf16.mxu0 0
    %1501 = vmatpush1.bf16.xpose.msra.mxu0 0
    %1502 = vmatprep.subr.bf16.mxu0 0
    %1503 = vmatpush1.bf16.xpose.msra.mxu0 0
    %1504 = vmatprep.subr.bf16.mxu0 0
    %1505 = vmatpush1.bf16.xpose.msra.mxu0 0
    %1506 = vmatprep.subr.bf16.mxu0 0
    %1507 = vmatpush1.bf16.xpose.msra.mxu0 0
    %1508 = vmatprep.subr.bf16.mxu0 0
    %1509 = vmatpush1.bf16.xpose.msra.mxu0 0
    %1510 = vmatprep.subr.bf16.mxu0 0
    %1511 = vmatpush1.bf16.xpose.msra.mxu0 %v1494
    %1512 = vmatprep.subr.bf16.mxu0 0
    %1513 = vmatpush2.bf16.xpose.msra.mxu0 0
    %1514 = vmatprep.subr.bf16.mxu0 0
    %1515 = vmatpush2.bf16.xpose.msra.mxu0 0
    %1516 = vmatprep.subr.bf16.mxu0 0
    %1517 = vmatpush2.bf16.xpose.msra.mxu0 0
    %1518 = vmatprep.subr.bf16.mxu0 0
    %1519 = vmatpush2.bf16.xpose.msra.mxu0 0
    %1520 = vmatprep.subr.bf16.mxu0 0
    %1521 = vmatpush2.bf16.xpose.msra.mxu0 0
    %1522 = vmatprep.subr.bf16.mxu0 0
    %1523 = vmatpush2.bf16.xpose.msra.mxu0 0
    %1524 = vmatprep.subr.bf16.mxu0 0
    %1525 = vmatpush2.bf16.xpose.msra.mxu0 0
    %1526 = vmatprep.subr.bf16.mxu0 0
    %1527 = vmatpush2.bf16.xpose.msra.mxu0 0
    %1528 = vmatprep.mubr.bf16.mxu0 0
    %1529 = vmatmul.mubr.bf16.gmra.mxu0 %v1491
    %v1530 = vpop.f32.mrf.mxu0
    %v1531 = vadd.f32 0.0, %v1530
    %v1532 = vpop.f32.mrf.mxu0
    %v1533 = vpop.f32.mrf.mxu0
    %v1534 = vadd.f32 0.0, %v1533
    %v1535 = vpop.f32.mrf.mxu0
    %1536 = vdwg.mxu0
    %v1537 = vmul.f32 %v1531, 0.25
    %v1538 = vmul.f32 %v1534, 0.25
    %v1539 = vadd.f32 %v1537, %v111
    %v1540 = vadd.f32 %v1538, %v112
    %v1541 = vsel %vm233, %v1539, -inf
    %1542 = vmax.xlane.f32.xlu0 %v1541
    %v1543 = vpop.xlane.xlu0 %1542
    %v1544 = vsel %vm233, %v1540, -inf
    %1545 = vmax.xlane.f32.xlu0 %v1544
    %v1546 = vpop.xlane.xlu0 %1545
    %v1547 = vsub.f32 %v1539, %v1543
    %v1548 = vsub.f32 %v1540, %v1546
    %v1549 = vmul.f32 %v1547, 1.442695
    %v1550 = vpow.pop %v1549
    %v1551 = vmul.f32 %v1548, 1.442695
    %v1552 = vpow.pop %v1551
    %v1553 = vsel %vm233, %v1550, 0.0
    %1554 = vadd.xlane.f32.xlu0 %v1553
    %v1555 = vpop.xlane.xlu0 %1554
    %v1556 = vsel %vm233, %v1552, 0.0
    %1557 = vadd.xlane.f32.xlu0 %v1556
    %v1558 = vpop.xlane.xlu0 %1557
    %v1559 = vrcp.pop %v1555
    %v1560 = vrcp.pop %v1558
    %v1561 = vmul.f32 %v1550, %v1559
    %v1562 = vmul.f32 %v1552, %v1560
    %v1563 = vpack.c.bf16 %v1562, %v1561
    %1565 = vrot.lane.b32.xlu0 %v1354, 112
    %v1566 = vpop.permute.xlu0 %1565
    %v1569 = vsel %vm233, %v1563, 0
    %1571 = vmatprep.subr.bf16.mxu0 0
    %1572 = vmatpush1.bf16.msra.mxu0 0
    %1573 = vmatprep.subr.bf16.mxu0 0
    %1574 = vmatpush1.bf16.msra.mxu0 0
    %1575 = vmatprep.subr.bf16.mxu0 0
    %1576 = vmatpush1.bf16.msra.mxu0 0
    %1577 = vmatprep.subr.bf16.mxu0 0
    %1578 = vmatpush1.bf16.msra.mxu0 0
    %1579 = vmatprep.subr.bf16.mxu0 0
    %1580 = vmatpush1.bf16.msra.mxu0 0
    %1581 = vmatprep.subr.bf16.mxu0 0
    %1582 = vmatpush1.bf16.msra.mxu0 0
    %1583 = vmatprep.subr.bf16.mxu0 0
    %1584 = vmatpush1.bf16.msra.mxu0 0
    %1585 = vmatprep.subr.bf16.mxu0 0
    %1586 = vmatpush1.bf16.msra.mxu0 %v1566
    %1587 = vmatprep.subr.bf16.mxu0 0
    %1588 = vmatpush2.bf16.msra.mxu0 0
    %1589 = vmatprep.subr.bf16.mxu0 0
    %1590 = vmatpush2.bf16.msra.mxu0 0
    %1591 = vmatprep.subr.bf16.mxu0 0
    %1592 = vmatpush2.bf16.msra.mxu0 0
    %1593 = vmatprep.subr.bf16.mxu0 0
    %1594 = vmatpush2.bf16.msra.mxu0 0
    %1595 = vmatprep.subr.bf16.mxu0 0
    %1596 = vmatpush2.bf16.msra.mxu0 0
    %1597 = vmatprep.subr.bf16.mxu0 0
    %1598 = vmatpush2.bf16.msra.mxu0 0
    %1599 = vmatprep.subr.bf16.mxu0 0
    %1600 = vmatpush2.bf16.msra.mxu0 0
    %1601 = vmatprep.subr.bf16.mxu0 0
    %1602 = vmatpush2.bf16.msra.mxu0 0
    %1603 = vmatprep.mubr.bf16.mxu0 0
    %1604 = vmatmul.mubr.bf16.gmra.mxu0 %v1569
    %v1605 = vpop.f32.mrf.mxu0
    %v1606 = vadd.f32 0.0, %v1605
    %v1607 = vpop.f32.mrf.mxu0
    %v1608 = vpop.f32.mrf.mxu0
    %v1609 = vadd.f32 0.0, %v1608
    %v1610 = vpop.f32.mrf.mxu0
    %1611 = vdwg.mxu0
    %v1612 = vpack.c.bf16 %v1609, %v1606
    %v1615 = vunpack.c.l.b16 %v1358
    %v1616 = vunpack.c.l.b16 %v1359
    %v1617 = vpack.c.b16 %v1616, %v1615
    %v1620 = vsel %vm233, %v1612, 0
    %1622 = vmatprep.subr.bf16.mxu0 0
    %1623 = vmatpush1.bf16.msra.mxu0 0
    %1624 = vmatprep.subr.bf16.mxu0 0
    %1625 = vmatpush1.bf16.msra.mxu0 0
    %1626 = vmatprep.subr.bf16.mxu0 0
    %1627 = vmatpush1.bf16.msra.mxu0 0
    %1628 = vmatprep.subr.bf16.mxu0 0
    %1629 = vmatpush1.bf16.msra.mxu0 0
    %1630 = vmatprep.subr.bf16.mxu0 0
    %1631 = vmatpush1.bf16.msra.mxu0 0
    %1632 = vmatprep.subr.bf16.mxu0 0
    %1633 = vmatpush1.bf16.msra.mxu0 0
    %1634 = vmatprep.subr.bf16.mxu0 0
    %1635 = vmatpush1.bf16.msra.mxu0 0
    %1636 = vmatprep.subr.bf16.mxu0 0
    %1637 = vmatpush1.bf16.msra.mxu0 %v1617
    %1638 = vmatprep.subr.bf16.mxu0 0
    %1639 = vmatpush2.bf16.msra.mxu0 0
    %1640 = vmatprep.subr.bf16.mxu0 0
    %1641 = vmatpush2.bf16.msra.mxu0 0
    %1642 = vmatprep.subr.bf16.mxu0 0
    %1643 = vmatpush2.bf16.msra.mxu0 0
    %1644 = vmatprep.subr.bf16.mxu0 0
    %1645 = vmatpush2.bf16.msra.mxu0 0
    %1646 = vmatprep.subr.bf16.mxu0 0
    %1647 = vmatpush2.bf16.msra.mxu0 0
    %1648 = vmatprep.subr.bf16.mxu0 0
    %1649 = vmatpush2.bf16.msra.mxu0 0
    %1650 = vmatprep.subr.bf16.mxu0 0
    %1651 = vmatpush2.bf16.msra.mxu0 0
    %1652 = vmatprep.subr.bf16.mxu0 0
    %1653 = vmatpush2.bf16.msra.mxu0 0
    %1654 = vmatprep.mubr.bf16.mxu0 0
    %1655 = vmatmul.mubr.bf16.gmra.mxu0 %v1620
    %v1656 = vpop.f32.mrf.mxu0
    %v1657 = vadd.f32 0.0, %v1656
    %v1658 = vpop.f32.mrf.mxu0
    %v1659 = vpop.f32.mrf.mxu0
    %v1660 = vadd.f32 0.0, %v1659
    %v1661 = vpop.f32.mrf.mxu0
    %1662 = vdwg.mxu0
    %v1665 = vunpack.c.l.b16 %v1356
    %v1666 = vunpack.c.l.b16 %v1357
    %v1667 = vpack.c.b16 %v1666, %v1665
    %v1670 = vsel %vm233, %v1485, 0
    %1672 = vmatprep.subr.bf16.mxu0 0
    %1673 = vmatpush1.bf16.msra.mxu0 0
    %1674 = vmatprep.subr.bf16.mxu0 0
    %1675 = vmatpush1.bf16.msra.mxu0 0
    %1676 = vmatprep.subr.bf16.mxu0 0
    %1677 = vmatpush1.bf16.msra.mxu0 0
    %1678 = vmatprep.subr.bf16.mxu0 0
    %1679 = vmatpush1.bf16.msra.mxu0 0
    %1680 = vmatprep.subr.bf16.mxu0 0
    %1681 = vmatpush1.bf16.msra.mxu0 0
    %1682 = vmatprep.subr.bf16.mxu0 0
    %1683 = vmatpush1.bf16.msra.mxu0 0
    %1684 = vmatprep.subr.bf16.mxu0 0
    %1685 = vmatpush1.bf16.msra.mxu0 0
    %1686 = vmatprep.subr.bf16.mxu0 0
    %1687 = vmatpush1.bf16.msra.mxu0 %v1667
    %1688 = vmatprep.subr.bf16.mxu0 0
    %1689 = vmatpush2.bf16.msra.mxu0 0
    %1690 = vmatprep.subr.bf16.mxu0 0
    %1691 = vmatpush2.bf16.msra.mxu0 0
    %1692 = vmatprep.subr.bf16.mxu0 0
    %1693 = vmatpush2.bf16.msra.mxu0 0
    %1694 = vmatprep.subr.bf16.mxu0 0
    %1695 = vmatpush2.bf16.msra.mxu0 0
    %1696 = vmatprep.subr.bf16.mxu0 0
    %1697 = vmatpush2.bf16.msra.mxu0 0
    %1698 = vmatprep.subr.bf16.mxu0 0
    %1699 = vmatpush2.bf16.msra.mxu0 0
    %1700 = vmatprep.subr.bf16.mxu0 0
    %1701 = vmatpush2.bf16.msra.mxu0 0
    %1702 = vmatprep.subr.bf16.mxu0 0
    %1703 = vmatpush2.bf16.msra.mxu0 0
    %1704 = vmatprep.mubr.bf16.mxu0 0
    %1705 = vmatmul.mubr.bf16.gmra.mxu0 %v1670
    %v1706 = vpop.f32.mrf.mxu0
    %v1707 = vadd.f32 %v1657, %v1706
    %v1708 = vpop.f32.mrf.mxu0
    %v1709 = vpop.f32.mrf.mxu0
    %v1710 = vadd.f32 %v1660, %v1709
    %v1711 = vpop.f32.mrf.mxu0
    %1712 = vdwg.mxu0
    %1713 = vrot.lane.b32.xlu0 %v1353, 96
    %v1714 = vpop.permute.xlu0 %1713
    %1715 = vrot.lane.b32.xlu0 %v1353, 32
    %v1716 = vpop.permute.xlu0 %1715
    %v1718 = vsel %vm233, %v1714, 0
    %v1721 = vsel %vm233, %v1716, 0
    %1723 = vmatprep.subr.bf16.mxu0 0
    %1724 = vmatpush1.bf16.xpose.msra.mxu0 0
    %1725 = vmatprep.subr.bf16.mxu0 0
    %1726 = vmatpush1.bf16.xpose.msra.mxu0 0
    %1727 = vmatprep.subr.bf16.mxu0 0
    %1728 = vmatpush1.bf16.xpose.msra.mxu0 0
    %1729 = vmatprep.subr.bf16.mxu0 0
    %1730 = vmatpush1.bf16.xpose.msra.mxu0 0
    %1731 = vmatprep.subr.bf16.mxu0 0
    %1732 = vmatpush1.bf16.xpose.msra.mxu0 0
    %1733 = vmatprep.subr.bf16.mxu0 0
    %1734 = vmatpush1.bf16.xpose.msra.mxu0 0
    %1735 = vmatprep.subr.bf16.mxu0 0
    %1736 = vmatpush1.bf16.xpose.msra.mxu0 0
    %1737 = vmatprep.subr.bf16.mxu0 0
    %1738 = vmatpush1.bf16.xpose.msra.mxu0 %v1721
    %1739 = vmatprep.subr.bf16.mxu0 0
    %1740 = vmatpush2.bf16.xpose.msra.mxu0 0
    %1741 = vmatprep.subr.bf16.mxu0 0
    %1742 = vmatpush2.bf16.xpose.msra.mxu0 0
    %1743 = vmatprep.subr.bf16.mxu0 0
    %1744 = vmatpush2.bf16.xpose.msra.mxu0 0
    %1745 = vmatprep.subr.bf16.mxu0 0
    %1746 = vmatpush2.bf16.xpose.msra.mxu0 0
    %1747 = vmatprep.subr.bf16.mxu0 0
    %1748 = vmatpush2.bf16.xpose.msra.mxu0 0
    %1749 = vmatprep.subr.bf16.mxu0 0
    %1750 = vmatpush2.bf16.xpose.msra.mxu0 0
    %1751 = vmatprep.subr.bf16.mxu0 0
    %1752 = vmatpush2.bf16.xpose.msra.mxu0 0
    %1753 = vmatprep.subr.bf16.mxu0 0
    %1754 = vmatpush2.bf16.xpose.msra.mxu0 0
    %1755 = vmatprep.mubr.bf16.mxu0 0
    %1756 = vmatmul.mubr.bf16.gmra.mxu0 %v1718
    %v1757 = vpop.f32.mrf.mxu0
    %v1758 = vadd.f32 0.0, %v1757
    %v1759 = vpop.f32.mrf.mxu0
    %v1760 = vpop.f32.mrf.mxu0
    %v1761 = vadd.f32 0.0, %v1760
    %v1762 = vpop.f32.mrf.mxu0
    %1763 = vdwg.mxu0
    %v1764 = vmul.f32 %v1758, 0.25
    %v1765 = vmul.f32 %v1761, 0.25
    %v1766 = vadd.f32 %v1764, %v111
    %v1767 = vadd.f32 %v1765, %v112
    %v1768 = vsel %vm233, %v1766, -inf
    %1769 = vmax.xlane.f32.xlu0 %v1768
    %v1770 = vpop.xlane.xlu0 %1769
    %v1771 = vsel %vm233, %v1767, -inf
    %1772 = vmax.xlane.f32.xlu0 %v1771
    %v1773 = vpop.xlane.xlu0 %1772
    %v1774 = vsub.f32 %v1766, %v1770
    %v1775 = vsub.f32 %v1767, %v1773
    %v1776 = vmul.f32 %v1774, 1.442695
    %v1777 = vpow.pop %v1776
    %v1778 = vmul.f32 %v1775, 1.442695
    %v1779 = vpow.pop %v1778
    %v1780 = vsel %vm233, %v1777, 0.0
    %1781 = vadd.xlane.f32.xlu0 %v1780
    %v1782 = vpop.xlane.xlu0 %1781
    %v1783 = vsel %vm233, %v1779, 0.0
    %1784 = vadd.xlane.f32.xlu0 %v1783
    %v1785 = vpop.xlane.xlu0 %1784
    %v1786 = vrcp.pop %v1782
    %v1787 = vrcp.pop %v1785
    %v1788 = vmul.f32 %v1777, %v1786
    %v1789 = vmul.f32 %v1779, %v1787
    %v1790 = vpack.c.bf16 %v1789, %v1788
    %1791 = vrot.lane.b32.xlu0 %v1354, 96
    %v1792 = vpop.permute.xlu0 %1791
    %v1795 = vsel %vm233, %v1790, 0
    %1797 = vmatprep.subr.bf16.mxu0 0
    %1798 = vmatpush1.bf16.msra.mxu0 0
    %1799 = vmatprep.subr.bf16.mxu0 0
    %1800 = vmatpush1.bf16.msra.mxu0 0
    %1801 = vmatprep.subr.bf16.mxu0 0
    %1802 = vmatpush1.bf16.msra.mxu0 0
    %1803 = vmatprep.subr.bf16.mxu0 0
    %1804 = vmatpush1.bf16.msra.mxu0 0
    %1805 = vmatprep.subr.bf16.mxu0 0
    %1806 = vmatpush1.bf16.msra.mxu0 0
    %1807 = vmatprep.subr.bf16.mxu0 0
    %1808 = vmatpush1.bf16.msra.mxu0 0
    %1809 = vmatprep.subr.bf16.mxu0 0
    %1810 = vmatpush1.bf16.msra.mxu0 0
    %1811 = vmatprep.subr.bf16.mxu0 0
    %1812 = vmatpush1.bf16.msra.mxu0 %v1792
    %1813 = vmatprep.subr.bf16.mxu0 0
    %1814 = vmatpush2.bf16.msra.mxu0 0
    %1815 = vmatprep.subr.bf16.mxu0 0
    %1816 = vmatpush2.bf16.msra.mxu0 0
    %1817 = vmatprep.subr.bf16.mxu0 0
    %1818 = vmatpush2.bf16.msra.mxu0 0
    %1819 = vmatprep.subr.bf16.mxu0 0
    %1820 = vmatpush2.bf16.msra.mxu0 0
    %1821 = vmatprep.subr.bf16.mxu0 0
    %1822 = vmatpush2.bf16.msra.mxu0 0
    %1823 = vmatprep.subr.bf16.mxu0 0
    %1824 = vmatpush2.bf16.msra.mxu0 0
    %1825 = vmatprep.subr.bf16.mxu0 0
    %1826 = vmatpush2.bf16.msra.mxu0 0
    %1827 = vmatprep.subr.bf16.mxu0 0
    %1828 = vmatpush2.bf16.msra.mxu0 0
    %1829 = vmatprep.mubr.bf16.mxu0 0
    %1830 = vmatmul.mubr.bf16.gmra.mxu0 %v1795
    %v1831 = vpop.f32.mrf.mxu0
    %v1832 = vadd.f32 0.0, %v1831
    %v1833 = vpop.f32.mrf.mxu0
    %v1834 = vpop.f32.mrf.mxu0
    %v1835 = vadd.f32 0.0, %v1834
    %v1836 = vpop.f32.mrf.mxu0
    %1837 = vdwg.mxu0
    %v1838 = vpack.c.bf16 %v1835, %v1832
    %v1841 = vunpack.c.l.b16 %v1360
    %v1842 = vunpack.c.l.b16 %v1361
    %v1843 = vpack.c.b16 %v1842, %v1841
    %v1846 = vsel %vm233, %v1838, 0
    %1848 = vmatprep.subr.bf16.mxu0 0
    %1849 = vmatpush1.bf16.msra.mxu0 0
    %1850 = vmatprep.subr.bf16.mxu0 0
    %1851 = vmatpush1.bf16.msra.mxu0 0
    %1852 = vmatprep.subr.bf16.mxu0 0
    %1853 = vmatpush1.bf16.msra.mxu0 0
    %1854 = vmatprep.subr.bf16.mxu0 0
    %1855 = vmatpush1.bf16.msra.mxu0 0
    %1856 = vmatprep.subr.bf16.mxu0 0
    %1857 = vmatpush1.bf16.msra.mxu0 0
    %1858 = vmatprep.subr.bf16.mxu0 0
    %1859 = vmatpush1.bf16.msra.mxu0 0
    %1860 = vmatprep.subr.bf16.mxu0 0
    %1861 = vmatpush1.bf16.msra.mxu0 0
    %1862 = vmatprep.subr.bf16.mxu0 0
    %1863 = vmatpush1.bf16.msra.mxu0 %v1843
    %1864 = vmatprep.subr.bf16.mxu0 0
    %1865 = vmatpush2.bf16.msra.mxu0 0
    %1866 = vmatprep.subr.bf16.mxu0 0
    %1867 = vmatpush2.bf16.msra.mxu0 0
    %1868 = vmatprep.subr.bf16.mxu0 0
    %1869 = vmatpush2.bf16.msra.mxu0 0
    %1870 = vmatprep.subr.bf16.mxu0 0
    %1871 = vmatpush2.bf16.msra.mxu0 0
    %1872 = vmatprep.subr.bf16.mxu0 0
    %1873 = vmatpush2.bf16.msra.mxu0 0
    %1874 = vmatprep.subr.bf16.mxu0 0
    %1875 = vmatpush2.bf16.msra.mxu0 0
    %1876 = vmatprep.subr.bf16.mxu0 0
    %1877 = vmatpush2.bf16.msra.mxu0 0
    %1878 = vmatprep.subr.bf16.mxu0 0
    %1879 = vmatpush2.bf16.msra.mxu0 0
    %1880 = vmatprep.mubr.bf16.mxu0 0
    %1881 = vmatmul.mubr.bf16.gmra.mxu0 %v1846
    %v1882 = vpop.f32.mrf.mxu0
    %v1883 = vadd.f32 0.0, %v1882
    %v1884 = vpop.f32.mrf.mxu0
    %v1885 = vpop.f32.mrf.mxu0
    %v1886 = vadd.f32 0.0, %v1885
    %v1887 = vpop.f32.mrf.mxu0
    %1888 = vdwg.mxu0
    %v1889 = vadd.f32 %v1707, %v1883
    %v1890 = vadd.f32 %v1710, %v1886
    %1891 = vrot.lane.b32.xlu0 %v1353, 80
    %v1892 = vpop.permute.xlu0 %1891
    %1893 = vrot.lane.b32.xlu0 %v1353, 16
    %v1894 = vpop.permute.xlu0 %1893
    %v1896 = vsel %vm233, %v1892, 0
    %v1899 = vsel %vm233, %v1894, 0
    %1901 = vmatprep.subr.bf16.mxu0 0
    %1902 = vmatpush1.bf16.xpose.msra.mxu0 0
    %1903 = vmatprep.subr.bf16.mxu0 0
    %1904 = vmatpush1.bf16.xpose.msra.mxu0 0
    %1905 = vmatprep.subr.bf16.mxu0 0
    %1906 = vmatpush1.bf16.xpose.msra.mxu0 0
    %1907 = vmatprep.subr.bf16.mxu0 0
    %1908 = vmatpush1.bf16.xpose.msra.mxu0 0
    %1909 = vmatprep.subr.bf16.mxu0 0
    %1910 = vmatpush1.bf16.xpose.msra.mxu0 0
    %1911 = vmatprep.subr.bf16.mxu0 0
    %1912 = vmatpush1.bf16.xpose.msra.mxu0 0
    %1913 = vmatprep.subr.bf16.mxu0 0
    %1914 = vmatpush1.bf16.xpose.msra.mxu0 0
    %1915 = vmatprep.subr.bf16.mxu0 0
    %1916 = vmatpush1.bf16.xpose.msra.mxu0 %v1899
    %1917 = vmatprep.subr.bf16.mxu0 0
    %1918 = vmatpush2.bf16.xpose.msra.mxu0 0
    %1919 = vmatprep.subr.bf16.mxu0 0
    %1920 = vmatpush2.bf16.xpose.msra.mxu0 0
    %1921 = vmatprep.subr.bf16.mxu0 0
    %1922 = vmatpush2.bf16.xpose.msra.mxu0 0
    %1923 = vmatprep.subr.bf16.mxu0 0
    %1924 = vmatpush2.bf16.xpose.msra.mxu0 0
    %1925 = vmatprep.subr.bf16.mxu0 0
    %1926 = vmatpush2.bf16.xpose.msra.mxu0 0
    %1927 = vmatprep.subr.bf16.mxu0 0
    %1928 = vmatpush2.bf16.xpose.msra.mxu0 0
    %1929 = vmatprep.subr.bf16.mxu0 0
    %1930 = vmatpush2.bf16.xpose.msra.mxu0 0
    %1931 = vmatprep.subr.bf16.mxu0 0
    %1932 = vmatpush2.bf16.xpose.msra.mxu0 0
    %1933 = vmatprep.mubr.bf16.mxu0 0
    %1934 = vmatmul.mubr.bf16.gmra.mxu0 %v1896
    %v1935 = vpop.f32.mrf.mxu0
    %v1936 = vadd.f32 0.0, %v1935
    %v1937 = vpop.f32.mrf.mxu0
    %v1938 = vpop.f32.mrf.mxu0
    %v1939 = vadd.f32 0.0, %v1938
    %v1940 = vpop.f32.mrf.mxu0
    %1941 = vdwg.mxu0
    %v1942 = vmul.f32 %v1936, 0.25
    %v1943 = vmul.f32 %v1939, 0.25
    %v1944 = vadd.f32 %v1942, %v111
    %v1945 = vadd.f32 %v1943, %v112
    %v1946 = vsel %vm233, %v1944, -inf
    %1947 = vmax.xlane.f32.xlu0 %v1946
    %v1948 = vpop.xlane.xlu0 %1947
    %v1949 = vsel %vm233, %v1945, -inf
    %1950 = vmax.xlane.f32.xlu0 %v1949
    %v1951 = vpop.xlane.xlu0 %1950
    %v1952 = vsub.f32 %v1944, %v1948
    %v1953 = vsub.f32 %v1945, %v1951
    %v1954 = vmul.f32 %v1952, 1.442695
    %v1955 = vpow.pop %v1954
    %v1956 = vmul.f32 %v1953, 1.442695
    %v1957 = vpow.pop %v1956
    %v1958 = vsel %vm233, %v1955, 0.0
    %1959 = vadd.xlane.f32.xlu0 %v1958
    %v1960 = vpop.xlane.xlu0 %1959
    %v1961 = vsel %vm233, %v1957, 0.0
    %1962 = vadd.xlane.f32.xlu0 %v1961
    %v1963 = vpop.xlane.xlu0 %1962
    %v1964 = vrcp.pop %v1960
    %v1965 = vrcp.pop %v1963
    %v1966 = vmul.f32 %v1955, %v1964
    %v1967 = vmul.f32 %v1957, %v1965
    %v1968 = vpack.c.bf16 %v1967, %v1966
    %1969 = vrot.lane.b32.xlu0 %v1354, 80
    %v1970 = vpop.permute.xlu0 %1969
    %v1973 = vsel %vm233, %v1968, 0
    %1975 = vmatprep.subr.bf16.mxu0 0
    %1976 = vmatpush1.bf16.msra.mxu0 0
    %1977 = vmatprep.subr.bf16.mxu0 0
    %1978 = vmatpush1.bf16.msra.mxu0 0
    %1979 = vmatprep.subr.bf16.mxu0 0
    %1980 = vmatpush1.bf16.msra.mxu0 0
    %1981 = vmatprep.subr.bf16.mxu0 0
    %1982 = vmatpush1.bf16.msra.mxu0 0
    %1983 = vmatprep.subr.bf16.mxu0 0
    %1984 = vmatpush1.bf16.msra.mxu0 0
    %1985 = vmatprep.subr.bf16.mxu0 0
    %1986 = vmatpush1.bf16.msra.mxu0 0
    %1987 = vmatprep.subr.bf16.mxu0 0
    %1988 = vmatpush1.bf16.msra.mxu0 0
    %1989 = vmatprep.subr.bf16.mxu0 0
    %1990 = vmatpush1.bf16.msra.mxu0 %v1970
    %1991 = vmatprep.subr.bf16.mxu0 0
    %1992 = vmatpush2.bf16.msra.mxu0 0
    %1993 = vmatprep.subr.bf16.mxu0 0
    %1994 = vmatpush2.bf16.msra.mxu0 0
    %1995 = vmatprep.subr.bf16.mxu0 0
    %1996 = vmatpush2.bf16.msra.mxu0 0
    %1997 = vmatprep.subr.bf16.mxu0 0
    %1998 = vmatpush2.bf16.msra.mxu0 0
    %1999 = vmatprep.subr.bf16.mxu0 0
    %2000 = vmatpush2.bf16.msra.mxu0 0
    %2001 = vmatprep.subr.bf16.mxu0 0
    %2002 = vmatpush2.bf16.msra.mxu0 0
    %2003 = vmatprep.subr.bf16.mxu0 0
    %2004 = vmatpush2.bf16.msra.mxu0 0
    %2005 = vmatprep.subr.bf16.mxu0 0
    %2006 = vmatpush2.bf16.msra.mxu0 0
    %2007 = vmatprep.mubr.bf16.mxu0 0
    %2008 = vmatmul.mubr.bf16.gmra.mxu0 %v1973
    %v2009 = vpop.f32.mrf.mxu0
    %v2010 = vadd.f32 0.0, %v2009
    %v2011 = vpop.f32.mrf.mxu0
    %v2012 = vpop.f32.mrf.mxu0
    %v2013 = vadd.f32 0.0, %v2012
    %v2014 = vpop.f32.mrf.mxu0
    %2015 = vdwg.mxu0
    %v2016 = vpack.c.bf16 %v2013, %v2010
    %v2019 = vunpack.c.l.b16 %v1362
    %v2020 = vunpack.c.l.b16 %v1363
    %v2021 = vpack.c.b16 %v2020, %v2019
    %v2024 = vsel %vm233, %v2016, 0
    %2026 = vmatprep.subr.bf16.mxu0 0
    %2027 = vmatpush1.bf16.msra.mxu0 0
    %2028 = vmatprep.subr.bf16.mxu0 0
    %2029 = vmatpush1.bf16.msra.mxu0 0
    %2030 = vmatprep.subr.bf16.mxu0 0
    %2031 = vmatpush1.bf16.msra.mxu0 0
    %2032 = vmatprep.subr.bf16.mxu0 0
    %2033 = vmatpush1.bf16.msra.mxu0 0
    %2034 = vmatprep.subr.bf16.mxu0 0
    %2035 = vmatpush1.bf16.msra.mxu0 0
    %2036 = vmatprep.subr.bf16.mxu0 0
    %2037 = vmatpush1.bf16.msra.mxu0 0
    %2038 = vmatprep.subr.bf16.mxu0 0
    %2039 = vmatpush1.bf16.msra.mxu0 0
    %2040 = vmatprep.subr.bf16.mxu0 0
    %2041 = vmatpush1.bf16.msra.mxu0 %v2021
    %2042 = vmatprep.subr.bf16.mxu0 0
    %2043 = vmatpush2.bf16.msra.mxu0 0
    %2044 = vmatprep.subr.bf16.mxu0 0
    %2045 = vmatpush2.bf16.msra.mxu0 0
    %2046 = vmatprep.subr.bf16.mxu0 0
    %2047 = vmatpush2.bf16.msra.mxu0 0
    %2048 = vmatprep.subr.bf16.mxu0 0
    %2049 = vmatpush2.bf16.msra.mxu0 0
    %2050 = vmatprep.subr.bf16.mxu0 0
    %2051 = vmatpush2.bf16.msra.mxu0 0
    %2052 = vmatprep.subr.bf16.mxu0 0
    %2053 = vmatpush2.bf16.msra.mxu0 0
    %2054 = vmatprep.subr.bf16.mxu0 0
    %2055 = vmatpush2.bf16.msra.mxu0 0
    %2056 = vmatprep.subr.bf16.mxu0 0
    %2057 = vmatpush2.bf16.msra.mxu0 0
    %2058 = vmatprep.mubr.bf16.mxu0 0
    %2059 = vmatmul.mubr.bf16.gmra.mxu0 %v2024
    %v2060 = vpop.f32.mrf.mxu0
    %v2061 = vadd.f32 0.0, %v2060
    %v2062 = vpop.f32.mrf.mxu0
    %v2063 = vpop.f32.mrf.mxu0
    %v2064 = vadd.f32 0.0, %v2063
    %v2065 = vpop.f32.mrf.mxu0
    %2066 = vdwg.mxu0
    %v2067 = vadd.f32 %v1889, %v2061
    %v2068 = vadd.f32 %v1890, %v2064
    %s2069 = scalar_lea.vmem %s7, 1
    %v2070 = vld [vmem:[%s2069] sm:$0x1]
    %v2072 = vlaneseq
    %v2073 = vshrl.u32 %v2072, 7
    %v2074 = vsub.s32 0, %v2073
    %v2075 = vrot.slane %v2070, %v2074
    %v2077 = vadd.f32 %v2067, %v2075
    %v2078 = vadd.f32 %v2068, %v2075
    %v2079 = vadd.f32 %v2077, %v1242
    %v2080 = vadd.f32 %v2078, %v1243
    %s2081 = scalar_lea.vmem %s8, 1
    %v2082 = vld [vmem:[%s2081] sm:$0x1]
    %s2083 = scalar_lea.vmem %s9, 1
    %v2084 = vld [vmem:[%s2083] sm:$0x1]
    %v2085 = vsel %vm67, %v2079, 0.0
    %2086 = vadd.xlane.f32.xlu0 %v2085
    %v2087 = vpop.xlane.xlu0 %2086
    %v2088 = vsel %vm67, %v2080, 0.0
    %2089 = vadd.xlane.f32.xlu0 %v2088
    %v2090 = vpop.xlane.xlu0 %2089
    %v2091 = vmul.f32 %v2087, %v74
    %v2092 = vmul.f32 %v2090, %v74
    %v2093 = vsub.f32 %v2079, %v2091
    %v2094 = vsub.f32 %v2080, %v2092
    %v2095 = vmul.f32 %v2093, %v2093
    %v2096 = vmul.f32 %v2094, %v2094
    %v2097 = vsel %vm67, %v2095, 0.0
    %2098 = vadd.xlane.f32.xlu0 %v2097
    %v2099 = vpop.xlane.xlu0 %2098
    %v2100 = vsel %vm67, %v2096, 0.0
    %2101 = vadd.xlane.f32.xlu0 %v2100
    %v2102 = vpop.xlane.xlu0 %2101
    %v2103 = vmul.f32 %v2099, %v74
    %v2104 = vmul.f32 %v2102, %v74
    %v2105 = vadd.f32 %v2103, 1e-12
    %v2106 = vadd.f32 %v2104, 1e-12
    %v2107 = vrsqrt.pop %v2105
    %v2108 = vrsqrt.pop %v2106
    %v2109 = vmul.f32 %v2093, %v2107
    %v2110 = vmul.f32 %v2094, %v2108
    %v2112 = vlaneseq
    %v2113 = vshrl.u32 %v2112, 7
    %v2114 = vsub.s32 0, %v2113
    %v2115 = vrot.slane %v2082, %v2114
    %v2117 = vmul.f32 %v2109, %v2115
    %v2118 = vmul.f32 %v2110, %v2115
    %v2120 = vlaneseq
    %v2121 = vshrl.u32 %v2120, 7
    %v2122 = vsub.s32 0, %v2121
    %v2123 = vrot.slane %v2084, %v2122
    %v2125 = vadd.f32 %v2117, %v2123
    %v2126 = vadd.f32 %v2118, %v2123
    %v2127 = vpack.c.bf16 %v2126, %v2125
    %s2128 = scalar_lea.vmem %s10, 32
    %v2129 = vld [vmem:[%s2128] sm:$0xf]
    %v2130 = vld [vmem:[%s2128 + $0x4] sm:$0xf]
    %v2131 = vld [vmem:[%s2128 + $0x8] sm:$0xf]
    %v2132 = vld [vmem:[%s2128 + $0xc] sm:$0xf]
    %v2133 = vld [vmem:[%s2128 + $0x10] sm:$0xf]
    %v2134 = vld [vmem:[%s2128 + $0x14] sm:$0xf]
    %v2135 = vld [vmem:[%s2128 + $0x18] sm:$0xf]
    %v2136 = vld [vmem:[%s2128 + $0x1c] sm:$0xf]
    %s2137 = scalar_lea.vmem %s11, 1
    %v2138 = vld [vmem:[%s2137] sm:$0x1]
    %v2140 = vlaneseq
    %v2141 = vshrl.u32 %v2140, 7
    %v2142 = vsub.s32 0, %v2141
    %v2143 = vrot.slane %v2138, %v2142
    %v2153 = vunpack.c.l.b16 %v2129
    %v2154 = vunpack.c.l.b16 %v2130
    %v2155 = vunpack.c.l.b16 %v2131
    %v2156 = vunpack.c.l.b16 %v2132
    %v2157 = vunpack.c.l.b16 %v2133
    %v2158 = vunpack.c.l.b16 %v2134
    %v2159 = vunpack.c.l.b16 %v2135
    %v2160 = vunpack.c.l.b16 %v2136
    %v2161 = vpack.c.b16 %v2154, %v2153
    %v2162 = vpack.c.b16 %v2156, %v2155
    %v2163 = vpack.c.b16 %v2158, %v2157
    %v2164 = vpack.c.b16 %v2160, %v2159
    %v2170 = vsel %vm67, %v2127, 0
    %2172 = vmatprep.subr.bf16.mxu0 0
    %2173 = vmatpush1.bf16.msra.mxu0 0
    %2174 = vmatprep.subr.bf16.mxu0 0
    %2175 = vmatpush1.bf16.msra.mxu0 0
    %2176 = vmatprep.subr.bf16.mxu0 0
    %2177 = vmatpush1.bf16.msra.mxu0 0
    %2178 = vmatprep.subr.bf16.mxu0 0
    %2179 = vmatpush1.bf16.msra.mxu0 0
    %2180 = vmatprep.subr.bf16.mxu0 0
    %2181 = vmatpush1.bf16.msra.mxu0 %v2164
    %2182 = vmatprep.subr.bf16.mxu0 0
    %2183 = vmatpush1.bf16.msra.mxu0 %v2163
    %2184 = vmatprep.subr.bf16.mxu0 0
    %2185 = vmatpush1.bf16.msra.mxu0 %v2162
    %2186 = vmatprep.subr.bf16.mxu0 0
    %2187 = vmatpush1.bf16.msra.mxu0 %v2161
    %2188 = vmatprep.subr.bf16.mxu0 0
    %2189 = vmatpush2.bf16.msra.mxu0 0
    %2190 = vmatprep.subr.bf16.mxu0 0
    %2191 = vmatpush2.bf16.msra.mxu0 0
    %2192 = vmatprep.subr.bf16.mxu0 0
    %2193 = vmatpush2.bf16.msra.mxu0 0
    %2194 = vmatprep.subr.bf16.mxu0 0
    %2195 = vmatpush2.bf16.msra.mxu0 0
    %2196 = vmatprep.subr.bf16.mxu0 0
    %2197 = vmatpush2.bf16.msra.mxu0 0
    %2198 = vmatprep.subr.bf16.mxu0 0
    %2199 = vmatpush2.bf16.msra.mxu0 0
    %2200 = vmatprep.subr.bf16.mxu0 0
    %2201 = vmatpush2.bf16.msra.mxu0 0
    %2202 = vmatprep.subr.bf16.mxu0 0
    %2203 = vmatpush2.bf16.msra.mxu0 0
    %2204 = vmatprep.mubr.bf16.mxu0 0
    %2205 = vmatmul.mubr.bf16.gmra.mxu0 %v2170
    %v2206 = vpop.f32.mrf.mxu0
    %v2207 = vadd.f32 %v2143, %v2206
    %v2208 = vpop.f32.mrf.mxu0
    %v2209 = vpop.f32.mrf.mxu0
    %v2210 = vadd.f32 %v2143, %v2209
    %v2211 = vpop.f32.mrf.mxu0
    %2212 = vdwg.mxu0
    %v2213 = vmul.f32 %v2207, 0.5
    %v2214 = vmul.f32 %v2210, 0.5
    %v2215 = vmul.f32 %v2207, 0.70710677
    %v2216 = vmul.f32 %v2210, 0.70710677
    %v2217 = verf.f32.pop %v2215
    %v2218 = verf.f32.pop %v2216
    %v2219 = vadd.f32 %v2217, 1.0
    %v2220 = vadd.f32 %v2218, 1.0
    %v2221 = vmul.f32 %v2213, %v2219
    %v2222 = vmul.f32 %v2214, %v2220
    %v2223 = vpack.c.bf16 %v2222, %v2221
    %s2224 = scalar_lea.vmem %s12, 64
    %v2225 = vld [vmem:[%s2224] sm:$0xf]
    %v2226 = vld [vmem:[%s2224 + $0x4] sm:$0xf]
    %v2227 = vld [vmem:[%s2224 + $0x8] sm:$0xf]
    %v2228 = vld [vmem:[%s2224 + $0xc] sm:$0xf]
    %v2229 = vld [vmem:[%s2224 + $0x10] sm:$0xf]
    %v2230 = vld [vmem:[%s2224 + $0x14] sm:$0xf]
    %v2231 = vld [vmem:[%s2224 + $0x18] sm:$0xf]
    %v2232 = vld [vmem:[%s2224 + $0x1c] sm:$0xf]
    %v2233 = vld [vmem:[%s2224 + $0x20] sm:$0xf]
    %v2234 = vld [vmem:[%s2224 + $0x24] sm:$0xf]
    %v2235 = vld [vmem:[%s2224 + $0x28] sm:$0xf]
    %v2236 = vld [vmem:[%s2224 + $0x2c] sm:$0xf]
    %v2237 = vld [vmem:[%s2224 + $0x30] sm:$0xf]
    %v2238 = vld [vmem:[%s2224 + $0x34] sm:$0xf]
    %v2239 = vld [vmem:[%s2224 + $0x38] sm:$0xf]
    %v2240 = vld [vmem:[%s2224 + $0x3c] sm:$0xf]
    %s2241 = scalar_lea.vmem %s13, 1
    %v2242 = vld [vmem:[%s2241] sm:$0x1]
    %v2244 = vlaneseq
    %v2245 = vshrl.u32 %v2244, 7
    %v2246 = vsub.s32 0, %v2245
    %v2247 = vrot.slane %v2242, %v2246
    %v2265 = vunpack.c.l.b16 %v2225
    %v2266 = vunpack.c.l.b16 %v2226
    %v2267 = vunpack.c.l.b16 %v2227
    %v2268 = vunpack.c.l.b16 %v2228
    %v2269 = vunpack.c.l.b16 %v2229
    %v2270 = vunpack.c.l.b16 %v2230
    %v2271 = vunpack.c.l.b16 %v2231
    %v2272 = vunpack.c.l.b16 %v2232
    %v2273 = vunpack.c.l.b16 %v2233
    %v2274 = vunpack.c.l.b16 %v2234
    %v2275 = vunpack.c.l.b16 %v2235
    %v2276 = vunpack.c.l.b16 %v2236
    %v2277 = vunpack.c.l.b16 %v2237
    %v2278 = vunpack.c.l.b16 %v2238
    %v2279 = vunpack.c.l.b16 %v2239
    %v2280 = vunpack.c.l.b16 %v2240
    %v2281 = vpack.c.b16 %v2266, %v2265
    %v2282 = vpack.c.b16 %v2268, %v2267
    %v2283 = vpack.c.b16 %v2270, %v2269
    %v2284 = vpack.c.b16 %v2272, %v2271
    %v2285 = vpack.c.b16 %v2274, %v2273
    %v2286 = vpack.c.b16 %v2276, %v2275
    %v2287 = vpack.c.b16 %v2278, %v2277
    %v2288 = vpack.c.b16 %v2280, %v2279
    %2297 = vmatprep.subr.bf16.mxu0 0
    %2298 = vmatpush1.bf16.msra.mxu0 %v2288
    %2299 = vmatprep.subr.bf16.mxu0 0
    %2300 = vmatpush1.bf16.msra.mxu0 %v2287
    %2301 = vmatprep.subr.bf16.mxu0 0
    %2302 = vmatpush1.bf16.msra.mxu0 %v2286
    %2303 = vmatprep.subr.bf16.mxu0 0
    %2304 = vmatpush1.bf16.msra.mxu0 %v2285
    %2305 = vmatprep.subr.bf16.mxu0 0
    %2306 = vmatpush1.bf16.msra.mxu0 %v2284
    %2307 = vmatprep.subr.bf16.mxu0 0
    %2308 = vmatpush1.bf16.msra.mxu0 %v2283
    %2309 = vmatprep.subr.bf16.mxu0 0
    %2310 = vmatpush1.bf16.msra.mxu0 %v2282
    %2311 = vmatprep.subr.bf16.mxu0 0
    %2312 = vmatpush1.bf16.msra.mxu0 %v2281
    %2313 = vmatprep.subr.bf16.mxu0 0
    %2314 = vmatpush2.bf16.msra.mxu0 0
    %2315 = vmatprep.subr.bf16.mxu0 0
    %2316 = vmatpush2.bf16.msra.mxu0 0
    %2317 = vmatprep.subr.bf16.mxu0 0
    %2318 = vmatpush2.bf16.msra.mxu0 0
    %2319 = vmatprep.subr.bf16.mxu0 0
    %2320 = vmatpush2.bf16.msra.mxu0 0
    %2321 = vmatprep.subr.bf16.mxu0 0
    %2322 = vmatpush2.bf16.msra.mxu0 0
    %2323 = vmatprep.subr.bf16.mxu0 0
    %2324 = vmatpush2.bf16.msra.mxu0 0
    %2325 = vmatprep.subr.bf16.mxu0 0
    %2326 = vmatpush2.bf16.msra.mxu0 0
    %2327 = vmatprep.subr.bf16.mxu0 0
    %2328 = vmatpush2.bf16.msra.mxu0 0
    %2329 = vmatprep.mubr.bf16.mxu0 0
    %2330 = vmatmul.mubr.bf16.gmra.mxu0 %v2223
    %v2331 = vpop.f32.mrf.mxu0
    %v2332 = vadd.f32 %v2247, %v2331
    %v2333 = vpop.f32.mrf.mxu0
    %v2334 = vpop.f32.mrf.mxu0
    %v2335 = vadd.f32 %v2247, %v2334
    %v2336 = vpop.f32.mrf.mxu0
    %2337 = vdwg.mxu0
    %v2338 = vadd.f32 %v2332, %v2125
    %v2339 = vadd.f32 %v2335, %v2126
    %s2340 = scalar_lea.vmem %s14, 1
    %v2341 = vld [vmem:[%s2340] sm:$0x1]
    %s2342 = scalar_lea.vmem %s15, 1
    %v2343 = vld [vmem:[%s2342] sm:$0x1]
    %v2344 = vsel %vm67, %v2338, 0.0
    %2345 = vadd.xlane.f32.xlu0 %v2344
    %v2346 = vpop.xlane.xlu0 %2345
    %v2347 = vsel %vm67, %v2339, 0.0
    %2348 = vadd.xlane.f32.xlu0 %v2347
    %v2349 = vpop.xlane.xlu0 %2348
    %v2350 = vmul.f32 %v2346, %v74
    %v2351 = vmul.f32 %v2349, %v74
    %v2352 = vsub.f32 %v2338, %v2350
    %v2353 = vsub.f32 %v2339, %v2351
    %v2354 = vmul.f32 %v2352, %v2352
    %v2355 = vmul.f32 %v2353, %v2353
    %v2356 = vsel %vm67, %v2354, 0.0
    %2357 = vadd.xlane.f32.xlu0 %v2356
    %v2358 = vpop.xlane.xlu0 %2357
    %v2359 = vsel %vm67, %v2355, 0.0
    %2360 = vadd.xlane.f32.xlu0 %v2359
    %v2361 = vpop.xlane.xlu0 %2360
    %v2362 = vmul.f32 %v2358, %v74
    %v2363 = vmul.f32 %v2361, %v74
    %v2364 = vadd.f32 %v2362, 1e-12
    %v2365 = vadd.f32 %v2363, 1e-12
    %v2366 = vrsqrt.pop %v2364
    %v2367 = vrsqrt.pop %v2365
    %v2368 = vmul.f32 %v2352, %v2366
    %v2369 = vmul.f32 %v2353, %v2367
    %v2371 = vlaneseq
    %v2372 = vshrl.u32 %v2371, 7
    %v2373 = vsub.s32 0, %v2372
    %v2374 = vrot.slane %v2341, %v2373
    %v2376 = vmul.f32 %v2368, %v2374
    %v2377 = vmul.f32 %v2369, %v2374
    %v2379 = vlaneseq
    %v2380 = vshrl.u32 %v2379, 7
    %v2381 = vsub.s32 0, %v2380
    %v2382 = vrot.slane %v2343, %v2381
    %v2384 = vadd.f32 %v2376, %v2382
    %v2385 = vadd.f32 %v2377, %v2382
    %v2387 = vrot.slane %v2385, 7
    %vm2389 = vcmask 1040384
    %v2390 = vsel %vm2389, %v2384, %v2387
    %v2391 = vpack.c.bf16 %v2390, %v2390
    %v2392 = vld [vmem:[%s16] sm:$0xf]
    %v2393 = vld [vmem:[%s16 + $0x4] sm:$0xf]
    %v2394 = vld [vmem:[%s16 + $0x8] sm:$0xf]
    %v2395 = vld [vmem:[%s16 + $0xc] sm:$0xf]
    %v2396 = vld [vmem:[%s16 + $0x10] sm:$0xf]
    %v2397 = vld [vmem:[%s16 + $0x14] sm:$0xf]
    %v2398 = vld [vmem:[%s16 + $0x18] sm:$0xf]
    %v2399 = vld [vmem:[%s16 + $0x1c] sm:$0xf]
    %v2400 = vld [vmem:[%s17] sm:$0x1]
    %v2402 = vlaneseq
    %v2403 = vshrl.u32 %v2402, 7
    %v2404 = vsub.s32 0, %v2403
    %v2405 = vrot.slane %v2400, %v2404
    %v2415 = vunpack.c.l.b16 %v2392
    %v2416 = vunpack.c.l.b16 %v2393
    %v2417 = vunpack.c.l.b16 %v2394
    %v2418 = vunpack.c.l.b16 %v2395
    %v2419 = vunpack.c.l.b16 %v2396
    %v2420 = vunpack.c.l.b16 %v2397
    %v2421 = vunpack.c.l.b16 %v2398
    %v2422 = vunpack.c.l.b16 %v2399
    %v2423 = vpack.c.b16 %v2416, %v2415
    %v2424 = vpack.c.b16 %v2418, %v2417
    %v2425 = vpack.c.b16 %v2420, %v2419
    %v2426 = vpack.c.b16 %v2422, %v2421
    %v2432 = vsel %vm67, %v2391, 0
    %2434 = vmatprep.subr.bf16.mxu0 0
    %2435 = vmatpush1.bf16.msra.mxu0 0
    %2436 = vmatprep.subr.bf16.mxu0 0
    %2437 = vmatpush1.bf16.msra.mxu0 0
    %2438 = vmatprep.subr.bf16.mxu0 0
    %2439 = vmatpush1.bf16.msra.mxu0 0
    %2440 = vmatprep.subr.bf16.mxu0 0
    %2441 = vmatpush1.bf16.msra.mxu0 0
    %2442 = vmatprep.subr.bf16.mxu0 0
    %2443 = vmatpush1.bf16.msra.mxu0 %v2426
    %2444 = vmatprep.subr.bf16.mxu0 0
    %2445 = vmatpush1.bf16.msra.mxu0 %v2425
    %2446 = vmatprep.subr.bf16.mxu0 0
    %2447 = vmatpush1.bf16.msra.mxu0 %v2424
    %2448 = vmatprep.subr.bf16.mxu0 0
    %2449 = vmatpush1.bf16.msra.mxu0 %v2423
    %2450 = vmatprep.subr.bf16.mxu0 0
    %2451 = vmatpush2.bf16.msra.mxu0 0
    %2452 = vmatprep.subr.bf16.mxu0 0
    %2453 = vmatpush2.bf16.msra.mxu0 0
    %2454 = vmatprep.subr.bf16.mxu0 0
    %2455 = vmatpush2.bf16.msra.mxu0 0
    %2456 = vmatprep.subr.bf16.mxu0 0
    %2457 = vmatpush2.bf16.msra.mxu0 0
    %2458 = vmatprep.subr.bf16.mxu0 0
    %2459 = vmatpush2.bf16.msra.mxu0 0
    %2460 = vmatprep.subr.bf16.mxu0 0
    %2461 = vmatpush2.bf16.msra.mxu0 0
    %2462 = vmatprep.subr.bf16.mxu0 0
    %2463 = vmatpush2.bf16.msra.mxu0 0
    %2464 = vmatprep.subr.bf16.mxu0 0
    %2465 = vmatpush2.bf16.msra.mxu0 0
    %2466 = vmatprep.mubr.bf16.mxu0 0
    %2467 = vmatmul.mubr.bf16.gmra.mxu0 %v2432
    %v2468 = vpop.f32.mrf.mxu0
    %v2469 = vadd.f32 %v2405, %v2468
    %v2470 = vpop.f32.mrf.mxu0
    %v2471 = vpop.f32.mrf.mxu0
    %v2472 = vpop.f32.mrf.mxu0
    %2473 = vdwg.mxu0
    %2474 = vst [vmem:[#allocation2] sm:$0x3] %v2469
    // Predicated region
    $region74: #{bert_with_softmax_forward.1} parent=1 // pred_check
      _
    $region75: #{bert_with_softmax_forward.1} parent=1 // pred_check_branch
      %2476 = sbr.rel (0) target = $region77
    $region76: #{bert_with_softmax_forward.1} parent=1 // pred_region
      %s2478 = ssub.s32 32, 32
      %2479 = vsyncadd [#allocation3], %s2478
      %s2481 = sshll.u32 [#allocation2], 4
      %s2482 = int_to_ptr.vmem [resolvable:$true] %s2481
      %2484 = dma.vmem_to_hbm [thread:$0]  %s2482, 32, %s18, [#allocation3]
    $region77: #{bert_with_softmax_forward.1} parent=1 // pred_fallthru
      _
    // Predicated region
    $region78: #{bert_with_softmax_forward.1} parent=1 // pred_check
      _
    $region79: #{bert_with_softmax_forward.1} parent=1 // pred_check_branch
      %2486 = sbr.rel (0) target = $region81
    $region80: #{bert_with_softmax_forward.1} parent=1 // pred_region
      %2487 = dma.done [#allocation3], 32
    $region81: #{bert_with_softmax_forward.1} parent=1 // pred_fallthru
      _
    %2488 = vsyncpa [#allocation3], 1

</llo_original>
